<compile_context>
chip_gen: v7x
topology: tpu7x:2x2x1
jax: 0.10.0
libtpu: 0.0.40
codegen_flags: <defaults>
</compile_context>

<pallas_src>
import functools
import math

import jax
import jax.numpy as jnp
from jax.experimental import pallas as pl
from jax.experimental.pallas import tpu as pltpu

HEAD_SIZE = 64
N_HEADS = 6
EMB_SIZE = HEAD_SIZE * N_HEADS          # 384
HIDDEN = EMB_SIZE * 4                   # 1536


def _round_up(x, m):
    return ((x + m - 1) // m) * m


def _gelu_exact(x):
    # nn.GELU() default = exact erf-based GELU.
    return 0.5 * x * (1.0 + jax.lax.erf(x * (1.0 / math.sqrt(2.0))))


def _gelu(h, approximate):
    if approximate:
        return jax.nn.gelu(h, approximate=True)   # tanh -> EUP slot
    return _gelu_exact(h)


def _device_gelu_defaults():
    """(approximate_gelu, gelu_in_bf16) chosen per TPU generation.

    v6e/v7x: tanh GELU on the EUP, computed in bf16 (packed VPU/EUP).
    v5e and older: exact erf in f32 (hides under the slower MXU; no bf16
    VPU/EUP there, bf16 math would be emulated).
    """
    try:
        kind = jax.devices()[0].device_kind.lower()
    except Exception:
        kind = ""
    old_gen = any(s in kind for s in ("v2", "v3", "v4", "v5"))
    return (not old_gen, not old_gen)


def mlp_kernel(x_ref, w_fc_ref, w_proj_ref, o_ref, *,
               approximate_gelu, gelu_in_bf16, hidden_chunk):
    # x_ref:      (tm, EMB)      f32 activation tile (cast to bf16 in VMEM here)
    # w_fc_ref:   (EMB, HIDDEN)  bf16 full weight (pre-transposed, grid-invariant)
    # w_proj_ref: (HIDDEN, EMB)  bf16 full weight (pre-transposed, grid-invariant)
    # o_ref:      (tm, EMB)      output tile (f32 or bf16)
    x = x_ref[...].astype(jnp.bfloat16)           # in-kernel cast: saves an HBM pass
    acc = jnp.zeros((x.shape[0], o_ref.shape[-1]), jnp.float32)
    n_chunks = HIDDEN // hidden_chunk
    for k in range(n_chunks):                     # static, (8,128)-aligned slices
        lo, hi = k * hidden_chunk, (k + 1) * hidden_chunk
        # matmul1 chunk: bf16 x bf16 -> f32 accumulate on the MXU.
        h = jnp.dot(x, w_fc_ref[:, lo:hi], preferred_element_type=jnp.float32)
        if gelu_in_bf16:
            h = h.astype(jnp.bfloat16)            # packed bf16 VPU/EUP on v6e/v7x
        h = _gelu(h, approximate_gelu)
        h = h.astype(jnp.bfloat16)                # MXU-native LHS for matmul2
        acc = acc + jnp.dot(h, w_proj_ref[lo:hi, :],
                            preferred_element_type=jnp.float32)
    o_ref[...] = acc.astype(o_ref.dtype)
    # Dropout: eval-mode identity (see TODO at top).


def mlp_forward(x, w_fc_t, w_proj_t, *, tm=512, hidden_chunk=512,
                approximate_gelu=None, gelu_in_bf16=None,
                out_dtype=None, vmem_limit_bytes=None):
    """x: (B, T, EMB) f32. w_fc_t: (EMB, HIDDEN). w_proj_t: (HIDDEN, EMB).

    Weights are ideally *stored* in bf16 by the caller (the astype below is
    then a no-op); activations stay f32 all the way into the kernel.
    """
    B, T, C = x.shape
    assert C == EMB_SIZE
    assert HIDDEN % hidden_chunk == 0 and hidden_chunk % 128 == 0

    if approximate_gelu is None or gelu_in_bf16 is None:
        d_approx, d_bf16 = _device_gelu_defaults()
        if approximate_gelu is None:
            approximate_gelu = d_approx
        if gelu_in_bf16 is None:
            gelu_in_bf16 = d_bf16
    out_dtype = x.dtype if out_dtype is None else out_dtype

    M = B * T
    x2d = x.reshape(M, C)

    # Row tile: multiple of 16 (bf16 sublane packing), clamped to the problem
    # size; shrink (only when M is large enough) so the grid keeps >= 4 steps
    # -> >= 2 steps per TensorCore on v7x megacore.
    tm_eff = max(16, min(_round_up(tm, 16), _round_up(M, 16)))
    while tm_eff >= 512 and pl.cdiv(M, tm_eff) < 4:
        tm_eff = max(256, _round_up(tm_eff // 2, 16))
    Mp = _round_up(M, tm_eff)
    if Mp != M:
        # Zero-padded rows are independent (GELU(0)=0) and sliced off below.
        x2d = jnp.pad(x2d, ((0, Mp - M), (0, 0)))

    w_fc_bf = w_fc_t.astype(jnp.bfloat16)
    w_proj_bf = w_proj_t.astype(jnp.bfloat16)

    grid = (Mp // tm_eff,)
    out_bytes = jnp.dtype(out_dtype).itemsize

    cost = pl.CostEstimate(
        flops=4 * Mp * C * HIDDEN,                     # two matmuls, 2 flop/MAC
        transcendentals=Mp * HIDDEN,                   # one erf/tanh per hidden elem
        bytes_accessed=(Mp * C * x2d.dtype.itemsize    # x (f32)
                        + C * HIDDEN * 2               # w_fc (bf16)
                        + HIDDEN * C * 2               # w_proj (bf16)
                        + Mp * C * out_bytes),         # out
    )

    kernel = functools.partial(mlp_kernel,
                               approximate_gelu=approximate_gelu,
                               gelu_in_bf16=gelu_in_bf16,
                               hidden_chunk=hidden_chunk)

    out2d = pl.pallas_call(
        kernel,
        out_shape=jax.ShapeDtypeStruct((Mp, C), out_dtype),
        grid_spec=pltpu.PrefetchScalarGridSpec(
            num_scalar_prefetch=0,
            grid=grid,
            in_specs=[
                # Streaming activation tile: double-buffered (default).
                pl.BlockSpec((tm_eff, C), lambda i: (i, 0)),
                # Grid-invariant weights: single-buffered to save VMEM.
                pl.BlockSpec((C, HIDDEN), lambda i: (0, 0),
                             pipeline_mode=pl.Buffered(1)),
                pl.BlockSpec((HIDDEN, C), lambda i: (0, 0),
                             pipeline_mode=pl.Buffered(1)),
            ],
            out_specs=pl.BlockSpec((tm_eff, C), lambda i: (i, 0)),
        ),
        compiler_params=pltpu.CompilerParams(
            dimension_semantics=("parallel",),      # shards M across TCs on v7x
            vmem_limit_bytes=vmem_limit_bytes,
        ),
        cost_estimate=cost,
    )(x2d, w_fc_bf, w_proj_bf)

    if Mp != M:
        out2d = out2d[:M]
    return out2d.reshape(B, T, C)


if __name__ == "__main__":
    key = jax.random.PRNGKey(0)
    kx, k1, k2 = jax.random.split(key, 3)

    B, T = 2, 8
    x = jax.random.normal(kx, (B, T, EMB_SIZE), jnp.float32)

    # Deterministic init mimicking nn.Linear default (uniform +-1/sqrt(fan_in)),
    # stored pre-transposed as (in, out).
    bound_fc = 1.0 / math.sqrt(EMB_SIZE)
    bound_proj = 1.0 / math.sqrt(HIDDEN)
    w_fc_t = jax.random.uniform(k1, (EMB_SIZE, HIDDEN), jnp.float32,
                                minval=-bound_fc, maxval=bound_fc)
    w_proj_t = jax.random.uniform(k2, (HIDDEN, EMB_SIZE), jnp.float32,
                                  minval=-bound_proj, maxval=bound_proj)

    approx, g_bf16 = _device_gelu_defaults()

    y = mlp_forward(x, w_fc_t, w_proj_t)
    y = jax.block_until_ready(y)
    assert y.shape == (B, T, EMB_SIZE)

    # Reference mirroring the kernel's numeric path (bf16 operands, f32 acc,
    # same GELU flavor/precision as chosen for this device).
    xb = x.reshape(-1, EMB_SIZE).astype(jnp.bfloat16)
    h_ref = jnp.dot(xb, w_fc_t.astype(jnp.bfloat16),
                    preferred_element_type=jnp.float32)
    if g_bf16:
        h_ref = h_ref.astype(jnp.bfloat16)
    h_ref = _gelu(h_ref, approx).astype(jnp.bfloat16)
    ref = jnp.dot(h_ref, w_proj_t.astype(jnp.bfloat16),
                  preferred_element_type=jnp.float32)
    ref = ref.reshape(B, T, EMB_SIZE)
    assert jnp.allclose(y.astype(jnp.float32), ref, atol=2e-2, rtol=2e-2)

    # Coarse check against the pure-f32 exact-GELU reference
    # (bf16 rounding + tanh-approximation tolerance).
    ref_f32 = _gelu_exact(x.reshape(-1, EMB_SIZE) @ w_fc_t) @ w_proj_t
    ref_f32 = ref_f32.reshape(B, T, EMB_SIZE)
    assert jnp.allclose(y.astype(jnp.float32), ref_f32, atol=7e-2, rtol=7e-2)

    print("KERNEL_OK")
</pallas_src>

<mosaic_0001>
module attributes {stable_mosaic.version = 11 : i64} {
  func.func @mlp_kernel(%arg0: i32, %arg1: memref<16x384xf32, #tpu.memory_space<vmem>>, %arg2: memref<384x1536xbf16, #tpu.memory_space<vmem>>, %arg3: memref<1536x384xbf16, #tpu.memory_space<vmem>>, %arg4: memref<16x384xf32, #tpu.memory_space<vmem>>) attributes {dimension_semantics = [#tpu.dimension_semantics<parallel>], iteration_bounds = array<i64: 1>, scalar_prefetch = 0 : i64, scratch_operands = 0 : i64, tpu.core_type = #tpu.core_type<tc>, window_params = [{transform_indices = @transform_0, window_bounds = array<i64: 16, 384>}, {pipeline_mode = #tpu.pipeline_mode<synchronous>, transform_indices = @transform_1, window_bounds = array<i64: 384, 1536>}, {pipeline_mode = #tpu.pipeline_mode<synchronous>, transform_indices = @transform_2, window_bounds = array<i64: 1536, 384>}, {transform_indices = @transform_3, window_bounds = array<i64: 16, 384>}]} {
    %c0 = arith.constant 0 : index
    %c0_0 = arith.constant 0 : index
    %0 = vector.load %arg1[%c0, %c0_0] : memref<16x384xf32, #tpu.memory_space<vmem>>, vector<16x384xf32>
    %1 = arith.truncf %0 : vector<16x384xf32> to vector<16x384xbf16>
    %cst = arith.constant 0.000000e+00 : f32
    %2 = vector.broadcast %cst : f32 to vector<16x384xf32>
    %c0_1 = arith.constant 0 : index
    %c0_2 = arith.constant 0 : index
    %3 = vector.load %arg2[%c0_1, %c0_2] : memref<384x1536xbf16, #tpu.memory_space<vmem>>, vector<384x512xbf16>
    %cst_3 = arith.constant dense<0.000000e+00> : vector<16x512xf32>
    %4 = tpu.matmul %1, %3, %cst_3 {dimension_numbers = #tpu.dot_dimension_numbers<[1], [0], [0], [1], [0, 0, 1, 1], [], []>} : vector<16x384xbf16>, vector<384x512xbf16>, vector<16x512xf32> -> vector<16x512xf32>
    %5 = arith.truncf %4 : vector<16x512xf32> to vector<16x512xbf16>
    %6 = arith.mulf %5, %5 : vector<16x512xbf16>
    %7 = arith.mulf %5, %6 : vector<16x512xbf16>
    %cst_4 = arith.constant 4.467770e-02 : bf16
    %8 = vector.broadcast %cst_4 : bf16 to vector<16x512xbf16>
    %9 = arith.mulf %8, %7 : vector<16x512xbf16>
    %10 = arith.addf %5, %9 : vector<16x512xbf16>
    %cst_5 = arith.constant 7.968750e-01 : bf16
    %11 = vector.broadcast %cst_5 : bf16 to vector<16x512xbf16>
    %12 = arith.mulf %11, %10 : vector<16x512xbf16>
    %13 = math.tanh %12 : vector<16x512xbf16>
    %cst_6 = arith.constant 1.000000e+00 : bf16
    %14 = vector.broadcast %cst_6 : bf16 to vector<16x512xbf16>
    %15 = arith.addf %14, %13 : vector<16x512xbf16>
    %cst_7 = arith.constant 5.000000e-01 : bf16
    %16 = vector.broadcast %cst_7 : bf16 to vector<16x512xbf16>
    %17 = arith.mulf %16, %15 : vector<16x512xbf16>
    %18 = arith.mulf %5, %17 : vector<16x512xbf16>
    %c0_8 = arith.constant 0 : index
    %c0_9 = arith.constant 0 : index
    %19 = vector.load %arg3[%c0_8, %c0_9] : memref<1536x384xbf16, #tpu.memory_space<vmem>>, vector<512x384xbf16>
    %cst_10 = arith.constant dense<0.000000e+00> : vector<16x384xf32>
    %20 = tpu.matmul %18, %19, %cst_10 {dimension_numbers = #tpu.dot_dimension_numbers<[1], [0], [0], [1], [0, 0, 1, 1], [], []>} : vector<16x512xbf16>, vector<512x384xbf16>, vector<16x384xf32> -> vector<16x384xf32>
    %21 = arith.addf %2, %20 : vector<16x384xf32>
    %c0_11 = arith.constant 0 : index
    %c512 = arith.constant 512 : index
    %22 = vector.load %arg2[%c0_11, %c512] : memref<384x1536xbf16, #tpu.memory_space<vmem>>, vector<384x512xbf16>
    %cst_12 = arith.constant dense<0.000000e+00> : vector<16x512xf32>
    %23 = tpu.matmul %1, %22, %cst_12 {dimension_numbers = #tpu.dot_dimension_numbers<[1], [0], [0], [1], [0, 0, 1, 1], [], []>} : vector<16x384xbf16>, vector<384x512xbf16>, vector<16x512xf32> -> vector<16x512xf32>
    %24 = arith.truncf %23 : vector<16x512xf32> to vector<16x512xbf16>
    %25 = arith.mulf %24, %24 : vector<16x512xbf16>
    %26 = arith.mulf %24, %25 : vector<16x512xbf16>
    %cst_13 = arith.constant 4.467770e-02 : bf16
    %27 = vector.broadcast %cst_13 : bf16 to vector<16x512xbf16>
    %28 = arith.mulf %27, %26 : vector<16x512xbf16>
    %29 = arith.addf %24, %28 : vector<16x512xbf16>
    %cst_14 = arith.constant 7.968750e-01 : bf16
    %30 = vector.broadcast %cst_14 : bf16 to vector<16x512xbf16>
    %31 = arith.mulf %30, %29 : vector<16x512xbf16>
    %32 = math.tanh %31 : vector<16x512xbf16>
    %cst_15 = arith.constant 1.000000e+00 : bf16
    %33 = vector.broadcast %cst_15 : bf16 to vector<16x512xbf16>
    %34 = arith.addf %33, %32 : vector<16x512xbf16>
    %cst_16 = arith.constant 5.000000e-01 : bf16
    %35 = vector.broadcast %cst_16 : bf16 to vector<16x512xbf16>
    %36 = arith.mulf %35, %34 : vector<16x512xbf16>
    %37 = arith.mulf %24, %36 : vector<16x512xbf16>
    %c512_17 = arith.constant 512 : index
    %c0_18 = arith.constant 0 : index
    %38 = vector.load %arg3[%c512_17, %c0_18] : memref<1536x384xbf16, #tpu.memory_space<vmem>>, vector<512x384xbf16>
    %cst_19 = arith.constant dense<0.000000e+00> : vector<16x384xf32>
    %39 = tpu.matmul %37, %38, %cst_19 {dimension_numbers = #tpu.dot_dimension_numbers<[1], [0], [0], [1], [0, 0, 1, 1], [], []>} : vector<16x512xbf16>, vector<512x384xbf16>, vector<16x384xf32> -> vector<16x384xf32>
    %40 = arith.addf %21, %39 : vector<16x384xf32>
    %c0_20 = arith.constant 0 : index
    %c1024 = arith.constant 1024 : index
    %41 = vector.load %arg2[%c0_20, %c1024] : memref<384x1536xbf16, #tpu.memory_space<vmem>>, vector<384x512xbf16>
    %cst_21 = arith.constant dense<0.000000e+00> : vector<16x512xf32>
    %42 = tpu.matmul %1, %41, %cst_21 {dimension_numbers = #tpu.dot_dimension_numbers<[1], [0], [0], [1], [0, 0, 1, 1], [], []>} : vector<16x384xbf16>, vector<384x512xbf16>, vector<16x512xf32> -> vector<16x512xf32>
    %43 = arith.truncf %42 : vector<16x512xf32> to vector<16x512xbf16>
    %44 = arith.mulf %43, %43 : vector<16x512xbf16>
    %45 = arith.mulf %43, %44 : vector<16x512xbf16>
    %cst_22 = arith.constant 4.467770e-02 : bf16
    %46 = vector.broadcast %cst_22 : bf16 to vector<16x512xbf16>
    %47 = arith.mulf %46, %45 : vector<16x512xbf16>
    %48 = arith.addf %43, %47 : vector<16x512xbf16>
    %cst_23 = arith.constant 7.968750e-01 : bf16
    %49 = vector.broadcast %cst_23 : bf16 to vector<16x512xbf16>
    %50 = arith.mulf %49, %48 : vector<16x512xbf16>
    %51 = math.tanh %50 : vector<16x512xbf16>
    %cst_24 = arith.constant 1.000000e+00 : bf16
    %52 = vector.broadcast %cst_24 : bf16 to vector<16x512xbf16>
    %53 = arith.addf %52, %51 : vector<16x512xbf16>
    %cst_25 = arith.constant 5.000000e-01 : bf16
    %54 = vector.broadcast %cst_25 : bf16 to vector<16x512xbf16>
    %55 = arith.mulf %54, %53 : vector<16x512xbf16>
    %56 = arith.mulf %43, %55 : vector<16x512xbf16>
    %c1024_26 = arith.constant 1024 : index
    %c0_27 = arith.constant 0 : index
    %57 = vector.load %arg3[%c1024_26, %c0_27] : memref<1536x384xbf16, #tpu.memory_space<vmem>>, vector<512x384xbf16>
    %cst_28 = arith.constant dense<0.000000e+00> : vector<16x384xf32>
    %58 = tpu.matmul %56, %57, %cst_28 {dimension_numbers = #tpu.dot_dimension_numbers<[1], [0], [0], [1], [0, 0, 1, 1], [], []>} : vector<16x512xbf16>, vector<512x384xbf16>, vector<16x384xf32> -> vector<16x384xf32>
    %59 = arith.addf %40, %58 : vector<16x384xf32>
    %c0_29 = arith.constant 0 : index
    %c0_30 = arith.constant 0 : index
    %60 = vector.load %arg4[%c0_29, %c0_30] : memref<16x384xf32, #tpu.memory_space<vmem>>, vector<16x384xf32>
    tpu.vector_store %arg4[%c0_29, %c0_30], %59 {strides = array<i32>} : memref<16x384xf32, #tpu.memory_space<vmem>>, vector<16x384xf32>,
    return
  }
  func.func @transform_0(%arg0: i32) -> (i32, i32) {
    %c0_i32 = arith.constant 0 : i32
    %c0_i32_0 = arith.constant 0 : i32
    return %arg0, %c0_i32 : i32, i32
  }
  func.func @transform_1(%arg0: i32) -> (i32, i32) {
    %c0_i32 = arith.constant 0 : i32
    %c0_i32_0 = arith.constant 0 : i32
    %c0_i32_1 = arith.constant 0 : i32
    return %c0_i32, %c0_i32_0 : i32, i32
  }
  func.func @transform_2(%arg0: i32) -> (i32, i32) {
    %c0_i32 = arith.constant 0 : i32
    %c0_i32_0 = arith.constant 0 : i32
    %c0_i32_1 = arith.constant 0 : i32
    return %c0_i32, %c0_i32_0 : i32, i32
  }
  func.func @transform_3(%arg0: i32) -> (i32, i32) {
    %c0_i32 = arith.constant 0 : i32
    %c0_i32_0 = arith.constant 0 : i32
    return %arg0, %c0_i32 : i32, i32
  }
}

</mosaic_0001>

<llo_original>
// kernel: tpu_custom_call.1
$region0: #{tpu_custom_call.1}
  #allocation0 [shape = 'u32[]', space=smem, size = 0x4, offset = 0x4, fixed_abs, tag = 'smem constant byte address 0x4 - core index']
  #allocation1 [shape = 'u32[144,128]{1,0:T(1,128)}', space=vmem, size = 0x12000, scoped, tag = 'internal scratch']
  %s0 = inlined_call_operand.hbm [shape: f32[16,384], index: 0, kind: input, shape index: {}]
  %s1 = inlined_call_operand.hbm [shape: bf16[384,1536], index: 1, kind: input, shape index: {}]
  %s2 = inlined_call_operand.hbm [shape: bf16[1536,384], index: 2, kind: input, shape index: {}]
  %s3 = inlined_call_operand.hbm [shape: f32[16,384], index: 3, kind: output, shape index: {}]
  %s4 = sld [smem:[#allocation0]]
  $region34: #{tpu_custom_call.1} parent=0
    _
  %s6 = ssub.s32 1, %s4
  %s7 = scalar_select 0, %s6, %s4
  $region1: #{tpu_custom_call.1} parent=0
    #allocation2 [shape = 'u8[24576]{0}', space=vmem, size = 0x6000, scoped, tag = 'input window, operand 0, single buffered']
    #allocation3 [shape = 's32[1]{0}', space=sflag, size = 0x4, scoped, tag = 'scoped memory for tpu_custom_call.1']
    #allocation4 [shape = 's32[1]{0}', space=sflag, size = 0x4, scoped, tag = 'scoped memory for tpu_custom_call.1']
    #allocation5 [shape = 'u8[1179648]{0}', space=vmem, size = 0x120000, scoped, tag = 'input window, operand 1, single buffered']
    #allocation6 [shape = 's32[1]{0}', space=sflag, size = 0x4, scoped, tag = 'scoped memory for tpu_custom_call.1']
    #allocation7 [shape = 'u8[1179648]{0}', space=vmem, size = 0x120000, scoped, tag = 'input window, operand 2, single buffered']
    #allocation8 [shape = 'u8[24576]{0}', space=vmem, size = 0x6000, scoped, tag = 'output window, operand 0, single buffered']
    %8 = vsyncpa [#allocation3], 0
    %9 = vsyncpa [#allocation6], 0
    %10 = vsyncpa [#allocation4], 0
    // Predicated region
    $region2: #{tpu_custom_call.1} parent=1 // pred_check
      _
    $region3: #{tpu_custom_call.1} parent=1 // pred_check_branch
      %12 = sbr.rel (0) target = $region5
    $region4: #{tpu_custom_call.1} parent=1 // pred_region
      %s14 = ssub.s32 768, 768
      %15 = vsyncadd [#allocation3], %s14
      %s16 = sshll.u32 [#allocation2], 4
      %s17 = int_to_ptr.vmem [resolvable:$true] %s16
      %22 = dma.hbm_to_vmem [thread:$0]  %s0, 768, %s17, [#allocation3], 384, 384, 24
    $region5: #{tpu_custom_call.1} parent=1 // pred_fallthru
      _
    // Predicated region
    $region6: #{tpu_custom_call.1} parent=1 // pred_check
      _
    $region7: #{tpu_custom_call.1} parent=1 // pred_check_branch
      %24 = sbr.rel (0) target = $region9
    $region8: #{tpu_custom_call.1} parent=1 // pred_region
      %s26 = ssub.s32 36864, 36864
      %27 = vsyncadd [#allocation6], %s26
      %s28 = sshll.u32 [#allocation5], 4
      %s29 = int_to_ptr.vmem [resolvable:$true] %s28
      %34 = dma.hbm_to_vmem [thread:$0]  %s1, 36864, %s29, [#allocation6], 768, 768, 48
    $region9: #{tpu_custom_call.1} parent=1 // pred_fallthru
      _
    // Predicated region
    $region10: #{tpu_custom_call.1} parent=1 // pred_check
      _
    $region11: #{tpu_custom_call.1} parent=1 // pred_check_branch
      %36 = sbr.rel (0) target = $region13
    $region12: #{tpu_custom_call.1} parent=1 // pred_region
      %s38 = ssub.s32 36864, 36864
      %39 = vsyncadd [#allocation6], %s38
      %s40 = sshll.u32 [#allocation7], 4
      %s41 = int_to_ptr.vmem [resolvable:$true] %s40
      %46 = dma.hbm_to_vmem [thread:$0]  %s2, 36864, %s41, [#allocation6], 192, 192, 12
    $region13: #{tpu_custom_call.1} parent=1 // pred_fallthru
      _
    // Predicated region
    $region14: #{tpu_custom_call.1} parent=1 // pred_check
      _
    $region15: #{tpu_custom_call.1} parent=1 // pred_check_branch
      %48 = sbr.rel (0) target = $region17
    $region16: #{tpu_custom_call.1} parent=1 // pred_region
      %49 = dma.done [#allocation3], 768
    $region17: #{tpu_custom_call.1} parent=1 // pred_fallthru
      _
    // Predicated region
    $region18: #{tpu_custom_call.1} parent=1 // pred_check
      _
    $region19: #{tpu_custom_call.1} parent=1 // pred_check_branch
      %51 = sbr.rel (0) target = $region21
    $region20: #{tpu_custom_call.1} parent=1 // pred_region
      %52 = dma.done [#allocation6], 36864
    $region21: #{tpu_custom_call.1} parent=1 // pred_fallthru
      _
    // Predicated region
    $region22: #{tpu_custom_call.1} parent=1 // pred_check
      _
    $region23: #{tpu_custom_call.1} parent=1 // pred_check_branch
      %54 = sbr.rel (0) target = $region25
    $region24: #{tpu_custom_call.1} parent=1 // pred_region
      %55 = dma.done [#allocation6], 36864
    $region25: #{tpu_custom_call.1} parent=1 // pred_fallthru
      _
    %v61 = vld [vmem:[#allocation2] sm:$0xff]
    %v62 = vld [vmem:[#allocation2 + $0x8] sm:$0xff]
    %v63 = vld [vmem:[#allocation2 + $0x10] sm:$0xff]
    %v64 = vld [vmem:[#allocation2 + $0x18] sm:$0xff]
    %v65 = vld [vmem:[#allocation2 + $0x20] sm:$0xff]
    %v66 = vld [vmem:[#allocation2 + $0x28] sm:$0xff]
    %v67 = vpack.c.bf16 %v64, %v61
    %v68 = vpack.c.bf16 %v65, %v62
    %v69 = vpack.c.bf16 %v66, %v63
    %v70 = vld [vmem:[#allocation5] sm:$0xff]
    %v71 = vld [vmem:[#allocation5 + $0x8] sm:$0xff]
    %v72 = vld [vmem:[#allocation5 + $0x30] sm:$0xff]
    %v73 = vld [vmem:[#allocation5 + $0x38] sm:$0xff]
    %v74 = vld [vmem:[#allocation5 + $0x60] sm:$0xff]
    %v75 = vld [vmem:[#allocation5 + $0x68] sm:$0xff]
    %v76 = vld [vmem:[#allocation5 + $0x90] sm:$0xff]
    %v77 = vld [vmem:[#allocation5 + $0x98] sm:$0xff]
    %v78 = vld [vmem:[#allocation5 + $0xc0] sm:$0xff]
    %v79 = vld [vmem:[#allocation5 + $0xc8] sm:$0xff]
    %v80 = vld [vmem:[#allocation5 + $0xf0] sm:$0xff]
    %v81 = vld [vmem:[#allocation5 + $0xf8] sm:$0xff]
    %v82 = vld [vmem:[#allocation5 + $0x120] sm:$0xff]
    %v83 = vld [vmem:[#allocation5 + $0x128] sm:$0xff]
    %v84 = vld [vmem:[#allocation5 + $0x150] sm:$0xff]
    %v85 = vld [vmem:[#allocation5 + $0x158] sm:$0xff]
    %v86 = vld [vmem:[#allocation5 + $0x180] sm:$0xff]
    %v87 = vld [vmem:[#allocation5 + $0x188] sm:$0xff]
    %v88 = vld [vmem:[#allocation5 + $0x1b0] sm:$0xff]
    %v89 = vld [vmem:[#allocation5 + $0x1b8] sm:$0xff]
    %v90 = vld [vmem:[#allocation5 + $0x1e0] sm:$0xff]
    %v91 = vld [vmem:[#allocation5 + $0x1e8] sm:$0xff]
    %v92 = vld [vmem:[#allocation5 + $0x210] sm:$0xff]
    %v93 = vld [vmem:[#allocation5 + $0x218] sm:$0xff]
    %v94 = vld [vmem:[#allocation5 + $0x240] sm:$0xff]
    %v95 = vld [vmem:[#allocation5 + $0x248] sm:$0xff]
    %v96 = vld [vmem:[#allocation5 + $0x270] sm:$0xff]
    %v97 = vld [vmem:[#allocation5 + $0x278] sm:$0xff]
    %v98 = vld [vmem:[#allocation5 + $0x2a0] sm:$0xff]
    %v99 = vld [vmem:[#allocation5 + $0x2a8] sm:$0xff]
    %v100 = vld [vmem:[#allocation5 + $0x2d0] sm:$0xff]
    %v101 = vld [vmem:[#allocation5 + $0x2d8] sm:$0xff]
    %v102 = vld [vmem:[#allocation5 + $0x300] sm:$0xff]
    %v103 = vld [vmem:[#allocation5 + $0x308] sm:$0xff]
    %v104 = vld [vmem:[#allocation5 + $0x330] sm:$0xff]
    %v105 = vld [vmem:[#allocation5 + $0x338] sm:$0xff]
    %v106 = vld [vmem:[#allocation5 + $0x360] sm:$0xff]
    %v107 = vld [vmem:[#allocation5 + $0x368] sm:$0xff]
    %v108 = vld [vmem:[#allocation5 + $0x390] sm:$0xff]
    %v109 = vld [vmem:[#allocation5 + $0x398] sm:$0xff]
    %v110 = vld [vmem:[#allocation5 + $0x3c0] sm:$0xff]
    %v111 = vld [vmem:[#allocation5 + $0x3c8] sm:$0xff]
    %v112 = vld [vmem:[#allocation5 + $0x3f0] sm:$0xff]
    %v113 = vld [vmem:[#allocation5 + $0x3f8] sm:$0xff]
    %v114 = vld [vmem:[#allocation5 + $0x420] sm:$0xff]
    %v115 = vld [vmem:[#allocation5 + $0x428] sm:$0xff]
    %v116 = vld [vmem:[#allocation5 + $0x450] sm:$0xff]
    %v117 = vld [vmem:[#allocation5 + $0x458] sm:$0xff]
    %v118 = vld [vmem:[#allocation5 + $0x480] sm:$0xff]
    %v119 = vld [vmem:[#allocation5 + $0x488] sm:$0xff]
    %v120 = vld [vmem:[#allocation5 + $0x4b0] sm:$0xff]
    %v121 = vld [vmem:[#allocation5 + $0x4b8] sm:$0xff]
    %v122 = vld [vmem:[#allocation5 + $0x4e0] sm:$0xff]
    %v123 = vld [vmem:[#allocation5 + $0x4e8] sm:$0xff]
    %v124 = vld [vmem:[#allocation5 + $0x510] sm:$0xff]
    %v125 = vld [vmem:[#allocation5 + $0x518] sm:$0xff]
    %v126 = vld [vmem:[#allocation5 + $0x540] sm:$0xff]
    %v127 = vld [vmem:[#allocation5 + $0x548] sm:$0xff]
    %v128 = vld [vmem:[#allocation5 + $0x570] sm:$0xff]
    %v129 = vld [vmem:[#allocation5 + $0x578] sm:$0xff]
    %v130 = vld [vmem:[#allocation5 + $0x5a0] sm:$0xff]
    %v131 = vld [vmem:[#allocation5 + $0x5a8] sm:$0xff]
    %v132 = vld [vmem:[#allocation5 + $0x5d0] sm:$0xff]
    %v133 = vld [vmem:[#allocation5 + $0x5d8] sm:$0xff]
    %v134 = vld [vmem:[#allocation5 + $0x600] sm:$0xff]
    %v135 = vld [vmem:[#allocation5 + $0x608] sm:$0xff]
    %v136 = vld [vmem:[#allocation5 + $0x630] sm:$0xff]
    %v137 = vld [vmem:[#allocation5 + $0x638] sm:$0xff]
    %v138 = vld [vmem:[#allocation5 + $0x660] sm:$0xff]
    %v139 = vld [vmem:[#allocation5 + $0x668] sm:$0xff]
    %v140 = vld [vmem:[#allocation5 + $0x690] sm:$0xff]
    %v141 = vld [vmem:[#allocation5 + $0x698] sm:$0xff]
    %v142 = vld [vmem:[#allocation5 + $0x6c0] sm:$0xff]
    %v143 = vld [vmem:[#allocation5 + $0x6c8] sm:$0xff]
    %v144 = vld [vmem:[#allocation5 + $0x6f0] sm:$0xff]
    %v145 = vld [vmem:[#allocation5 + $0x6f8] sm:$0xff]
    %v146 = vld [vmem:[#allocation5 + $0x720] sm:$0xff]
    %v147 = vld [vmem:[#allocation5 + $0x728] sm:$0xff]
    %v148 = vld [vmem:[#allocation5 + $0x750] sm:$0xff]
    %v149 = vld [vmem:[#allocation5 + $0x758] sm:$0xff]
    %v150 = vld [vmem:[#allocation5 + $0x780] sm:$0xff]
    %v151 = vld [vmem:[#allocation5 + $0x788] sm:$0xff]
    %v152 = vld [vmem:[#allocation5 + $0x7b0] sm:$0xff]
    %v153 = vld [vmem:[#allocation5 + $0x7b8] sm:$0xff]
    %v154 = vld [vmem:[#allocation5 + $0x7e0] sm:$0xff]
    %v155 = vld [vmem:[#allocation5 + $0x7e8] sm:$0xff]
    %v156 = vld [vmem:[#allocation5 + $0x810] sm:$0xff]
    %v157 = vld [vmem:[#allocation5 + $0x818] sm:$0xff]
    %v158 = vld [vmem:[#allocation5 + $0x840] sm:$0xff]
    %v159 = vld [vmem:[#allocation5 + $0x848] sm:$0xff]
    %v160 = vld [vmem:[#allocation5 + $0x870] sm:$0xff]
    %v161 = vld [vmem:[#allocation5 + $0x878] sm:$0xff]
    %v162 = vld [vmem:[#allocation5 + $0x8a0] sm:$0xff]
    %v163 = vld [vmem:[#allocation5 + $0x8a8] sm:$0xff]
    %v164 = vld [vmem:[#allocation5 + $0x8d0] sm:$0xff]
    %v165 = vld [vmem:[#allocation5 + $0x8d8] sm:$0xff]
    %v262 = vunpack.c.l.b16 %v70
    %v263 = vunpack.c.h.b16 %v70
    %v264 = vunpack.c.l.b16 %v71
    %v265 = vunpack.c.h.b16 %v71
    %v266 = vunpack.c.l.b16 %v72
    %v267 = vunpack.c.h.b16 %v72
    %v268 = vunpack.c.l.b16 %v73
    %v269 = vunpack.c.h.b16 %v73
    %v270 = vunpack.c.l.b16 %v74
    %v271 = vunpack.c.h.b16 %v74
    %v272 = vunpack.c.l.b16 %v75
    %v273 = vunpack.c.h.b16 %v75
    %v274 = vunpack.c.l.b16 %v76
    %v275 = vunpack.c.h.b16 %v76
    %v276 = vunpack.c.l.b16 %v77
    %v277 = vunpack.c.h.b16 %v77
    %v278 = vunpack.c.l.b16 %v78
    %v279 = vunpack.c.h.b16 %v78
    %v280 = vunpack.c.l.b16 %v79
    %v281 = vunpack.c.h.b16 %v79
    %v282 = vunpack.c.l.b16 %v80
    %v283 = vunpack.c.h.b16 %v80
    %v284 = vunpack.c.l.b16 %v81
    %v285 = vunpack.c.h.b16 %v81
    %v286 = vunpack.c.l.b16 %v82
    %v287 = vunpack.c.h.b16 %v82
    %v288 = vunpack.c.l.b16 %v83
    %v289 = vunpack.c.h.b16 %v83
    %v290 = vunpack.c.l.b16 %v84
    %v291 = vunpack.c.h.b16 %v84
    %v292 = vunpack.c.l.b16 %v85
    %v293 = vunpack.c.h.b16 %v85
    %v294 = vunpack.c.l.b16 %v86
    %v295 = vunpack.c.h.b16 %v86
    %v296 = vunpack.c.l.b16 %v87
    %v297 = vunpack.c.h.b16 %v87
    %v298 = vunpack.c.l.b16 %v88
    %v299 = vunpack.c.h.b16 %v88
    %v300 = vunpack.c.l.b16 %v89
    %v301 = vunpack.c.h.b16 %v89
    %v302 = vunpack.c.l.b16 %v90
    %v303 = vunpack.c.h.b16 %v90
    %v304 = vunpack.c.l.b16 %v91
    %v305 = vunpack.c.h.b16 %v91
    %v306 = vunpack.c.l.b16 %v92
    %v307 = vunpack.c.h.b16 %v92
    %v308 = vunpack.c.l.b16 %v93
    %v309 = vunpack.c.h.b16 %v93
    %v310 = vunpack.c.l.b16 %v94
    %v311 = vunpack.c.h.b16 %v94
    %v312 = vunpack.c.l.b16 %v95
    %v313 = vunpack.c.h.b16 %v95
    %v314 = vunpack.c.l.b16 %v96
    %v315 = vunpack.c.h.b16 %v96
    %v316 = vunpack.c.l.b16 %v97
    %v317 = vunpack.c.h.b16 %v97
    %v318 = vunpack.c.l.b16 %v98
    %v319 = vunpack.c.h.b16 %v98
    %v320 = vunpack.c.l.b16 %v99
    %v321 = vunpack.c.h.b16 %v99
    %v322 = vunpack.c.l.b16 %v100
    %v323 = vunpack.c.h.b16 %v100
    %v324 = vunpack.c.l.b16 %v101
    %v325 = vunpack.c.h.b16 %v101
    %v326 = vunpack.c.l.b16 %v102
    %v327 = vunpack.c.h.b16 %v102
    %v328 = vunpack.c.l.b16 %v103
    %v329 = vunpack.c.h.b16 %v103
    %v330 = vunpack.c.l.b16 %v104
    %v331 = vunpack.c.h.b16 %v104
    %v332 = vunpack.c.l.b16 %v105
    %v333 = vunpack.c.h.b16 %v105
    %v334 = vunpack.c.l.b16 %v106
    %v335 = vunpack.c.h.b16 %v106
    %v336 = vunpack.c.l.b16 %v107
    %v337 = vunpack.c.h.b16 %v107
    %v338 = vunpack.c.l.b16 %v108
    %v339 = vunpack.c.h.b16 %v108
    %v340 = vunpack.c.l.b16 %v109
    %v341 = vunpack.c.h.b16 %v109
    %v342 = vunpack.c.l.b16 %v110
    %v343 = vunpack.c.h.b16 %v110
    %v344 = vunpack.c.l.b16 %v111
    %v345 = vunpack.c.h.b16 %v111
    %v346 = vunpack.c.l.b16 %v112
    %v347 = vunpack.c.h.b16 %v112
    %v348 = vunpack.c.l.b16 %v113
    %v349 = vunpack.c.h.b16 %v113
    %v350 = vunpack.c.l.b16 %v114
    %v351 = vunpack.c.h.b16 %v114
    %v352 = vunpack.c.l.b16 %v115
    %v353 = vunpack.c.h.b16 %v115
    %v354 = vunpack.c.l.b16 %v116
    %v355 = vunpack.c.h.b16 %v116
    %v356 = vunpack.c.l.b16 %v117
    %v357 = vunpack.c.h.b16 %v117
    %v358 = vunpack.c.l.b16 %v118
    %v359 = vunpack.c.h.b16 %v118
    %v360 = vunpack.c.l.b16 %v119
    %v361 = vunpack.c.h.b16 %v119
    %v362 = vunpack.c.l.b16 %v120
    %v363 = vunpack.c.h.b16 %v120
    %v364 = vunpack.c.l.b16 %v121
    %v365 = vunpack.c.h.b16 %v121
    %v366 = vunpack.c.l.b16 %v122
    %v367 = vunpack.c.h.b16 %v122
    %v368 = vunpack.c.l.b16 %v123
    %v369 = vunpack.c.h.b16 %v123
    %v370 = vunpack.c.l.b16 %v124
    %v371 = vunpack.c.h.b16 %v124
    %v372 = vunpack.c.l.b16 %v125
    %v373 = vunpack.c.h.b16 %v125
    %v374 = vunpack.c.l.b16 %v126
    %v375 = vunpack.c.h.b16 %v126
    %v376 = vunpack.c.l.b16 %v127
    %v377 = vunpack.c.h.b16 %v127
    %v378 = vunpack.c.l.b16 %v128
    %v379 = vunpack.c.h.b16 %v128
    %v380 = vunpack.c.l.b16 %v129
    %v381 = vunpack.c.h.b16 %v129
    %v382 = vunpack.c.l.b16 %v130
    %v383 = vunpack.c.h.b16 %v130
    %v384 = vunpack.c.l.b16 %v131
    %v385 = vunpack.c.h.b16 %v131
    %v386 = vunpack.c.l.b16 %v132
    %v387 = vunpack.c.h.b16 %v132
    %v388 = vunpack.c.l.b16 %v133
    %v389 = vunpack.c.h.b16 %v133
    %v390 = vunpack.c.l.b16 %v134
    %v391 = vunpack.c.h.b16 %v134
    %v392 = vunpack.c.l.b16 %v135
    %v393 = vunpack.c.h.b16 %v135
    %v394 = vunpack.c.l.b16 %v136
    %v395 = vunpack.c.h.b16 %v136
    %v396 = vunpack.c.l.b16 %v137
    %v397 = vunpack.c.h.b16 %v137
    %v398 = vunpack.c.l.b16 %v138
    %v399 = vunpack.c.h.b16 %v138
    %v400 = vunpack.c.l.b16 %v139
    %v401 = vunpack.c.h.b16 %v139
    %v402 = vunpack.c.l.b16 %v140
    %v403 = vunpack.c.h.b16 %v140
    %v404 = vunpack.c.l.b16 %v141
    %v405 = vunpack.c.h.b16 %v141
    %v406 = vunpack.c.l.b16 %v142
    %v407 = vunpack.c.h.b16 %v142
    %v408 = vunpack.c.l.b16 %v143
    %v409 = vunpack.c.h.b16 %v143
    %v410 = vunpack.c.l.b16 %v144
    %v411 = vunpack.c.h.b16 %v144
    %v412 = vunpack.c.l.b16 %v145
    %v413 = vunpack.c.h.b16 %v145
    %v414 = vunpack.c.l.b16 %v146
    %v415 = vunpack.c.h.b16 %v146
    %v416 = vunpack.c.l.b16 %v147
    %v417 = vunpack.c.h.b16 %v147
    %v418 = vunpack.c.l.b16 %v148
    %v419 = vunpack.c.h.b16 %v148
    %v420 = vunpack.c.l.b16 %v149
    %v421 = vunpack.c.h.b16 %v149
    %v422 = vunpack.c.l.b16 %v150
    %v423 = vunpack.c.h.b16 %v150
    %v424 = vunpack.c.l.b16 %v151
    %v425 = vunpack.c.h.b16 %v151
    %v426 = vunpack.c.l.b16 %v152
    %v427 = vunpack.c.h.b16 %v152
    %v428 = vunpack.c.l.b16 %v153
    %v429 = vunpack.c.h.b16 %v153
    %v430 = vunpack.c.l.b16 %v154
    %v431 = vunpack.c.h.b16 %v154
    %v432 = vunpack.c.l.b16 %v155
    %v433 = vunpack.c.h.b16 %v155
    %v434 = vunpack.c.l.b16 %v156
    %v435 = vunpack.c.h.b16 %v156
    %v436 = vunpack.c.l.b16 %v157
    %v437 = vunpack.c.h.b16 %v157
    %v438 = vunpack.c.l.b16 %v158
    %v439 = vunpack.c.h.b16 %v158
    %v440 = vunpack.c.l.b16 %v159
    %v441 = vunpack.c.h.b16 %v159
    %v442 = vunpack.c.l.b16 %v160
    %v443 = vunpack.c.h.b16 %v160
    %v444 = vunpack.c.l.b16 %v161
    %v445 = vunpack.c.h.b16 %v161
    %v446 = vunpack.c.l.b16 %v162
    %v447 = vunpack.c.h.b16 %v162
    %v448 = vunpack.c.l.b16 %v163
    %v449 = vunpack.c.h.b16 %v163
    %v450 = vunpack.c.l.b16 %v164
    %v451 = vunpack.c.h.b16 %v164
    %v452 = vunpack.c.l.b16 %v165
    %v453 = vunpack.c.h.b16 %v165
    %v454 = vpack.c.b16 %v266, %v262
    %v455 = vpack.c.b16 %v267, %v263
    %v456 = vpack.c.b16 %v268, %v264
    %v457 = vpack.c.b16 %v269, %v265
    %v458 = vpack.c.b16 %v274, %v270
    %v459 = vpack.c.b16 %v275, %v271
    %v460 = vpack.c.b16 %v276, %v272
    %v461 = vpack.c.b16 %v277, %v273
    %v462 = vpack.c.b16 %v282, %v278
    %v463 = vpack.c.b16 %v283, %v279
    %v464 = vpack.c.b16 %v284, %v280
    %v465 = vpack.c.b16 %v285, %v281
    %v466 = vpack.c.b16 %v290, %v286
    %v467 = vpack.c.b16 %v291, %v287
    %v468 = vpack.c.b16 %v292, %v288
    %v469 = vpack.c.b16 %v293, %v289
    %v470 = vpack.c.b16 %v298, %v294
    %v471 = vpack.c.b16 %v299, %v295
    %v472 = vpack.c.b16 %v300, %v296
    %v473 = vpack.c.b16 %v301, %v297
    %v474 = vpack.c.b16 %v306, %v302
    %v475 = vpack.c.b16 %v307, %v303
    %v476 = vpack.c.b16 %v308, %v304
    %v477 = vpack.c.b16 %v309, %v305
    %v478 = vpack.c.b16 %v314, %v310
    %v479 = vpack.c.b16 %v315, %v311
    %v480 = vpack.c.b16 %v316, %v312
    %v481 = vpack.c.b16 %v317, %v313
    %v482 = vpack.c.b16 %v322, %v318
    %v483 = vpack.c.b16 %v323, %v319
    %v484 = vpack.c.b16 %v324, %v320
    %v485 = vpack.c.b16 %v325, %v321
    %v486 = vpack.c.b16 %v330, %v326
    %v487 = vpack.c.b16 %v331, %v327
    %v488 = vpack.c.b16 %v332, %v328
    %v489 = vpack.c.b16 %v333, %v329
    %v490 = vpack.c.b16 %v338, %v334
    %v491 = vpack.c.b16 %v339, %v335
    %v492 = vpack.c.b16 %v340, %v336
    %v493 = vpack.c.b16 %v341, %v337
    %v494 = vpack.c.b16 %v346, %v342
    %v495 = vpack.c.b16 %v347, %v343
    %v496 = vpack.c.b16 %v348, %v344
    %v497 = vpack.c.b16 %v349, %v345
    %v498 = vpack.c.b16 %v354, %v350
    %v499 = vpack.c.b16 %v355, %v351
    %v500 = vpack.c.b16 %v356, %v352
    %v501 = vpack.c.b16 %v357, %v353
    %v502 = vpack.c.b16 %v362, %v358
    %v503 = vpack.c.b16 %v363, %v359
    %v504 = vpack.c.b16 %v364, %v360
    %v505 = vpack.c.b16 %v365, %v361
    %v506 = vpack.c.b16 %v370, %v366
    %v507 = vpack.c.b16 %v371, %v367
    %v508 = vpack.c.b16 %v372, %v368
    %v509 = vpack.c.b16 %v373, %v369
    %v510 = vpack.c.b16 %v378, %v374
    %v511 = vpack.c.b16 %v379, %v375
    %v512 = vpack.c.b16 %v380, %v376
    %v513 = vpack.c.b16 %v381, %v377
    %v514 = vpack.c.b16 %v386, %v382
    %v515 = vpack.c.b16 %v387, %v383
    %v516 = vpack.c.b16 %v388, %v384
    %v517 = vpack.c.b16 %v389, %v385
    %v518 = vpack.c.b16 %v394, %v390
    %v519 = vpack.c.b16 %v395, %v391
    %v520 = vpack.c.b16 %v396, %v392
    %v521 = vpack.c.b16 %v397, %v393
    %v522 = vpack.c.b16 %v402, %v398
    %v523 = vpack.c.b16 %v403, %v399
    %v524 = vpack.c.b16 %v404, %v400
    %v525 = vpack.c.b16 %v405, %v401
    %v526 = vpack.c.b16 %v410, %v406
    %v527 = vpack.c.b16 %v411, %v407
    %v528 = vpack.c.b16 %v412, %v408
    %v529 = vpack.c.b16 %v413, %v409
    %v530 = vpack.c.b16 %v418, %v414
    %v531 = vpack.c.b16 %v419, %v415
    %v532 = vpack.c.b16 %v420, %v416
    %v533 = vpack.c.b16 %v421, %v417
    %v534 = vpack.c.b16 %v426, %v422
    %v535 = vpack.c.b16 %v427, %v423
    %v536 = vpack.c.b16 %v428, %v424
    %v537 = vpack.c.b16 %v429, %v425
    %v538 = vpack.c.b16 %v434, %v430
    %v539 = vpack.c.b16 %v435, %v431
    %v540 = vpack.c.b16 %v436, %v432
    %v541 = vpack.c.b16 %v437, %v433
    %v542 = vpack.c.b16 %v442, %v438
    %v543 = vpack.c.b16 %v443, %v439
    %v544 = vpack.c.b16 %v444, %v440
    %v545 = vpack.c.b16 %v445, %v441
    %v546 = vpack.c.b16 %v450, %v446
    %v547 = vpack.c.b16 %v451, %v447
    %v548 = vpack.c.b16 %v452, %v448
    %v549 = vpack.c.b16 %v453, %v449
    %646 = vmatprep.subr.bf16.mxu0 %v455
    %647 = vmatpush1.bf16.msra.mxu0 %v454
    %648 = vmatprep.subr.bf16.mxu0 %v459
    %649 = vmatpush1.bf16.msra.mxu0 %v458
    %650 = vmatprep.subr.bf16.mxu0 %v463
    %651 = vmatpush1.bf16.msra.mxu0 %v462
    %652 = vmatprep.subr.bf16.mxu0 %v467
    %653 = vmatpush1.bf16.msra.mxu0 %v466
    %654 = vmatprep.subr.bf16.mxu0 %v471
    %655 = vmatpush1.bf16.msra.mxu0 %v470
    %656 = vmatprep.subr.bf16.mxu0 %v475
    %657 = vmatpush1.bf16.msra.mxu0 %v474
    %658 = vmatprep.subr.bf16.mxu0 %v479
    %659 = vmatpush1.bf16.msra.mxu0 %v478
    %660 = vmatprep.subr.bf16.mxu0 %v483
    %661 = vmatpush1.bf16.msra.mxu0 %v482
    %662 = vmatprep.subr.bf16.mxu0 %v487
    %663 = vmatpush1.bf16.msra.mxu0 %v486
    %664 = vmatprep.subr.bf16.mxu0 %v491
    %665 = vmatpush1.bf16.msra.mxu0 %v490
    %666 = vmatprep.subr.bf16.mxu0 %v495
    %667 = vmatpush1.bf16.msra.mxu0 %v494
    %668 = vmatprep.subr.bf16.mxu0 %v499
    %669 = vmatpush1.bf16.msra.mxu0 %v498
    %670 = vmatprep.subr.bf16.mxu0 %v503
    %671 = vmatpush1.bf16.msra.mxu0 %v502
    %672 = vmatprep.subr.bf16.mxu0 %v507
    %673 = vmatpush1.bf16.msra.mxu0 %v506
    %674 = vmatprep.subr.bf16.mxu0 %v511
    %675 = vmatpush1.bf16.msra.mxu0 %v510
    %676 = vmatprep.subr.bf16.mxu0 %v515
    %677 = vmatpush1.bf16.msra.mxu0 %v514
    %678 = vmatprep.mubr.bf16.mxu0 %v68
    %679 = vmatmul.mubr.bf16.gmra.mrb[0].mxu0 %v67
    %v680 = vpop.f32.mrb[0].mxu0
    %v681 = vadd.f32 0.0, %v680
    %v682 = vpop.f32.mrb[0].mxu0
    %v683 = vadd.f32 0.0, %v682
    %v684 = vpop.f32.mrb[0].mxu0
    %v685 = vadd.f32 0.0, %v684
    %v686 = vpop.f32.mrb[0].mxu0
    %v687 = vadd.f32 0.0, %v686
    %688 = vdwg.mxu0
    %689 = vmatprep.subr.bf16.mxu0 %v519
    %690 = vmatpush1.bf16.msra.mxu0 %v518
    %691 = vmatprep.subr.bf16.mxu0 %v523
    %692 = vmatpush1.bf16.msra.mxu0 %v522
    %693 = vmatprep.subr.bf16.mxu0 %v527
    %694 = vmatpush1.bf16.msra.mxu0 %v526
    %695 = vmatprep.subr.bf16.mxu0 %v531
    %696 = vmatpush1.bf16.msra.mxu0 %v530
    %697 = vmatprep.subr.bf16.mxu0 %v535
    %698 = vmatpush1.bf16.msra.mxu0 %v534
    %699 = vmatprep.subr.bf16.mxu0 %v539
    %700 = vmatpush1.bf16.msra.mxu0 %v538
    %701 = vmatprep.subr.bf16.mxu0 %v543
    %702 = vmatpush1.bf16.msra.mxu0 %v542
    %703 = vmatprep.subr.bf16.mxu0 %v547
    %704 = vmatpush1.bf16.msra.mxu0 %v546
    %705 = vmatprep.subr.bf16.mxu0 0
    %706 = vmatpush1.bf16.msra.mxu0 0
    %707 = vmatprep.subr.bf16.mxu0 0
    %708 = vmatpush1.bf16.msra.mxu0 0
    %709 = vmatprep.subr.bf16.mxu0 0
    %710 = vmatpush1.bf16.msra.mxu0 0
    %711 = vmatprep.subr.bf16.mxu0 0
    %712 = vmatpush1.bf16.msra.mxu0 0
    %713 = vmatprep.subr.bf16.mxu0 0
    %714 = vmatpush1.bf16.msra.mxu0 0
    %715 = vmatprep.subr.bf16.mxu0 0
    %716 = vmatpush1.bf16.msra.mxu0 0
    %717 = vmatprep.subr.bf16.mxu0 0
    %718 = vmatpush1.bf16.msra.mxu0 0
    %719 = vmatprep.subr.bf16.mxu0 0
    %720 = vmatpush1.bf16.msra.mxu0 0
    %721 = vmatprep.mubr.bf16.mxu0 0
    %722 = vmatmul.mubr.bf16.gmra.mrb[0].mxu0 %v69
    %v723 = vpop.f32.mrb[0].mxu0
    %v724 = vadd.f32 %v681, %v723
    %v725 = vpop.f32.mrb[0].mxu0
    %v726 = vadd.f32 %v683, %v725
    %v727 = vpop.f32.mrb[0].mxu0
    %v728 = vadd.f32 %v685, %v727
    %v729 = vpop.f32.mrb[0].mxu0
    %v730 = vadd.f32 %v687, %v729
    %731 = vdwg.mxu0
    %732 = vmatprep.subr.bf16.mxu0 %v457
    %733 = vmatpush1.bf16.msra.mxu0 %v456
    %734 = vmatprep.subr.bf16.mxu0 %v461
    %735 = vmatpush1.bf16.msra.mxu0 %v460
    %736 = vmatprep.subr.bf16.mxu0 %v465
    %737 = vmatpush1.bf16.msra.mxu0 %v464
    %738 = vmatprep.subr.bf16.mxu0 %v469
    %739 = vmatpush1.bf16.msra.mxu0 %v468
    %740 = vmatprep.subr.bf16.mxu0 %v473
    %741 = vmatpush1.bf16.msra.mxu0 %v472
    %742 = vmatprep.subr.bf16.mxu0 %v477
    %743 = vmatpush1.bf16.msra.mxu0 %v476
    %744 = vmatprep.subr.bf16.mxu0 %v481
    %745 = vmatpush1.bf16.msra.mxu0 %v480
    %746 = vmatprep.subr.bf16.mxu0 %v485
    %747 = vmatpush1.bf16.msra.mxu0 %v484
    %748 = vmatprep.subr.bf16.mxu0 %v489
    %749 = vmatpush1.bf16.msra.mxu0 %v488
    %750 = vmatprep.subr.bf16.mxu0 %v493
    %751 = vmatpush1.bf16.msra.mxu0 %v492
    %752 = vmatprep.subr.bf16.mxu0 %v497
    %753 = vmatpush1.bf16.msra.mxu0 %v496
    %754 = vmatprep.subr.bf16.mxu0 %v501
    %755 = vmatpush1.bf16.msra.mxu0 %v500
    %756 = vmatprep.subr.bf16.mxu0 %v505
    %757 = vmatpush1.bf16.msra.mxu0 %v504
    %758 = vmatprep.subr.bf16.mxu0 %v509
    %759 = vmatpush1.bf16.msra.mxu0 %v508
    %760 = vmatprep.subr.bf16.mxu0 %v513
    %761 = vmatpush1.bf16.msra.mxu0 %v512
    %762 = vmatprep.subr.bf16.mxu0 %v517
    %763 = vmatpush1.bf16.msra.mxu0 %v516
    %764 = vmatprep.mubr.bf16.mxu0 %v68
    %765 = vmatmul.mubr.bf16.gmra.mrb[0].mxu0 %v67
    %v766 = vpop.f32.mrb[0].mxu0
    %v767 = vadd.f32 0.0, %v766
    %v768 = vpop.f32.mrb[0].mxu0
    %v769 = vadd.f32 0.0, %v768
    %v770 = vpop.f32.mrb[0].mxu0
    %v771 = vadd.f32 0.0, %v770
    %v772 = vpop.f32.mrb[0].mxu0
    %v773 = vadd.f32 0.0, %v772
    %774 = vdwg.mxu0
    %775 = vmatprep.subr.bf16.mxu0 %v521
    %776 = vmatpush1.bf16.msra.mxu0 %v520
    %777 = vmatprep.subr.bf16.mxu0 %v525
    %778 = vmatpush1.bf16.msra.mxu0 %v524
    %779 = vmatprep.subr.bf16.mxu0 %v529
    %780 = vmatpush1.bf16.msra.mxu0 %v528
    %781 = vmatprep.subr.bf16.mxu0 %v533
    %782 = vmatpush1.bf16.msra.mxu0 %v532
    %783 = vmatprep.subr.bf16.mxu0 %v537
    %784 = vmatpush1.bf16.msra.mxu0 %v536
    %785 = vmatprep.subr.bf16.mxu0 %v541
    %786 = vmatpush1.bf16.msra.mxu0 %v540
    %787 = vmatprep.subr.bf16.mxu0 %v545
    %788 = vmatpush1.bf16.msra.mxu0 %v544
    %789 = vmatprep.subr.bf16.mxu0 %v549
    %790 = vmatpush1.bf16.msra.mxu0 %v548
    %791 = vmatprep.subr.bf16.mxu0 0
    %792 = vmatpush1.bf16.msra.mxu0 0
    %793 = vmatprep.subr.bf16.mxu0 0
    %794 = vmatpush1.bf16.msra.mxu0 0
    %795 = vmatprep.subr.bf16.mxu0 0
    %796 = vmatpush1.bf16.msra.mxu0 0
    %797 = vmatprep.subr.bf16.mxu0 0
    %798 = vmatpush1.bf16.msra.mxu0 0
    %799 = vmatprep.subr.bf16.mxu0 0
    %800 = vmatpush1.bf16.msra.mxu0 0
    %801 = vmatprep.subr.bf16.mxu0 0
    %802 = vmatpush1.bf16.msra.mxu0 0
    %803 = vmatprep.subr.bf16.mxu0 0
    %804 = vmatpush1.bf16.msra.mxu0 0
    %805 = vmatprep.subr.bf16.mxu0 0
    %806 = vmatpush1.bf16.msra.mxu0 0
    %807 = vmatprep.mubr.bf16.mxu0 0
    %808 = vmatmul.mubr.bf16.gmra.mrb[0].mxu0 %v69
    %v809 = vpop.f32.mrb[0].mxu0
    %v810 = vadd.f32 %v767, %v809
    %v811 = vpop.f32.mrb[0].mxu0
    %v812 = vadd.f32 %v769, %v811
    %v813 = vpop.f32.mrb[0].mxu0
    %v814 = vadd.f32 %v771, %v813
    %v815 = vpop.f32.mrb[0].mxu0
    %v816 = vadd.f32 %v773, %v815
    %817 = vdwg.mxu0
    %v818 = vpack.c.bf16 %v728, %v724
    %v819 = vpack.c.bf16 %v730, %v726
    %v820 = vpack.c.bf16 %v814, %v810
    %v821 = vpack.c.bf16 %v816, %v812
    %v822 = vmul.bf16 %v818, %v818
    %v823 = vmul.bf16 %v819, %v819
    %v824 = vmul.bf16 %v820, %v820
    %v825 = vmul.bf16 %v821, %v821
    %v826 = vmul.bf16 %v818, %v822
    %v827 = vmul.bf16 %v819, %v823
    %v828 = vmul.bf16 %v820, %v824
    %v829 = vmul.bf16 %v821, %v825
    %v830 = vmul.bf16 %v826, 1027030327
    %v831 = vmul.bf16 %v827, 1027030327
    %v832 = vmul.bf16 %v828, 1027030327
    %v833 = vmul.bf16 %v829, 1027030327
    %v834 = vadd.bf16 %v818, %v830
    %v835 = vadd.bf16 %v819, %v831
    %v836 = vadd.bf16 %v820, %v832
    %v837 = vadd.bf16 %v821, %v833
    %v838 = vmul.bf16 %v834, 1061961548
    %v839 = vmul.bf16 %v835, 1061961548
    %v840 = vmul.bf16 %v836, 1061961548
    %v841 = vmul.bf16 %v837, 1061961548
    %v842 = vtanh.bf16.pop %v838
    %v843 = vtanh.bf16.pop %v839
    %v844 = vtanh.bf16.pop %v840
    %v845 = vtanh.bf16.pop %v841
    %v846 = vadd.bf16 %v842, 1065369472
    %v847 = vadd.bf16 %v843, 1065369472
    %v848 = vadd.bf16 %v844, 1065369472
    %v849 = vadd.bf16 %v845, 1065369472
    %v850 = vmul.bf16 %v846, 1056980736
    %v851 = vmul.bf16 %v847, 1056980736
    %v852 = vmul.bf16 %v848, 1056980736
    %v853 = vmul.bf16 %v849, 1056980736
    %v854 = vmul.bf16 %v818, %v850
    %v855 = vmul.bf16 %v819, %v851
    %v856 = vmul.bf16 %v820, %v852
    %v857 = vmul.bf16 %v821, %v853
    %v858 = vld [vmem:[#allocation7] sm:$0xff]
    %v859 = vld [vmem:[#allocation7 + $0x8] sm:$0xf]
    %v860 = vld [vmem:[#allocation7 + $0xc] sm:$0xff]
    %v861 = vld [vmem:[#allocation7 + $0x14] sm:$0xf]
    %v862 = vld [vmem:[#allocation7 + $0x18] sm:$0xff]
    %v863 = vld [vmem:[#allocation7 + $0x20] sm:$0xf]
    %v864 = vld [vmem:[#allocation7 + $0x24] sm:$0xff]
    %v865 = vld [vmem:[#allocation7 + $0x2c] sm:$0xf]
    %v866 = vld [vmem:[#allocation7 + $0x30] sm:$0xff]
    %v867 = vld [vmem:[#allocation7 + $0x38] sm:$0xf]
    %v868 = vld [vmem:[#allocation7 + $0x3c] sm:$0xff]
    %v869 = vld [vmem:[#allocation7 + $0x44] sm:$0xf]
    %v870 = vld [vmem:[#allocation7 + $0x48] sm:$0xff]
    %v871 = vld [vmem:[#allocation7 + $0x50] sm:$0xf]
    %v872 = vld [vmem:[#allocation7 + $0x54] sm:$0xff]
    %v873 = vld [vmem:[#allocation7 + $0x5c] sm:$0xf]
    %v874 = vld [vmem:[#allocation7 + $0x60] sm:$0xff]
    %v875 = vld [vmem:[#allocation7 + $0x68] sm:$0xf]
    %v876 = vld [vmem:[#allocation7 + $0x6c] sm:$0xff]
    %v877 = vld [vmem:[#allocation7 + $0x74] sm:$0xf]
    %v878 = vld [vmem:[#allocation7 + $0x78] sm:$0xff]
    %v879 = vld [vmem:[#allocation7 + $0x80] sm:$0xf]
    %v880 = vld [vmem:[#allocation7 + $0x84] sm:$0xff]
    %v881 = vld [vmem:[#allocation7 + $0x8c] sm:$0xf]
    %v882 = vld [vmem:[#allocation7 + $0x90] sm:$0xff]
    %v883 = vld [vmem:[#allocation7 + $0x98] sm:$0xf]
    %v884 = vld [vmem:[#allocation7 + $0x9c] sm:$0xff]
    %v885 = vld [vmem:[#allocation7 + $0xa4] sm:$0xf]
    %v886 = vld [vmem:[#allocation7 + $0xa8] sm:$0xff]
    %v887 = vld [vmem:[#allocation7 + $0xb0] sm:$0xf]
    %v888 = vld [vmem:[#allocation7 + $0xb4] sm:$0xff]
    %v889 = vld [vmem:[#allocation7 + $0xbc] sm:$0xf]
    %v890 = vld [vmem:[#allocation7 + $0xc0] sm:$0xff]
    %v891 = vld [vmem:[#allocation7 + $0xc8] sm:$0xf]
    %v892 = vld [vmem:[#allocation7 + $0xcc] sm:$0xff]
    %v893 = vld [vmem:[#allocation7 + $0xd4] sm:$0xf]
    %v894 = vld [vmem:[#allocation7 + $0xd8] sm:$0xff]
    %v895 = vld [vmem:[#allocation7 + $0xe0] sm:$0xf]
    %v896 = vld [vmem:[#allocation7 + $0xe4] sm:$0xff]
    %v897 = vld [vmem:[#allocation7 + $0xec] sm:$0xf]
    %v898 = vld [vmem:[#allocation7 + $0xf0] sm:$0xff]
    %v899 = vld [vmem:[#allocation7 + $0xf8] sm:$0xf]
    %v900 = vld [vmem:[#allocation7 + $0xfc] sm:$0xff]
    %v901 = vld [vmem:[#allocation7 + $0x104] sm:$0xf]
    %v902 = vld [vmem:[#allocation7 + $0x108] sm:$0xff]
    %v903 = vld [vmem:[#allocation7 + $0x110] sm:$0xf]
    %v904 = vld [vmem:[#allocation7 + $0x114] sm:$0xff]
    %v905 = vld [vmem:[#allocation7 + $0x11c] sm:$0xf]
    %v906 = vld [vmem:[#allocation7 + $0x120] sm:$0xff]
    %v907 = vld [vmem:[#allocation7 + $0x128] sm:$0xf]
    %v908 = vld [vmem:[#allocation7 + $0x12c] sm:$0xff]
    %v909 = vld [vmem:[#allocation7 + $0x134] sm:$0xf]
    %v910 = vld [vmem:[#allocation7 + $0x138] sm:$0xff]
    %v911 = vld [vmem:[#allocation7 + $0x140] sm:$0xf]
    %v912 = vld [vmem:[#allocation7 + $0x144] sm:$0xff]
    %v913 = vld [vmem:[#allocation7 + $0x14c] sm:$0xf]
    %v914 = vld [vmem:[#allocation7 + $0x150] sm:$0xff]
    %v915 = vld [vmem:[#allocation7 + $0x158] sm:$0xf]
    %v916 = vld [vmem:[#allocation7 + $0x15c] sm:$0xff]
    %v917 = vld [vmem:[#allocation7 + $0x164] sm:$0xf]
    %v918 = vld [vmem:[#allocation7 + $0x168] sm:$0xff]
    %v919 = vld [vmem:[#allocation7 + $0x170] sm:$0xf]
    %v920 = vld [vmem:[#allocation7 + $0x174] sm:$0xff]
    %v921 = vld [vmem:[#allocation7 + $0x17c] sm:$0xf]
    %v922 = vld [vmem:[#allocation7 + $0x180] sm:$0xff]
    %v923 = vld [vmem:[#allocation7 + $0x188] sm:$0xf]
    %v924 = vld [vmem:[#allocation7 + $0x18c] sm:$0xff]
    %v925 = vld [vmem:[#allocation7 + $0x194] sm:$0xf]
    %v926 = vld [vmem:[#allocation7 + $0x198] sm:$0xff]
    %v927 = vld [vmem:[#allocation7 + $0x1a0] sm:$0xf]
    %v928 = vld [vmem:[#allocation7 + $0x1a4] sm:$0xff]
    %v929 = vld [vmem:[#allocation7 + $0x1ac] sm:$0xf]
    %v930 = vld [vmem:[#allocation7 + $0x1b0] sm:$0xff]
    %v931 = vld [vmem:[#allocation7 + $0x1b8] sm:$0xf]
    %v932 = vld [vmem:[#allocation7 + $0x1bc] sm:$0xff]
    %v933 = vld [vmem:[#allocation7 + $0x1c4] sm:$0xf]
    %v934 = vld [vmem:[#allocation7 + $0x1c8] sm:$0xff]
    %v935 = vld [vmem:[#allocation7 + $0x1d0] sm:$0xf]
    %v936 = vld [vmem:[#allocation7 + $0x1d4] sm:$0xff]
    %v937 = vld [vmem:[#allocation7 + $0x1dc] sm:$0xf]
    %v938 = vld [vmem:[#allocation7 + $0x1e0] sm:$0xff]
    %v939 = vld [vmem:[#allocation7 + $0x1e8] sm:$0xf]
    %v940 = vld [vmem:[#allocation7 + $0x1ec] sm:$0xff]
    %v941 = vld [vmem:[#allocation7 + $0x1f4] sm:$0xf]
    %v942 = vld [vmem:[#allocation7 + $0x1f8] sm:$0xff]
    %v943 = vld [vmem:[#allocation7 + $0x200] sm:$0xf]
    %v944 = vld [vmem:[#allocation7 + $0x204] sm:$0xff]
    %v945 = vld [vmem:[#allocation7 + $0x20c] sm:$0xf]
    %v946 = vld [vmem:[#allocation7 + $0x210] sm:$0xff]
    %v947 = vld [vmem:[#allocation7 + $0x218] sm:$0xf]
    %v948 = vld [vmem:[#allocation7 + $0x21c] sm:$0xff]
    %v949 = vld [vmem:[#allocation7 + $0x224] sm:$0xf]
    %v950 = vld [vmem:[#allocation7 + $0x228] sm:$0xff]
    %v951 = vld [vmem:[#allocation7 + $0x230] sm:$0xf]
    %v952 = vld [vmem:[#allocation7 + $0x234] sm:$0xff]
    %v953 = vld [vmem:[#allocation7 + $0x23c] sm:$0xf]
    %v954 = vld [vmem:[#allocation7 + $0x240] sm:$0xff]
    %v955 = vld [vmem:[#allocation7 + $0x248] sm:$0xf]
    %v956 = vld [vmem:[#allocation7 + $0x24c] sm:$0xff]
    %v957 = vld [vmem:[#allocation7 + $0x254] sm:$0xf]
    %v958 = vld [vmem:[#allocation7 + $0x258] sm:$0xff]
    %v959 = vld [vmem:[#allocation7 + $0x260] sm:$0xf]
    %v960 = vld [vmem:[#allocation7 + $0x264] sm:$0xff]
    %v961 = vld [vmem:[#allocation7 + $0x26c] sm:$0xf]
    %v962 = vld [vmem:[#allocation7 + $0x270] sm:$0xff]
    %v963 = vld [vmem:[#allocation7 + $0x278] sm:$0xf]
    %v964 = vld [vmem:[#allocation7 + $0x27c] sm:$0xff]
    %v965 = vld [vmem:[#allocation7 + $0x284] sm:$0xf]
    %v966 = vld [vmem:[#allocation7 + $0x288] sm:$0xff]
    %v967 = vld [vmem:[#allocation7 + $0x290] sm:$0xf]
    %v968 = vld [vmem:[#allocation7 + $0x294] sm:$0xff]
    %v969 = vld [vmem:[#allocation7 + $0x29c] sm:$0xf]
    %v970 = vld [vmem:[#allocation7 + $0x2a0] sm:$0xff]
    %v971 = vld [vmem:[#allocation7 + $0x2a8] sm:$0xf]
    %v972 = vld [vmem:[#allocation7 + $0x2ac] sm:$0xff]
    %v973 = vld [vmem:[#allocation7 + $0x2b4] sm:$0xf]
    %v974 = vld [vmem:[#allocation7 + $0x2b8] sm:$0xff]
    %v975 = vld [vmem:[#allocation7 + $0x2c0] sm:$0xf]
    %v976 = vld [vmem:[#allocation7 + $0x2c4] sm:$0xff]
    %v977 = vld [vmem:[#allocation7 + $0x2cc] sm:$0xf]
    %v978 = vld [vmem:[#allocation7 + $0x2d0] sm:$0xff]
    %v979 = vld [vmem:[#allocation7 + $0x2d8] sm:$0xf]
    %v980 = vld [vmem:[#allocation7 + $0x2dc] sm:$0xff]
    %v981 = vld [vmem:[#allocation7 + $0x2e4] sm:$0xf]
    %v982 = vld [vmem:[#allocation7 + $0x2e8] sm:$0xff]
    %v983 = vld [vmem:[#allocation7 + $0x2f0] sm:$0xf]
    %v984 = vld [vmem:[#allocation7 + $0x2f4] sm:$0xff]
    %v985 = vld [vmem:[#allocation7 + $0x2fc] sm:$0xf]
    %v986 = vld [vmem:[#allocation5 + $0x10] sm:$0xff]
    %v987 = vld [vmem:[#allocation5 + $0x18] sm:$0xff]
    %v988 = vld [vmem:[#allocation5 + $0x40] sm:$0xff]
    %v989 = vld [vmem:[#allocation5 + $0x48] sm:$0xff]
    %v990 = vld [vmem:[#allocation5 + $0x70] sm:$0xff]
    %v991 = vld [vmem:[#allocation5 + $0x78] sm:$0xff]
    %v992 = vld [vmem:[#allocation5 + $0xa0] sm:$0xff]
    %v993 = vld [vmem:[#allocation5 + $0xa8] sm:$0xff]
    %v994 = vld [vmem:[#allocation5 + $0xd0] sm:$0xff]
    %v995 = vld [vmem:[#allocation5 + $0xd8] sm:$0xff]
    %v996 = vld [vmem:[#allocation5 + $0x100] sm:$0xff]
    %v997 = vld [vmem:[#allocation5 + $0x108] sm:$0xff]
    %v998 = vld [vmem:[#allocation5 + $0x130] sm:$0xff]
    %v999 = vld [vmem:[#allocation5 + $0x138] sm:$0xff]
    %v1000 = vld [vmem:[#allocation5 + $0x160] sm:$0xff]
    %v1001 = vld [vmem:[#allocation5 + $0x168] sm:$0xff]
    %v1002 = vld [vmem:[#allocation5 + $0x190] sm:$0xff]
    %v1003 = vld [vmem:[#allocation5 + $0x198] sm:$0xff]
    %v1004 = vld [vmem:[#allocation5 + $0x1c0] sm:$0xff]
    %v1005 = vld [vmem:[#allocation5 + $0x1c8] sm:$0xff]
    %v1006 = vld [vmem:[#allocation5 + $0x1f0] sm:$0xff]
    %v1007 = vld [vmem:[#allocation5 + $0x1f8] sm:$0xff]
    %v1008 = vld [vmem:[#allocation5 + $0x220] sm:$0xff]
    %v1009 = vld [vmem:[#allocation5 + $0x228] sm:$0xff]
    %v1010 = vld [vmem:[#allocation5 + $0x250] sm:$0xff]
    %v1011 = vld [vmem:[#allocation5 + $0x258] sm:$0xff]
    %v1012 = vld [vmem:[#allocation5 + $0x280] sm:$0xff]
    %v1013 = vld [vmem:[#allocation5 + $0x288] sm:$0xff]
    %v1014 = vld [vmem:[#allocation5 + $0x2b0] sm:$0xff]
    %v1015 = vld [vmem:[#allocation5 + $0x2b8] sm:$0xff]
    %v1016 = vld [vmem:[#allocation5 + $0x2e0] sm:$0xff]
    %v1017 = vld [vmem:[#allocation5 + $0x2e8] sm:$0xff]
    %v1018 = vld [vmem:[#allocation5 + $0x310] sm:$0xff]
    %v1019 = vld [vmem:[#allocation5 + $0x318] sm:$0xff]
    %v1020 = vld [vmem:[#allocation5 + $0x340] sm:$0xff]
    %v1021 = vld [vmem:[#allocation5 + $0x348] sm:$0xff]
    %v1022 = vld [vmem:[#allocation5 + $0x370] sm:$0xff]
    %v1023 = vld [vmem:[#allocation5 + $0x378] sm:$0xff]
    %v1024 = vld [vmem:[#allocation5 + $0x3a0] sm:$0xff]
    %v1025 = vld [vmem:[#allocation5 + $0x3a8] sm:$0xff]
    %v1026 = vld [vmem:[#allocation5 + $0x3d0] sm:$0xff]
    %v1027 = vld [vmem:[#allocation5 + $0x3d8] sm:$0xff]
    %v1028 = vld [vmem:[#allocation5 + $0x400] sm:$0xff]
    %v1029 = vld [vmem:[#allocation5 + $0x408] sm:$0xff]
    %v1030 = vld [vmem:[#allocation5 + $0x430] sm:$0xff]
    %v1031 = vld [vmem:[#allocation5 + $0x438] sm:$0xff]
    %v1032 = vld [vmem:[#allocation5 + $0x460] sm:$0xff]
    %v1033 = vld [vmem:[#allocation5 + $0x468] sm:$0xff]
    %v1034 = vld [vmem:[#allocation5 + $0x490] sm:$0xff]
    %v1035 = vld [vmem:[#allocation5 + $0x498] sm:$0xff]
    %v1036 = vld [vmem:[#allocation5 + $0x4c0] sm:$0xff]
    %v1037 = vld [vmem:[#allocation5 + $0x4c8] sm:$0xff]
    %v1038 = vld [vmem:[#allocation5 + $0x4f0] sm:$0xff]
    %v1039 = vld [vmem:[#allocation5 + $0x4f8] sm:$0xff]
    %v1040 = vld [vmem:[#allocation5 + $0x520] sm:$0xff]
    %v1041 = vld [vmem:[#allocation5 + $0x528] sm:$0xff]
    %v1042 = vld [vmem:[#allocation5 + $0x550] sm:$0xff]
    %v1043 = vld [vmem:[#allocation5 + $0x558] sm:$0xff]
    %v1044 = vld [vmem:[#allocation5 + $0x580] sm:$0xff]
    %v1045 = vld [vmem:[#allocation5 + $0x588] sm:$0xff]
    %v1046 = vld [vmem:[#allocation5 + $0x5b0] sm:$0xff]
    %v1047 = vld [vmem:[#allocation5 + $0x5b8] sm:$0xff]
    %v1048 = vld [vmem:[#allocation5 + $0x5e0] sm:$0xff]
    %v1049 = vld [vmem:[#allocation5 + $0x5e8] sm:$0xff]
    %v1050 = vld [vmem:[#allocation5 + $0x610] sm:$0xff]
    %v1051 = vld [vmem:[#allocation5 + $0x618] sm:$0xff]
    %v1052 = vld [vmem:[#allocation5 + $0x640] sm:$0xff]
    %v1053 = vld [vmem:[#allocation5 + $0x648] sm:$0xff]
    %v1054 = vld [vmem:[#allocation5 + $0x670] sm:$0xff]
    %v1055 = vld [vmem:[#allocation5 + $0x678] sm:$0xff]
    %v1056 = vld [vmem:[#allocation5 + $0x6a0] sm:$0xff]
    %v1057 = vld [vmem:[#allocation5 + $0x6a8] sm:$0xff]
    %v1058 = vld [vmem:[#allocation5 + $0x6d0] sm:$0xff]
    %v1059 = vld [vmem:[#allocation5 + $0x6d8] sm:$0xff]
    %v1060 = vld [vmem:[#allocation5 + $0x700] sm:$0xff]
    %v1061 = vld [vmem:[#allocation5 + $0x708] sm:$0xff]
    %v1062 = vld [vmem:[#allocation5 + $0x730] sm:$0xff]
    %v1063 = vld [vmem:[#allocation5 + $0x738] sm:$0xff]
    %v1064 = vld [vmem:[#allocation5 + $0x760] sm:$0xff]
    %v1065 = vld [vmem:[#allocation5 + $0x768] sm:$0xff]
    %v1066 = vld [vmem:[#allocation5 + $0x790] sm:$0xff]
    %v1067 = vld [vmem:[#allocation5 + $0x798] sm:$0xff]
    %v1068 = vld [vmem:[#allocation5 + $0x7c0] sm:$0xff]
    %v1069 = vld [vmem:[#allocation5 + $0x7c8] sm:$0xff]
    %v1070 = vld [vmem:[#allocation5 + $0x7f0] sm:$0xff]
    %v1071 = vld [vmem:[#allocation5 + $0x7f8] sm:$0xff]
    %v1072 = vld [vmem:[#allocation5 + $0x820] sm:$0xff]
    %v1073 = vld [vmem:[#allocation5 + $0x828] sm:$0xff]
    %v1074 = vld [vmem:[#allocation5 + $0x850] sm:$0xff]
    %v1075 = vld [vmem:[#allocation5 + $0x858] sm:$0xff]
    %v1076 = vld [vmem:[#allocation5 + $0x880] sm:$0xff]
    %v1077 = vld [vmem:[#allocation5 + $0x888] sm:$0xff]
    %v1078 = vld [vmem:[#allocation5 + $0x8b0] sm:$0xff]
    %v1079 = vld [vmem:[#allocation5 + $0x8b8] sm:$0xff]
    %v1080 = vld [vmem:[#allocation5 + $0x8e0] sm:$0xff]
    %v1081 = vld [vmem:[#allocation5 + $0x8e8] sm:$0xff]
    %v1178 = vunpack.c.l.b16 %v986
    %v1179 = vunpack.c.h.b16 %v986
    %v1180 = vunpack.c.l.b16 %v987
    %v1181 = vunpack.c.h.b16 %v987
    %v1182 = vunpack.c.l.b16 %v988
    %v1183 = vunpack.c.h.b16 %v988
    %v1184 = vunpack.c.l.b16 %v989
    %v1185 = vunpack.c.h.b16 %v989
    %v1186 = vunpack.c.l.b16 %v990
    %v1187 = vunpack.c.h.b16 %v990
    %v1188 = vunpack.c.l.b16 %v991
    %v1189 = vunpack.c.h.b16 %v991
    %v1190 = vunpack.c.l.b16 %v992
    %v1191 = vunpack.c.h.b16 %v992
    %v1192 = vunpack.c.l.b16 %v993
    %v1193 = vunpack.c.h.b16 %v993
    %v1194 = vunpack.c.l.b16 %v994
    %v1195 = vunpack.c.h.b16 %v994
    %v1196 = vunpack.c.l.b16 %v995
    %v1197 = vunpack.c.h.b16 %v995
    %v1198 = vunpack.c.l.b16 %v996
    %v1199 = vunpack.c.h.b16 %v996
    %v1200 = vunpack.c.l.b16 %v997
    %v1201 = vunpack.c.h.b16 %v997
    %v1202 = vunpack.c.l.b16 %v998
    %v1203 = vunpack.c.h.b16 %v998
    %v1204 = vunpack.c.l.b16 %v999
    %v1205 = vunpack.c.h.b16 %v999
    %v1206 = vunpack.c.l.b16 %v1000
    %v1207 = vunpack.c.h.b16 %v1000
    %v1208 = vunpack.c.l.b16 %v1001
    %v1209 = vunpack.c.h.b16 %v1001
    %v1210 = vunpack.c.l.b16 %v1002
    %v1211 = vunpack.c.h.b16 %v1002
    %v1212 = vunpack.c.l.b16 %v1003
    %v1213 = vunpack.c.h.b16 %v1003
    %v1214 = vunpack.c.l.b16 %v1004
    %v1215 = vunpack.c.h.b16 %v1004
    %v1216 = vunpack.c.l.b16 %v1005
    %v1217 = vunpack.c.h.b16 %v1005
    %v1218 = vunpack.c.l.b16 %v1006
    %v1219 = vunpack.c.h.b16 %v1006
    %v1220 = vunpack.c.l.b16 %v1007
    %v1221 = vunpack.c.h.b16 %v1007
    %v1222 = vunpack.c.l.b16 %v1008
    %v1223 = vunpack.c.h.b16 %v1008
    %v1224 = vunpack.c.l.b16 %v1009
    %v1225 = vunpack.c.h.b16 %v1009
    %v1226 = vunpack.c.l.b16 %v1010
    %v1227 = vunpack.c.h.b16 %v1010
    %v1228 = vunpack.c.l.b16 %v1011
    %v1229 = vunpack.c.h.b16 %v1011
    %v1230 = vunpack.c.l.b16 %v1012
    %v1231 = vunpack.c.h.b16 %v1012
    %v1232 = vunpack.c.l.b16 %v1013
    %v1233 = vunpack.c.h.b16 %v1013
    %v1234 = vunpack.c.l.b16 %v1014
    %v1235 = vunpack.c.h.b16 %v1014
    %v1236 = vunpack.c.l.b16 %v1015
    %v1237 = vunpack.c.h.b16 %v1015
    %v1238 = vunpack.c.l.b16 %v1016
    %v1239 = vunpack.c.h.b16 %v1016
    %v1240 = vunpack.c.l.b16 %v1017
    %v1241 = vunpack.c.h.b16 %v1017
    %v1242 = vunpack.c.l.b16 %v1018
    %v1243 = vunpack.c.h.b16 %v1018
    %v1244 = vunpack.c.l.b16 %v1019
    %v1245 = vunpack.c.h.b16 %v1019
    %v1246 = vunpack.c.l.b16 %v1020
    %v1247 = vunpack.c.h.b16 %v1020
    %v1248 = vunpack.c.l.b16 %v1021
    %v1249 = vunpack.c.h.b16 %v1021
    %v1250 = vunpack.c.l.b16 %v1022
    %v1251 = vunpack.c.h.b16 %v1022
    %v1252 = vunpack.c.l.b16 %v1023
    %v1253 = vunpack.c.h.b16 %v1023
    %v1254 = vunpack.c.l.b16 %v1024
    %v1255 = vunpack.c.h.b16 %v1024
    %v1256 = vunpack.c.l.b16 %v1025
    %v1257 = vunpack.c.h.b16 %v1025
    %v1258 = vunpack.c.l.b16 %v1026
    %v1259 = vunpack.c.h.b16 %v1026
    %v1260 = vunpack.c.l.b16 %v1027
    %v1261 = vunpack.c.h.b16 %v1027
    %v1262 = vunpack.c.l.b16 %v1028
    %v1263 = vunpack.c.h.b16 %v1028
    %v1264 = vunpack.c.l.b16 %v1029
    %v1265 = vunpack.c.h.b16 %v1029
    %v1266 = vunpack.c.l.b16 %v1030
    %v1267 = vunpack.c.h.b16 %v1030
    %v1268 = vunpack.c.l.b16 %v1031
    %v1269 = vunpack.c.h.b16 %v1031
    %v1270 = vunpack.c.l.b16 %v1032
    %v1271 = vunpack.c.h.b16 %v1032
    %v1272 = vunpack.c.l.b16 %v1033
    %v1273 = vunpack.c.h.b16 %v1033
    %v1274 = vunpack.c.l.b16 %v1034
    %v1275 = vunpack.c.h.b16 %v1034
    %v1276 = vunpack.c.l.b16 %v1035
    %v1277 = vunpack.c.h.b16 %v1035
    %v1278 = vunpack.c.l.b16 %v1036
    %v1279 = vunpack.c.h.b16 %v1036
    %v1280 = vunpack.c.l.b16 %v1037
    %v1281 = vunpack.c.h.b16 %v1037
    %v1282 = vunpack.c.l.b16 %v1038
    %v1283 = vunpack.c.h.b16 %v1038
    %v1284 = vunpack.c.l.b16 %v1039
    %v1285 = vunpack.c.h.b16 %v1039
    %v1286 = vunpack.c.l.b16 %v1040
    %v1287 = vunpack.c.h.b16 %v1040
    %v1288 = vunpack.c.l.b16 %v1041
    %v1289 = vunpack.c.h.b16 %v1041
    %v1290 = vunpack.c.l.b16 %v1042
    %v1291 = vunpack.c.h.b16 %v1042
    %v1292 = vunpack.c.l.b16 %v1043
    %v1293 = vunpack.c.h.b16 %v1043
    %v1294 = vunpack.c.l.b16 %v1044
    %v1295 = vunpack.c.h.b16 %v1044
    %v1296 = vunpack.c.l.b16 %v1045
    %v1297 = vunpack.c.h.b16 %v1045
    %v1298 = vunpack.c.l.b16 %v1046
    %v1299 = vunpack.c.h.b16 %v1046
    %v1300 = vunpack.c.l.b16 %v1047
    %v1301 = vunpack.c.h.b16 %v1047
    %v1302 = vunpack.c.l.b16 %v1048
    %v1303 = vunpack.c.h.b16 %v1048
    %v1304 = vunpack.c.l.b16 %v1049
    %v1305 = vunpack.c.h.b16 %v1049
    %v1306 = vunpack.c.l.b16 %v1050
    %v1307 = vunpack.c.h.b16 %v1050
    %v1308 = vunpack.c.l.b16 %v1051
    %v1309 = vunpack.c.h.b16 %v1051
    %v1310 = vunpack.c.l.b16 %v1052
    %v1311 = vunpack.c.h.b16 %v1052
    %v1312 = vunpack.c.l.b16 %v1053
    %v1313 = vunpack.c.h.b16 %v1053
    %v1314 = vunpack.c.l.b16 %v1054
    %v1315 = vunpack.c.h.b16 %v1054
    %v1316 = vunpack.c.l.b16 %v1055
    %v1317 = vunpack.c.h.b16 %v1055
    %v1318 = vunpack.c.l.b16 %v1056
    %v1319 = vunpack.c.h.b16 %v1056
    %v1320 = vunpack.c.l.b16 %v1057
    %v1321 = vunpack.c.h.b16 %v1057
    %v1322 = vunpack.c.l.b16 %v1058
    %v1323 = vunpack.c.h.b16 %v1058
    %v1324 = vunpack.c.l.b16 %v1059
    %v1325 = vunpack.c.h.b16 %v1059
    %v1326 = vunpack.c.l.b16 %v1060
    %v1327 = vunpack.c.h.b16 %v1060
    %v1328 = vunpack.c.l.b16 %v1061
    %v1329 = vunpack.c.h.b16 %v1061
    %v1330 = vunpack.c.l.b16 %v1062
    %v1331 = vunpack.c.h.b16 %v1062
    %v1332 = vunpack.c.l.b16 %v1063
    %v1333 = vunpack.c.h.b16 %v1063
    %v1334 = vunpack.c.l.b16 %v1064
    %v1335 = vunpack.c.h.b16 %v1064
    %v1336 = vunpack.c.l.b16 %v1065
    %v1337 = vunpack.c.h.b16 %v1065
    %v1338 = vunpack.c.l.b16 %v1066
    %v1339 = vunpack.c.h.b16 %v1066
    %v1340 = vunpack.c.l.b16 %v1067
    %v1341 = vunpack.c.h.b16 %v1067
    %v1342 = vunpack.c.l.b16 %v1068
    %v1343 = vunpack.c.h.b16 %v1068
    %v1344 = vunpack.c.l.b16 %v1069
    %v1345 = vunpack.c.h.b16 %v1069
    %v1346 = vunpack.c.l.b16 %v1070
    %v1347 = vunpack.c.h.b16 %v1070
    %v1348 = vunpack.c.l.b16 %v1071
    %v1349 = vunpack.c.h.b16 %v1071
    %v1350 = vunpack.c.l.b16 %v1072
    %v1351 = vunpack.c.h.b16 %v1072
    %v1352 = vunpack.c.l.b16 %v1073
    %v1353 = vunpack.c.h.b16 %v1073
    %v1354 = vunpack.c.l.b16 %v1074
    %v1355 = vunpack.c.h.b16 %v1074
    %v1356 = vunpack.c.l.b16 %v1075
    %v1357 = vunpack.c.h.b16 %v1075
    %v1358 = vunpack.c.l.b16 %v1076
    %v1359 = vunpack.c.h.b16 %v1076
    %v1360 = vunpack.c.l.b16 %v1077
    %v1361 = vunpack.c.h.b16 %v1077
    %v1362 = vunpack.c.l.b16 %v1078
    %v1363 = vunpack.c.h.b16 %v1078
    %v1364 = vunpack.c.l.b16 %v1079
    %v1365 = vunpack.c.h.b16 %v1079
    %v1366 = vunpack.c.l.b16 %v1080
    %v1367 = vunpack.c.h.b16 %v1080
    %v1368 = vunpack.c.l.b16 %v1081
    %v1369 = vunpack.c.h.b16 %v1081
    %v1370 = vpack.c.b16 %v1182, %v1178
    %v1371 = vpack.c.b16 %v1183, %v1179
    %v1372 = vpack.c.b16 %v1184, %v1180
    %v1373 = vpack.c.b16 %v1185, %v1181
    %v1374 = vpack.c.b16 %v1190, %v1186
    %v1375 = vpack.c.b16 %v1191, %v1187
    %v1376 = vpack.c.b16 %v1192, %v1188
    %v1377 = vpack.c.b16 %v1193, %v1189
    %v1378 = vpack.c.b16 %v1198, %v1194
    %v1379 = vpack.c.b16 %v1199, %v1195
    %v1380 = vpack.c.b16 %v1200, %v1196
    %v1381 = vpack.c.b16 %v1201, %v1197
    %v1382 = vpack.c.b16 %v1206, %v1202
    %v1383 = vpack.c.b16 %v1207, %v1203
    %v1384 = vpack.c.b16 %v1208, %v1204
    %v1385 = vpack.c.b16 %v1209, %v1205
    %v1386 = vpack.c.b16 %v1214, %v1210
    %v1387 = vpack.c.b16 %v1215, %v1211
    %v1388 = vpack.c.b16 %v1216, %v1212
    %v1389 = vpack.c.b16 %v1217, %v1213
    %v1390 = vpack.c.b16 %v1222, %v1218
    %v1391 = vpack.c.b16 %v1223, %v1219
    %v1392 = vpack.c.b16 %v1224, %v1220
    %v1393 = vpack.c.b16 %v1225, %v1221
    %v1394 = vpack.c.b16 %v1230, %v1226
    %v1395 = vpack.c.b16 %v1231, %v1227
    %v1396 = vpack.c.b16 %v1232, %v1228
    %v1397 = vpack.c.b16 %v1233, %v1229
    %v1398 = vpack.c.b16 %v1238, %v1234
    %v1399 = vpack.c.b16 %v1239, %v1235
    %v1400 = vpack.c.b16 %v1240, %v1236
    %v1401 = vpack.c.b16 %v1241, %v1237
    %v1402 = vpack.c.b16 %v1246, %v1242
    %v1403 = vpack.c.b16 %v1247, %v1243
    %v1404 = vpack.c.b16 %v1248, %v1244
    %v1405 = vpack.c.b16 %v1249, %v1245
    %v1406 = vpack.c.b16 %v1254, %v1250
    %v1407 = vpack.c.b16 %v1255, %v1251
    %v1408 = vpack.c.b16 %v1256, %v1252
    %v1409 = vpack.c.b16 %v1257, %v1253
    %v1410 = vpack.c.b16 %v1262, %v1258
    %v1411 = vpack.c.b16 %v1263, %v1259
    %v1412 = vpack.c.b16 %v1264, %v1260
    %v1413 = vpack.c.b16 %v1265, %v1261
    %v1414 = vpack.c.b16 %v1270, %v1266
    %v1415 = vpack.c.b16 %v1271, %v1267
    %v1416 = vpack.c.b16 %v1272, %v1268
    %v1417 = vpack.c.b16 %v1273, %v1269
    %v1418 = vpack.c.b16 %v1278, %v1274
    %v1419 = vpack.c.b16 %v1279, %v1275
    %v1420 = vpack.c.b16 %v1280, %v1276
    %v1421 = vpack.c.b16 %v1281, %v1277
    %v1422 = vpack.c.b16 %v1286, %v1282
    %v1423 = vpack.c.b16 %v1287, %v1283
    %v1424 = vpack.c.b16 %v1288, %v1284
    %v1425 = vpack.c.b16 %v1289, %v1285
    %v1426 = vpack.c.b16 %v1294, %v1290
    %v1427 = vpack.c.b16 %v1295, %v1291
    %v1428 = vpack.c.b16 %v1296, %v1292
    %v1429 = vpack.c.b16 %v1297, %v1293
    %v1430 = vpack.c.b16 %v1302, %v1298
    %v1431 = vpack.c.b16 %v1303, %v1299
    %v1432 = vpack.c.b16 %v1304, %v1300
    %v1433 = vpack.c.b16 %v1305, %v1301
    %v1434 = vpack.c.b16 %v1310, %v1306
    %v1435 = vpack.c.b16 %v1311, %v1307
    %v1436 = vpack.c.b16 %v1312, %v1308
    %v1437 = vpack.c.b16 %v1313, %v1309
    %v1438 = vpack.c.b16 %v1318, %v1314
    %v1439 = vpack.c.b16 %v1319, %v1315
    %v1440 = vpack.c.b16 %v1320, %v1316
    %v1441 = vpack.c.b16 %v1321, %v1317
    %v1442 = vpack.c.b16 %v1326, %v1322
    %v1443 = vpack.c.b16 %v1327, %v1323
    %v1444 = vpack.c.b16 %v1328, %v1324
    %v1445 = vpack.c.b16 %v1329, %v1325
    %v1446 = vpack.c.b16 %v1334, %v1330
    %v1447 = vpack.c.b16 %v1335, %v1331
    %v1448 = vpack.c.b16 %v1336, %v1332
    %v1449 = vpack.c.b16 %v1337, %v1333
    %v1450 = vpack.c.b16 %v1342, %v1338
    %v1451 = vpack.c.b16 %v1343, %v1339
    %v1452 = vpack.c.b16 %v1344, %v1340
    %v1453 = vpack.c.b16 %v1345, %v1341
    %v1454 = vpack.c.b16 %v1350, %v1346
    %v1455 = vpack.c.b16 %v1351, %v1347
    %v1456 = vpack.c.b16 %v1352, %v1348
    %v1457 = vpack.c.b16 %v1353, %v1349
    %v1458 = vpack.c.b16 %v1358, %v1354
    %v1459 = vpack.c.b16 %v1359, %v1355
    %v1460 = vpack.c.b16 %v1360, %v1356
    %v1461 = vpack.c.b16 %v1361, %v1357
    %v1462 = vpack.c.b16 %v1366, %v1362
    %v1463 = vpack.c.b16 %v1367, %v1363
    %v1464 = vpack.c.b16 %v1368, %v1364
    %v1465 = vpack.c.b16 %v1369, %v1365
    %1562 = vmatprep.subr.bf16.mxu0 %v1371
    %1563 = vmatpush1.bf16.msra.mxu0 %v1370
    %1564 = vmatprep.subr.bf16.mxu0 %v1375
    %1565 = vmatpush1.bf16.msra.mxu0 %v1374
    %1566 = vmatprep.subr.bf16.mxu0 %v1379
    %1567 = vmatpush1.bf16.msra.mxu0 %v1378
    %1568 = vmatprep.subr.bf16.mxu0 %v1383
    %1569 = vmatpush1.bf16.msra.mxu0 %v1382
    %1570 = vmatprep.subr.bf16.mxu0 %v1387
    %1571 = vmatpush1.bf16.msra.mxu0 %v1386
    %1572 = vmatprep.subr.bf16.mxu0 %v1391
    %1573 = vmatpush1.bf16.msra.mxu0 %v1390
    %1574 = vmatprep.subr.bf16.mxu0 %v1395
    %1575 = vmatpush1.bf16.msra.mxu0 %v1394
    %1576 = vmatprep.subr.bf16.mxu0 %v1399
    %1577 = vmatpush1.bf16.msra.mxu0 %v1398
    %1578 = vmatprep.subr.bf16.mxu0 %v1403
    %1579 = vmatpush1.bf16.msra.mxu0 %v1402
    %1580 = vmatprep.subr.bf16.mxu0 %v1407
    %1581 = vmatpush1.bf16.msra.mxu0 %v1406
    %1582 = vmatprep.subr.bf16.mxu0 %v1411
    %1583 = vmatpush1.bf16.msra.mxu0 %v1410
    %1584 = vmatprep.subr.bf16.mxu0 %v1415
    %1585 = vmatpush1.bf16.msra.mxu0 %v1414
    %1586 = vmatprep.subr.bf16.mxu0 %v1419
    %1587 = vmatpush1.bf16.msra.mxu0 %v1418
    %1588 = vmatprep.subr.bf16.mxu0 %v1423
    %1589 = vmatpush1.bf16.msra.mxu0 %v1422
    %1590 = vmatprep.subr.bf16.mxu0 %v1427
    %1591 = vmatpush1.bf16.msra.mxu0 %v1426
    %1592 = vmatprep.subr.bf16.mxu0 %v1431
    %1593 = vmatpush1.bf16.msra.mxu0 %v1430
    %1594 = vmatprep.mubr.bf16.mxu0 %v68
    %1595 = vmatmul.mubr.bf16.gmra.mrb[0].mxu0 %v67
    %v1596 = vpop.f32.mrb[0].mxu0
    %v1597 = vadd.f32 0.0, %v1596
    %v1598 = vpop.f32.mrb[0].mxu0
    %v1599 = vadd.f32 0.0, %v1598
    %v1600 = vpop.f32.mrb[0].mxu0
    %v1601 = vadd.f32 0.0, %v1600
    %v1602 = vpop.f32.mrb[0].mxu0
    %v1603 = vadd.f32 0.0, %v1602
    %1604 = vdwg.mxu0
    %1605 = vmatprep.subr.bf16.mxu0 %v1435
    %1606 = vmatpush1.bf16.msra.mxu0 %v1434
    %1607 = vmatprep.subr.bf16.mxu0 %v1439
    %1608 = vmatpush1.bf16.msra.mxu0 %v1438
    %1609 = vmatprep.subr.bf16.mxu0 %v1443
    %1610 = vmatpush1.bf16.msra.mxu0 %v1442
    %1611 = vmatprep.subr.bf16.mxu0 %v1447
    %1612 = vmatpush1.bf16.msra.mxu0 %v1446
    %1613 = vmatprep.subr.bf16.mxu0 %v1451
    %1614 = vmatpush1.bf16.msra.mxu0 %v1450
    %1615 = vmatprep.subr.bf16.mxu0 %v1455
    %1616 = vmatpush1.bf16.msra.mxu0 %v1454
    %1617 = vmatprep.subr.bf16.mxu0 %v1459
    %1618 = vmatpush1.bf16.msra.mxu0 %v1458
    %1619 = vmatprep.subr.bf16.mxu0 %v1463
    %1620 = vmatpush1.bf16.msra.mxu0 %v1462
    %1621 = vmatprep.subr.bf16.mxu0 0
    %1622 = vmatpush1.bf16.msra.mxu0 0
    %1623 = vmatprep.subr.bf16.mxu0 0
    %1624 = vmatpush1.bf16.msra.mxu0 0
    %1625 = vmatprep.subr.bf16.mxu0 0
    %1626 = vmatpush1.bf16.msra.mxu0 0
    %1627 = vmatprep.subr.bf16.mxu0 0
    %1628 = vmatpush1.bf16.msra.mxu0 0
    %1629 = vmatprep.subr.bf16.mxu0 0
    %1630 = vmatpush1.bf16.msra.mxu0 0
    %1631 = vmatprep.subr.bf16.mxu0 0
    %1632 = vmatpush1.bf16.msra.mxu0 0
    %1633 = vmatprep.subr.bf16.mxu0 0
    %1634 = vmatpush1.bf16.msra.mxu0 0
    %1635 = vmatprep.subr.bf16.mxu0 0
    %1636 = vmatpush1.bf16.msra.mxu0 0
    %1637 = vmatprep.mubr.bf16.mxu0 0
    %1638 = vmatmul.mubr.bf16.gmra.mrb[0].mxu0 %v69
    %v1639 = vpop.f32.mrb[0].mxu0
    %v1640 = vadd.f32 %v1597, %v1639
    %v1641 = vpop.f32.mrb[0].mxu0
    %v1642 = vadd.f32 %v1599, %v1641
    %v1643 = vpop.f32.mrb[0].mxu0
    %v1644 = vadd.f32 %v1601, %v1643
    %v1645 = vpop.f32.mrb[0].mxu0
    %v1646 = vadd.f32 %v1603, %v1645
    %1647 = vdwg.mxu0
    %1648 = vmatprep.subr.bf16.mxu0 %v1373
    %1649 = vmatpush1.bf16.msra.mxu0 %v1372
    %1650 = vmatprep.subr.bf16.mxu0 %v1377
    %1651 = vmatpush1.bf16.msra.mxu0 %v1376
    %1652 = vmatprep.subr.bf16.mxu0 %v1381
    %1653 = vmatpush1.bf16.msra.mxu0 %v1380
    %1654 = vmatprep.subr.bf16.mxu0 %v1385
    %1655 = vmatpush1.bf16.msra.mxu0 %v1384
    %1656 = vmatprep.subr.bf16.mxu0 %v1389
    %1657 = vmatpush1.bf16.msra.mxu0 %v1388
    %1658 = vmatprep.subr.bf16.mxu0 %v1393
    %1659 = vmatpush1.bf16.msra.mxu0 %v1392
    %1660 = vmatprep.subr.bf16.mxu0 %v1397
    %1661 = vmatpush1.bf16.msra.mxu0 %v1396
    %1662 = vmatprep.subr.bf16.mxu0 %v1401
    %1663 = vmatpush1.bf16.msra.mxu0 %v1400
    %1664 = vmatprep.subr.bf16.mxu0 %v1405
    %1665 = vmatpush1.bf16.msra.mxu0 %v1404
    %1666 = vmatprep.subr.bf16.mxu0 %v1409
    %1667 = vmatpush1.bf16.msra.mxu0 %v1408
    %1668 = vmatprep.subr.bf16.mxu0 %v1413
    %1669 = vmatpush1.bf16.msra.mxu0 %v1412
    %1670 = vmatprep.subr.bf16.mxu0 %v1417
    %1671 = vmatpush1.bf16.msra.mxu0 %v1416
    %1672 = vmatprep.subr.bf16.mxu0 %v1421
    %1673 = vmatpush1.bf16.msra.mxu0 %v1420
    %1674 = vmatprep.subr.bf16.mxu0 %v1425
    %1675 = vmatpush1.bf16.msra.mxu0 %v1424
    %1676 = vmatprep.subr.bf16.mxu0 %v1429
    %1677 = vmatpush1.bf16.msra.mxu0 %v1428
    %1678 = vmatprep.subr.bf16.mxu0 %v1433
    %1679 = vmatpush1.bf16.msra.mxu0 %v1432
    %1680 = vmatprep.mubr.bf16.mxu0 %v68
    %1681 = vmatmul.mubr.bf16.gmra.mrb[0].mxu0 %v67
    %v1682 = vpop.f32.mrb[0].mxu0
    %v1683 = vadd.f32 0.0, %v1682
    %v1684 = vpop.f32.mrb[0].mxu0
    %v1685 = vadd.f32 0.0, %v1684
    %v1686 = vpop.f32.mrb[0].mxu0
    %v1687 = vadd.f32 0.0, %v1686
    %v1688 = vpop.f32.mrb[0].mxu0
    %v1689 = vadd.f32 0.0, %v1688
    %1690 = vdwg.mxu0
    %1691 = vmatprep.subr.bf16.mxu0 %v1437
    %1692 = vmatpush1.bf16.msra.mxu0 %v1436
    %1693 = vmatprep.subr.bf16.mxu0 %v1441
    %1694 = vmatpush1.bf16.msra.mxu0 %v1440
    %1695 = vmatprep.subr.bf16.mxu0 %v1445
    %1696 = vmatpush1.bf16.msra.mxu0 %v1444
    %1697 = vmatprep.subr.bf16.mxu0 %v1449
    %1698 = vmatpush1.bf16.msra.mxu0 %v1448
    %1699 = vmatprep.subr.bf16.mxu0 %v1453
    %1700 = vmatpush1.bf16.msra.mxu0 %v1452
    %1701 = vmatprep.subr.bf16.mxu0 %v1457
    %1702 = vmatpush1.bf16.msra.mxu0 %v1456
    %1703 = vmatprep.subr.bf16.mxu0 %v1461
    %1704 = vmatpush1.bf16.msra.mxu0 %v1460
    %1705 = vmatprep.subr.bf16.mxu0 %v1465
    %1706 = vmatpush1.bf16.msra.mxu0 %v1464
    %1707 = vmatprep.subr.bf16.mxu0 0
    %1708 = vmatpush1.bf16.msra.mxu0 0
    %1709 = vmatprep.subr.bf16.mxu0 0
    %1710 = vmatpush1.bf16.msra.mxu0 0
    %1711 = vmatprep.subr.bf16.mxu0 0
    %1712 = vmatpush1.bf16.msra.mxu0 0
    %1713 = vmatprep.subr.bf16.mxu0 0
    %1714 = vmatpush1.bf16.msra.mxu0 0
    %1715 = vmatprep.subr.bf16.mxu0 0
    %1716 = vmatpush1.bf16.msra.mxu0 0
    %1717 = vmatprep.subr.bf16.mxu0 0
    %1718 = vmatpush1.bf16.msra.mxu0 0
    %1719 = vmatprep.subr.bf16.mxu0 0
    %1720 = vmatpush1.bf16.msra.mxu0 0
    %1721 = vmatprep.subr.bf16.mxu0 0
    %1722 = vmatpush1.bf16.msra.mxu0 0
    %1723 = vmatprep.mubr.bf16.mxu0 0
    %1724 = vmatmul.mubr.bf16.gmra.mrb[0].mxu0 %v69
    %v1725 = vpop.f32.mrb[0].mxu0
    %v1726 = vadd.f32 %v1683, %v1725
    %v1727 = vpop.f32.mrb[0].mxu0
    %v1728 = vadd.f32 %v1685, %v1727
    %v1729 = vpop.f32.mrb[0].mxu0
    %v1730 = vadd.f32 %v1687, %v1729
    %v1731 = vpop.f32.mrb[0].mxu0
    %v1732 = vadd.f32 %v1689, %v1731
    %1733 = vdwg.mxu0
    %v1734 = vpack.c.bf16 %v1644, %v1640
    %v1735 = vpack.c.bf16 %v1646, %v1642
    %v1736 = vpack.c.bf16 %v1730, %v1726
    %v1737 = vpack.c.bf16 %v1732, %v1728
    %v1738 = vmul.bf16 %v1734, %v1734
    %v1739 = vmul.bf16 %v1735, %v1735
    %v1740 = vmul.bf16 %v1736, %v1736
    %v1741 = vmul.bf16 %v1737, %v1737
    %v1742 = vmul.bf16 %v1734, %v1738
    %v1743 = vmul.bf16 %v1735, %v1739
    %v1744 = vmul.bf16 %v1736, %v1740
    %v1745 = vmul.bf16 %v1737, %v1741
    %v1746 = vmul.bf16 %v1742, 1027030327
    %v1747 = vmul.bf16 %v1743, 1027030327
    %v1748 = vmul.bf16 %v1744, 1027030327
    %v1749 = vmul.bf16 %v1745, 1027030327
    %v1750 = vadd.bf16 %v1734, %v1746
    %v1751 = vadd.bf16 %v1735, %v1747
    %v1752 = vadd.bf16 %v1736, %v1748
    %v1753 = vadd.bf16 %v1737, %v1749
    %v1754 = vmul.bf16 %v1750, 1061961548
    %v1755 = vmul.bf16 %v1751, 1061961548
    %v1756 = vmul.bf16 %v1752, 1061961548
    %v1757 = vmul.bf16 %v1753, 1061961548
    %v1758 = vtanh.bf16.pop %v1754
    %v1759 = vtanh.bf16.pop %v1755
    %v1760 = vtanh.bf16.pop %v1756
    %v1761 = vtanh.bf16.pop %v1757
    %v1762 = vadd.bf16 %v1758, 1065369472
    %v1763 = vadd.bf16 %v1759, 1065369472
    %v1764 = vadd.bf16 %v1760, 1065369472
    %v1765 = vadd.bf16 %v1761, 1065369472
    %v1766 = vmul.bf16 %v1762, 1056980736
    %v1767 = vmul.bf16 %v1763, 1056980736
    %v1768 = vmul.bf16 %v1764, 1056980736
    %v1769 = vmul.bf16 %v1765, 1056980736
    %v1770 = vmul.bf16 %v1734, %v1766
    %v1771 = vmul.bf16 %v1735, %v1767
    %v1772 = vmul.bf16 %v1736, %v1768
    %v1773 = vmul.bf16 %v1737, %v1769
    %v1774 = vld [vmem:[#allocation7 + $0x300] sm:$0xff]
    %v1775 = vld [vmem:[#allocation7 + $0x308] sm:$0xf]
    %v1776 = vld [vmem:[#allocation7 + $0x30c] sm:$0xff]
    %v1777 = vld [vmem:[#allocation7 + $0x314] sm:$0xf]
    %v1778 = vld [vmem:[#allocation7 + $0x318] sm:$0xff]
    %v1779 = vld [vmem:[#allocation7 + $0x320] sm:$0xf]
    %v1780 = vld [vmem:[#allocation7 + $0x324] sm:$0xff]
    %v1781 = vld [vmem:[#allocation7 + $0x32c] sm:$0xf]
    %v1782 = vld [vmem:[#allocation7 + $0x330] sm:$0xff]
    %v1783 = vld [vmem:[#allocation7 + $0x338] sm:$0xf]
    %v1784 = vld [vmem:[#allocation7 + $0x33c] sm:$0xff]
    %v1785 = vld [vmem:[#allocation7 + $0x344] sm:$0xf]
    %v1786 = vld [vmem:[#allocation7 + $0x348] sm:$0xff]
    %v1787 = vld [vmem:[#allocation7 + $0x350] sm:$0xf]
    %v1788 = vld [vmem:[#allocation7 + $0x354] sm:$0xff]
    %v1789 = vld [vmem:[#allocation7 + $0x35c] sm:$0xf]
    %v1790 = vld [vmem:[#allocation7 + $0x360] sm:$0xff]
    %v1791 = vld [vmem:[#allocation7 + $0x368] sm:$0xf]
    %v1792 = vld [vmem:[#allocation7 + $0x36c] sm:$0xff]
    %v1793 = vld [vmem:[#allocation7 + $0x374] sm:$0xf]
    %v1794 = vld [vmem:[#allocation7 + $0x378] sm:$0xff]
    %v1795 = vld [vmem:[#allocation7 + $0x380] sm:$0xf]
    %v1796 = vld [vmem:[#allocation7 + $0x384] sm:$0xff]
    %v1797 = vld [vmem:[#allocation7 + $0x38c] sm:$0xf]
    %v1798 = vld [vmem:[#allocation7 + $0x390] sm:$0xff]
    %v1799 = vld [vmem:[#allocation7 + $0x398] sm:$0xf]
    %v1800 = vld [vmem:[#allocation7 + $0x39c] sm:$0xff]
    %v1801 = vld [vmem:[#allocation7 + $0x3a4] sm:$0xf]
    %v1802 = vld [vmem:[#allocation7 + $0x3a8] sm:$0xff]
    %v1803 = vld [vmem:[#allocation7 + $0x3b0] sm:$0xf]
    %v1804 = vld [vmem:[#allocation7 + $0x3b4] sm:$0xff]
    %v1805 = vld [vmem:[#allocation7 + $0x3bc] sm:$0xf]
    %v1806 = vld [vmem:[#allocation7 + $0x3c0] sm:$0xff]
    %v1807 = vld [vmem:[#allocation7 + $0x3c8] sm:$0xf]
    %v1808 = vld [vmem:[#allocation7 + $0x3cc] sm:$0xff]
    %v1809 = vld [vmem:[#allocation7 + $0x3d4] sm:$0xf]
    %v1810 = vld [vmem:[#allocation7 + $0x3d8] sm:$0xff]
    %v1811 = vld [vmem:[#allocation7 + $0x3e0] sm:$0xf]
    %v1812 = vld [vmem:[#allocation7 + $0x3e4] sm:$0xff]
    %v1813 = vld [vmem:[#allocation7 + $0x3ec] sm:$0xf]
    %v1814 = vld [vmem:[#allocation7 + $0x3f0] sm:$0xff]
    %v1815 = vld [vmem:[#allocation7 + $0x3f8] sm:$0xf]
    %v1816 = vld [vmem:[#allocation7 + $0x3fc] sm:$0xff]
    %v1817 = vld [vmem:[#allocation7 + $0x404] sm:$0xf]
    %v1818 = vld [vmem:[#allocation7 + $0x408] sm:$0xff]
    %v1819 = vld [vmem:[#allocation7 + $0x410] sm:$0xf]
    %v1820 = vld [vmem:[#allocation7 + $0x414] sm:$0xff]
    %v1821 = vld [vmem:[#allocation7 + $0x41c] sm:$0xf]
    %v1822 = vld [vmem:[#allocation7 + $0x420] sm:$0xff]
    %v1823 = vld [vmem:[#allocation7 + $0x428] sm:$0xf]
    %v1824 = vld [vmem:[#allocation7 + $0x42c] sm:$0xff]
    %v1825 = vld [vmem:[#allocation7 + $0x434] sm:$0xf]
    %v1826 = vld [vmem:[#allocation7 + $0x438] sm:$0xff]
    %v1827 = vld [vmem:[#allocation7 + $0x440] sm:$0xf]
    %v1828 = vld [vmem:[#allocation7 + $0x444] sm:$0xff]
    %v1829 = vld [vmem:[#allocation7 + $0x44c] sm:$0xf]
    %v1830 = vld [vmem:[#allocation7 + $0x450] sm:$0xff]
    %v1831 = vld [vmem:[#allocation7 + $0x458] sm:$0xf]
    %v1832 = vld [vmem:[#allocation7 + $0x45c] sm:$0xff]
    %v1833 = vld [vmem:[#allocation7 + $0x464] sm:$0xf]
    %v1834 = vld [vmem:[#allocation7 + $0x468] sm:$0xff]
    %v1835 = vld [vmem:[#allocation7 + $0x470] sm:$0xf]
    %v1836 = vld [vmem:[#allocation7 + $0x474] sm:$0xff]
    %v1837 = vld [vmem:[#allocation7 + $0x47c] sm:$0xf]
    %v1838 = vld [vmem:[#allocation7 + $0x480] sm:$0xff]
    %v1839 = vld [vmem:[#allocation7 + $0x488] sm:$0xf]
    %v1840 = vld [vmem:[#allocation7 + $0x48c] sm:$0xff]
    %v1841 = vld [vmem:[#allocation7 + $0x494] sm:$0xf]
    %v1842 = vld [vmem:[#allocation7 + $0x498] sm:$0xff]
    %v1843 = vld [vmem:[#allocation7 + $0x4a0] sm:$0xf]
    %v1844 = vld [vmem:[#allocation7 + $0x4a4] sm:$0xff]
    %v1845 = vld [vmem:[#allocation7 + $0x4ac] sm:$0xf]
    %v1846 = vld [vmem:[#allocation7 + $0x4b0] sm:$0xff]
    %v1847 = vld [vmem:[#allocation7 + $0x4b8] sm:$0xf]
    %v1848 = vld [vmem:[#allocation7 + $0x4bc] sm:$0xff]
    %v1849 = vld [vmem:[#allocation7 + $0x4c4] sm:$0xf]
    %v1850 = vld [vmem:[#allocation7 + $0x4c8] sm:$0xff]
    %v1851 = vld [vmem:[#allocation7 + $0x4d0] sm:$0xf]
    %v1852 = vld [vmem:[#allocation7 + $0x4d4] sm:$0xff]
    %v1853 = vld [vmem:[#allocation7 + $0x4dc] sm:$0xf]
    %v1854 = vld [vmem:[#allocation7 + $0x4e0] sm:$0xff]
    %v1855 = vld [vmem:[#allocation7 + $0x4e8] sm:$0xf]
    %v1856 = vld [vmem:[#allocation7 + $0x4ec] sm:$0xff]
    %v1857 = vld [vmem:[#allocation7 + $0x4f4] sm:$0xf]
    %v1858 = vld [vmem:[#allocation7 + $0x4f8] sm:$0xff]
    %v1859 = vld [vmem:[#allocation7 + $0x500] sm:$0xf]
    %v1860 = vld [vmem:[#allocation7 + $0x504] sm:$0xff]
    %v1861 = vld [vmem:[#allocation7 + $0x50c] sm:$0xf]
    %v1862 = vld [vmem:[#allocation7 + $0x510] sm:$0xff]
    %v1863 = vld [vmem:[#allocation7 + $0x518] sm:$0xf]
    %v1864 = vld [vmem:[#allocation7 + $0x51c] sm:$0xff]
    %v1865 = vld [vmem:[#allocation7 + $0x524] sm:$0xf]
    %v1866 = vld [vmem:[#allocation7 + $0x528] sm:$0xff]
    %v1867 = vld [vmem:[#allocation7 + $0x530] sm:$0xf]
    %v1868 = vld [vmem:[#allocation7 + $0x534] sm:$0xff]
    %v1869 = vld [vmem:[#allocation7 + $0x53c] sm:$0xf]
    %v1870 = vld [vmem:[#allocation7 + $0x540] sm:$0xff]
    %v1871 = vld [vmem:[#allocation7 + $0x548] sm:$0xf]
    %v1872 = vld [vmem:[#allocation7 + $0x54c] sm:$0xff]
    %v1873 = vld [vmem:[#allocation7 + $0x554] sm:$0xf]
    %v1874 = vld [vmem:[#allocation7 + $0x558] sm:$0xff]
    %v1875 = vld [vmem:[#allocation7 + $0x560] sm:$0xf]
    %v1876 = vld [vmem:[#allocation7 + $0x564] sm:$0xff]
    %v1877 = vld [vmem:[#allocation7 + $0x56c] sm:$0xf]
    %v1878 = vld [vmem:[#allocation7 + $0x570] sm:$0xff]
    %v1879 = vld [vmem:[#allocation7 + $0x578] sm:$0xf]
    %v1880 = vld [vmem:[#allocation7 + $0x57c] sm:$0xff]
    %v1881 = vld [vmem:[#allocation7 + $0x584] sm:$0xf]
    %v1882 = vld [vmem:[#allocation7 + $0x588] sm:$0xff]
    %v1883 = vld [vmem:[#allocation7 + $0x590] sm:$0xf]
    %v1884 = vld [vmem:[#allocation7 + $0x594] sm:$0xff]
    %v1885 = vld [vmem:[#allocation7 + $0x59c] sm:$0xf]
    %v1886 = vld [vmem:[#allocation7 + $0x5a0] sm:$0xff]
    %v1887 = vld [vmem:[#allocation7 + $0x5a8] sm:$0xf]
    %v1888 = vld [vmem:[#allocation7 + $0x5ac] sm:$0xff]
    %v1889 = vld [vmem:[#allocation7 + $0x5b4] sm:$0xf]
    %v1890 = vld [vmem:[#allocation7 + $0x5b8] sm:$0xff]
    %v1891 = vld [vmem:[#allocation7 + $0x5c0] sm:$0xf]
    %v1892 = vld [vmem:[#allocation7 + $0x5c4] sm:$0xff]
    %v1893 = vld [vmem:[#allocation7 + $0x5cc] sm:$0xf]
    %v1894 = vld [vmem:[#allocation7 + $0x5d0] sm:$0xff]
    %v1895 = vld [vmem:[#allocation7 + $0x5d8] sm:$0xf]
    %v1896 = vld [vmem:[#allocation7 + $0x5dc] sm:$0xff]
    %v1897 = vld [vmem:[#allocation7 + $0x5e4] sm:$0xf]
    %v1898 = vld [vmem:[#allocation7 + $0x5e8] sm:$0xff]
    %v1899 = vld [vmem:[#allocation7 + $0x5f0] sm:$0xf]
    %v1900 = vld [vmem:[#allocation7 + $0x5f4] sm:$0xff]
    %v1901 = vld [vmem:[#allocation7 + $0x5fc] sm:$0xf]
    %v2030 = vunpack.c.l.b16 %v1774
    %v2031 = vunpack.c.h.b16 %v1774
    %v2032 = vunpack.c.l.b16 %v1775
    %v2033 = vunpack.c.l.b16 %v1776
    %v2034 = vunpack.c.h.b16 %v1776
    %v2035 = vunpack.c.l.b16 %v1777
    %v2036 = vunpack.c.l.b16 %v1778
    %v2037 = vunpack.c.h.b16 %v1778
    %v2038 = vunpack.c.l.b16 %v1779
    %v2039 = vunpack.c.l.b16 %v1780
    %v2040 = vunpack.c.h.b16 %v1780
    %v2041 = vunpack.c.l.b16 %v1781
    %v2042 = vunpack.c.l.b16 %v1782
    %v2043 = vunpack.c.h.b16 %v1782
    %v2044 = vunpack.c.l.b16 %v1783
    %v2045 = vunpack.c.l.b16 %v1784
    %v2046 = vunpack.c.h.b16 %v1784
    %v2047 = vunpack.c.l.b16 %v1785
    %v2048 = vunpack.c.l.b16 %v1786
    %v2049 = vunpack.c.h.b16 %v1786
    %v2050 = vunpack.c.l.b16 %v1787
    %v2051 = vunpack.c.l.b16 %v1788
    %v2052 = vunpack.c.h.b16 %v1788
    %v2053 = vunpack.c.l.b16 %v1789
    %v2054 = vunpack.c.l.b16 %v1790
    %v2055 = vunpack.c.h.b16 %v1790
    %v2056 = vunpack.c.l.b16 %v1791
    %v2057 = vunpack.c.l.b16 %v1792
    %v2058 = vunpack.c.h.b16 %v1792
    %v2059 = vunpack.c.l.b16 %v1793
    %v2060 = vunpack.c.l.b16 %v1794
    %v2061 = vunpack.c.h.b16 %v1794
    %v2062 = vunpack.c.l.b16 %v1795
    %v2063 = vunpack.c.l.b16 %v1796
    %v2064 = vunpack.c.h.b16 %v1796
    %v2065 = vunpack.c.l.b16 %v1797
    %v2066 = vunpack.c.l.b16 %v1798
    %v2067 = vunpack.c.h.b16 %v1798
    %v2068 = vunpack.c.l.b16 %v1799
    %v2069 = vunpack.c.l.b16 %v1800
    %v2070 = vunpack.c.h.b16 %v1800
    %v2071 = vunpack.c.l.b16 %v1801
    %v2072 = vunpack.c.l.b16 %v1802
    %v2073 = vunpack.c.h.b16 %v1802
    %v2074 = vunpack.c.l.b16 %v1803
    %v2075 = vunpack.c.l.b16 %v1804
    %v2076 = vunpack.c.h.b16 %v1804
    %v2077 = vunpack.c.l.b16 %v1805
    %v2078 = vunpack.c.l.b16 %v1806
    %v2079 = vunpack.c.h.b16 %v1806
    %v2080 = vunpack.c.l.b16 %v1807
    %v2081 = vunpack.c.l.b16 %v1808
    %v2082 = vunpack.c.h.b16 %v1808
    %v2083 = vunpack.c.l.b16 %v1809
    %v2084 = vunpack.c.l.b16 %v1810
    %v2085 = vunpack.c.h.b16 %v1810
    %v2086 = vunpack.c.l.b16 %v1811
    %v2087 = vunpack.c.l.b16 %v1812
    %v2088 = vunpack.c.h.b16 %v1812
    %v2089 = vunpack.c.l.b16 %v1813
    %v2090 = vunpack.c.l.b16 %v1814
    %v2091 = vunpack.c.h.b16 %v1814
    %v2092 = vunpack.c.l.b16 %v1815
    %v2093 = vunpack.c.l.b16 %v1816
    %v2094 = vunpack.c.h.b16 %v1816
    %v2095 = vunpack.c.l.b16 %v1817
    %v2096 = vunpack.c.l.b16 %v1818
    %v2097 = vunpack.c.h.b16 %v1818
    %v2098 = vunpack.c.l.b16 %v1819
    %v2099 = vunpack.c.l.b16 %v1820
    %v2100 = vunpack.c.h.b16 %v1820
    %v2101 = vunpack.c.l.b16 %v1821
    %v2102 = vunpack.c.l.b16 %v1822
    %v2103 = vunpack.c.h.b16 %v1822
    %v2104 = vunpack.c.l.b16 %v1823
    %v2105 = vunpack.c.l.b16 %v1824
    %v2106 = vunpack.c.h.b16 %v1824
    %v2107 = vunpack.c.l.b16 %v1825
    %v2108 = vunpack.c.l.b16 %v1826
    %v2109 = vunpack.c.h.b16 %v1826
    %v2110 = vunpack.c.l.b16 %v1827
    %v2111 = vunpack.c.l.b16 %v1828
    %v2112 = vunpack.c.h.b16 %v1828
    %v2113 = vunpack.c.l.b16 %v1829
    %v2114 = vunpack.c.l.b16 %v1830
    %v2115 = vunpack.c.h.b16 %v1830
    %v2116 = vunpack.c.l.b16 %v1831
    %v2117 = vunpack.c.l.b16 %v1832
    %v2118 = vunpack.c.h.b16 %v1832
    %v2119 = vunpack.c.l.b16 %v1833
    %v2120 = vunpack.c.l.b16 %v1834
    %v2121 = vunpack.c.h.b16 %v1834
    %v2122 = vunpack.c.l.b16 %v1835
    %v2123 = vunpack.c.l.b16 %v1836
    %v2124 = vunpack.c.h.b16 %v1836
    %v2125 = vunpack.c.l.b16 %v1837
    %v2126 = vunpack.c.l.b16 %v1838
    %v2127 = vunpack.c.h.b16 %v1838
    %v2128 = vunpack.c.l.b16 %v1839
    %v2129 = vunpack.c.l.b16 %v1840
    %v2130 = vunpack.c.h.b16 %v1840
    %v2131 = vunpack.c.l.b16 %v1841
    %v2132 = vunpack.c.l.b16 %v1842
    %v2133 = vunpack.c.h.b16 %v1842
    %v2134 = vunpack.c.l.b16 %v1843
    %v2135 = vunpack.c.l.b16 %v1844
    %v2136 = vunpack.c.h.b16 %v1844
    %v2137 = vunpack.c.l.b16 %v1845
    %v2138 = vunpack.c.l.b16 %v1846
    %v2139 = vunpack.c.h.b16 %v1846
    %v2140 = vunpack.c.l.b16 %v1847
    %v2141 = vunpack.c.l.b16 %v1848
    %v2142 = vunpack.c.h.b16 %v1848
    %v2143 = vunpack.c.l.b16 %v1849
    %v2144 = vunpack.c.l.b16 %v1850
    %v2145 = vunpack.c.h.b16 %v1850
    %v2146 = vunpack.c.l.b16 %v1851
    %v2147 = vunpack.c.l.b16 %v1852
    %v2148 = vunpack.c.h.b16 %v1852
    %v2149 = vunpack.c.l.b16 %v1853
    %v2150 = vunpack.c.l.b16 %v1854
    %v2151 = vunpack.c.h.b16 %v1854
    %v2152 = vunpack.c.l.b16 %v1855
    %v2153 = vunpack.c.l.b16 %v1856
    %v2154 = vunpack.c.h.b16 %v1856
    %v2155 = vunpack.c.l.b16 %v1857
    %v2156 = vunpack.c.l.b16 %v1858
    %v2157 = vunpack.c.h.b16 %v1858
    %v2158 = vunpack.c.l.b16 %v1859
    %v2159 = vunpack.c.l.b16 %v1860
    %v2160 = vunpack.c.h.b16 %v1860
    %v2161 = vunpack.c.l.b16 %v1861
    %v2162 = vunpack.c.l.b16 %v1862
    %v2163 = vunpack.c.h.b16 %v1862
    %v2164 = vunpack.c.l.b16 %v1863
    %v2165 = vunpack.c.l.b16 %v1864
    %v2166 = vunpack.c.h.b16 %v1864
    %v2167 = vunpack.c.l.b16 %v1865
    %v2168 = vunpack.c.l.b16 %v1866
    %v2169 = vunpack.c.h.b16 %v1866
    %v2170 = vunpack.c.l.b16 %v1867
    %v2171 = vunpack.c.l.b16 %v1868
    %v2172 = vunpack.c.h.b16 %v1868
    %v2173 = vunpack.c.l.b16 %v1869
    %v2174 = vunpack.c.l.b16 %v1870
    %v2175 = vunpack.c.h.b16 %v1870
    %v2176 = vunpack.c.l.b16 %v1871
    %v2177 = vunpack.c.l.b16 %v1872
    %v2178 = vunpack.c.h.b16 %v1872
    %v2179 = vunpack.c.l.b16 %v1873
    %v2180 = vunpack.c.l.b16 %v1874
    %v2181 = vunpack.c.h.b16 %v1874
    %v2182 = vunpack.c.l.b16 %v1875
    %v2183 = vunpack.c.l.b16 %v1876
    %v2184 = vunpack.c.h.b16 %v1876
    %v2185 = vunpack.c.l.b16 %v1877
    %v2186 = vunpack.c.l.b16 %v1878
    %v2187 = vunpack.c.h.b16 %v1878
    %v2188 = vunpack.c.l.b16 %v1879
    %v2189 = vunpack.c.l.b16 %v1880
    %v2190 = vunpack.c.h.b16 %v1880
    %v2191 = vunpack.c.l.b16 %v1881
    %v2192 = vunpack.c.l.b16 %v1882
    %v2193 = vunpack.c.h.b16 %v1882
    %v2194 = vunpack.c.l.b16 %v1883
    %v2195 = vunpack.c.l.b16 %v1884
    %v2196 = vunpack.c.h.b16 %v1884
    %v2197 = vunpack.c.l.b16 %v1885
    %v2198 = vunpack.c.l.b16 %v1886
    %v2199 = vunpack.c.h.b16 %v1886
    %v2200 = vunpack.c.l.b16 %v1887
    %v2201 = vunpack.c.l.b16 %v1888
    %v2202 = vunpack.c.h.b16 %v1888
    %v2203 = vunpack.c.l.b16 %v1889
    %v2204 = vunpack.c.l.b16 %v1890
    %v2205 = vunpack.c.h.b16 %v1890
    %v2206 = vunpack.c.l.b16 %v1891
    %v2207 = vunpack.c.l.b16 %v1892
    %v2208 = vunpack.c.h.b16 %v1892
    %v2209 = vunpack.c.l.b16 %v1893
    %v2210 = vunpack.c.l.b16 %v1894
    %v2211 = vunpack.c.h.b16 %v1894
    %v2212 = vunpack.c.l.b16 %v1895
    %v2213 = vunpack.c.l.b16 %v1896
    %v2214 = vunpack.c.h.b16 %v1896
    %v2215 = vunpack.c.l.b16 %v1897
    %v2216 = vunpack.c.l.b16 %v1898
    %v2217 = vunpack.c.h.b16 %v1898
    %v2218 = vunpack.c.l.b16 %v1899
    %v2219 = vunpack.c.l.b16 %v1900
    %v2220 = vunpack.c.h.b16 %v1900
    %v2221 = vunpack.c.l.b16 %v1901
    %v2222 = vpack.c.b16 %v2033, %v2030
    %v2223 = vpack.c.b16 %v2034, %v2031
    %v2224 = vpack.c.b16 %v2035, %v2032
    %v2225 = vpack.c.b16 %v2039, %v2036
    %v2226 = vpack.c.b16 %v2040, %v2037
    %v2227 = vpack.c.b16 %v2041, %v2038
    %v2228 = vpack.c.b16 %v2045, %v2042
    %v2229 = vpack.c.b16 %v2046, %v2043
    %v2230 = vpack.c.b16 %v2047, %v2044
    %v2231 = vpack.c.b16 %v2051, %v2048
    %v2232 = vpack.c.b16 %v2052, %v2049
    %v2233 = vpack.c.b16 %v2053, %v2050
    %v2234 = vpack.c.b16 %v2057, %v2054
    %v2235 = vpack.c.b16 %v2058, %v2055
    %v2236 = vpack.c.b16 %v2059, %v2056
    %v2237 = vpack.c.b16 %v2063, %v2060
    %v2238 = vpack.c.b16 %v2064, %v2061
    %v2239 = vpack.c.b16 %v2065, %v2062
    %v2240 = vpack.c.b16 %v2069, %v2066
    %v2241 = vpack.c.b16 %v2070, %v2067
    %v2242 = vpack.c.b16 %v2071, %v2068
    %v2243 = vpack.c.b16 %v2075, %v2072
    %v2244 = vpack.c.b16 %v2076, %v2073
    %v2245 = vpack.c.b16 %v2077, %v2074
    %v2246 = vpack.c.b16 %v2081, %v2078
    %v2247 = vpack.c.b16 %v2082, %v2079
    %v2248 = vpack.c.b16 %v2083, %v2080
    %v2249 = vpack.c.b16 %v2087, %v2084
    %v2250 = vpack.c.b16 %v2088, %v2085
    %v2251 = vpack.c.b16 %v2089, %v2086
    %v2252 = vpack.c.b16 %v2093, %v2090
    %v2253 = vpack.c.b16 %v2094, %v2091
    %v2254 = vpack.c.b16 %v2095, %v2092
    %v2255 = vpack.c.b16 %v2099, %v2096
    %v2256 = vpack.c.b16 %v2100, %v2097
    %v2257 = vpack.c.b16 %v2101, %v2098
    %v2258 = vpack.c.b16 %v2105, %v2102
    %v2259 = vpack.c.b16 %v2106, %v2103
    %v2260 = vpack.c.b16 %v2107, %v2104
    %v2261 = vpack.c.b16 %v2111, %v2108
    %v2262 = vpack.c.b16 %v2112, %v2109
    %v2263 = vpack.c.b16 %v2113, %v2110
    %v2264 = vpack.c.b16 %v2117, %v2114
    %v2265 = vpack.c.b16 %v2118, %v2115
    %v2266 = vpack.c.b16 %v2119, %v2116
    %v2267 = vpack.c.b16 %v2123, %v2120
    %v2268 = vpack.c.b16 %v2124, %v2121
    %v2269 = vpack.c.b16 %v2125, %v2122
    %v2270 = vpack.c.b16 %v2129, %v2126
    %v2271 = vpack.c.b16 %v2130, %v2127
    %v2272 = vpack.c.b16 %v2131, %v2128
    %v2273 = vpack.c.b16 %v2135, %v2132
    %v2274 = vpack.c.b16 %v2136, %v2133
    %v2275 = vpack.c.b16 %v2137, %v2134
    %v2276 = vpack.c.b16 %v2141, %v2138
    %v2277 = vpack.c.b16 %v2142, %v2139
    %v2278 = vpack.c.b16 %v2143, %v2140
    %v2279 = vpack.c.b16 %v2147, %v2144
    %v2280 = vpack.c.b16 %v2148, %v2145
    %v2281 = vpack.c.b16 %v2149, %v2146
    %v2282 = vpack.c.b16 %v2153, %v2150
    %v2283 = vpack.c.b16 %v2154, %v2151
    %v2284 = vpack.c.b16 %v2155, %v2152
    %v2285 = vpack.c.b16 %v2159, %v2156
    %v2286 = vpack.c.b16 %v2160, %v2157
    %v2287 = vpack.c.b16 %v2161, %v2158
    %v2288 = vpack.c.b16 %v2165, %v2162
    %v2289 = vpack.c.b16 %v2166, %v2163
    %v2290 = vpack.c.b16 %v2167, %v2164
    %v2291 = vpack.c.b16 %v2171, %v2168
    %v2292 = vpack.c.b16 %v2172, %v2169
    %v2293 = vpack.c.b16 %v2173, %v2170
    %v2294 = vpack.c.b16 %v2177, %v2174
    %v2295 = vpack.c.b16 %v2178, %v2175
    %v2296 = vpack.c.b16 %v2179, %v2176
    %v2297 = vpack.c.b16 %v2183, %v2180
    %v2298 = vpack.c.b16 %v2184, %v2181
    %v2299 = vpack.c.b16 %v2185, %v2182
    %v2300 = vpack.c.b16 %v2189, %v2186
    %v2301 = vpack.c.b16 %v2190, %v2187
    %v2302 = vpack.c.b16 %v2191, %v2188
    %v2303 = vpack.c.b16 %v2195, %v2192
    %v2304 = vpack.c.b16 %v2196, %v2193
    %v2305 = vpack.c.b16 %v2197, %v2194
    %v2306 = vpack.c.b16 %v2201, %v2198
    %v2307 = vpack.c.b16 %v2202, %v2199
    %v2308 = vpack.c.b16 %v2203, %v2200
    %v2309 = vpack.c.b16 %v2207, %v2204
    %v2310 = vpack.c.b16 %v2208, %v2205
    %v2311 = vpack.c.b16 %v2209, %v2206
    %v2312 = vpack.c.b16 %v2213, %v2210
    %v2313 = vpack.c.b16 %v2214, %v2211
    %v2314 = vpack.c.b16 %v2215, %v2212
    %v2315 = vpack.c.b16 %v2219, %v2216
    %v2316 = vpack.c.b16 %v2220, %v2217
    %v2317 = vpack.c.b16 %v2221, %v2218
    %2414 = vmatprep.subr.bf16.mxu0 %v2223
    %2415 = vmatpush1.bf16.msra.mxu0 %v2222
    %2416 = vmatprep.subr.bf16.mxu0 %v2226
    %2417 = vmatpush1.bf16.msra.mxu0 %v2225
    %2418 = vmatprep.subr.bf16.mxu0 %v2229
    %2419 = vmatpush1.bf16.msra.mxu0 %v2228
    %2420 = vmatprep.subr.bf16.mxu0 %v2232
    %2421 = vmatpush1.bf16.msra.mxu0 %v2231
    %2422 = vmatprep.subr.bf16.mxu0 %v2235
    %2423 = vmatpush1.bf16.msra.mxu0 %v2234
    %2424 = vmatprep.subr.bf16.mxu0 %v2238
    %2425 = vmatpush1.bf16.msra.mxu0 %v2237
    %2426 = vmatprep.subr.bf16.mxu0 %v2241
    %2427 = vmatpush1.bf16.msra.mxu0 %v2240
    %2428 = vmatprep.subr.bf16.mxu0 %v2244
    %2429 = vmatpush1.bf16.msra.mxu0 %v2243
    %2430 = vmatprep.subr.bf16.mxu0 %v2247
    %2431 = vmatpush1.bf16.msra.mxu0 %v2246
    %2432 = vmatprep.subr.bf16.mxu0 %v2250
    %2433 = vmatpush1.bf16.msra.mxu0 %v2249
    %2434 = vmatprep.subr.bf16.mxu0 %v2253
    %2435 = vmatpush1.bf16.msra.mxu0 %v2252
    %2436 = vmatprep.subr.bf16.mxu0 %v2256
    %2437 = vmatpush1.bf16.msra.mxu0 %v2255
    %2438 = vmatprep.subr.bf16.mxu0 %v2259
    %2439 = vmatpush1.bf16.msra.mxu0 %v2258
    %2440 = vmatprep.subr.bf16.mxu0 %v2262
    %2441 = vmatpush1.bf16.msra.mxu0 %v2261
    %2442 = vmatprep.subr.bf16.mxu0 %v2265
    %2443 = vmatpush1.bf16.msra.mxu0 %v2264
    %2444 = vmatprep.subr.bf16.mxu0 %v2268
    %2445 = vmatpush1.bf16.msra.mxu0 %v2267
    %2446 = vmatprep.mubr.bf16.mxu0 %v1771
    %2447 = vmatmul.mubr.bf16.gmra.mrb[0].mxu0 %v1770
    %v2448 = vpop.f32.mrb[0].mxu0
    %v2449 = vadd.f32 0.0, %v2448
    %v2450 = vpop.f32.mrb[0].mxu0
    %v2451 = vadd.f32 0.0, %v2450
    %v2452 = vpop.f32.mrb[0].mxu0
    %v2453 = vadd.f32 0.0, %v2452
    %v2454 = vpop.f32.mrb[0].mxu0
    %v2455 = vadd.f32 0.0, %v2454
    %2456 = vdwg.mxu0
    %2457 = vmatprep.subr.bf16.mxu0 %v2271
    %2458 = vmatpush1.bf16.msra.mxu0 %v2270
    %2459 = vmatprep.subr.bf16.mxu0 %v2274
    %2460 = vmatpush1.bf16.msra.mxu0 %v2273
    %2461 = vmatprep.subr.bf16.mxu0 %v2277
    %2462 = vmatpush1.bf16.msra.mxu0 %v2276
    %2463 = vmatprep.subr.bf16.mxu0 %v2280
    %2464 = vmatpush1.bf16.msra.mxu0 %v2279
    %2465 = vmatprep.subr.bf16.mxu0 %v2283
    %2466 = vmatpush1.bf16.msra.mxu0 %v2282
    %2467 = vmatprep.subr.bf16.mxu0 %v2286
    %2468 = vmatpush1.bf16.msra.mxu0 %v2285
    %2469 = vmatprep.subr.bf16.mxu0 %v2289
    %2470 = vmatpush1.bf16.msra.mxu0 %v2288
    %2471 = vmatprep.subr.bf16.mxu0 %v2292
    %2472 = vmatpush1.bf16.msra.mxu0 %v2291
    %2473 = vmatprep.subr.bf16.mxu0 %v2295
    %2474 = vmatpush1.bf16.msra.mxu0 %v2294
    %2475 = vmatprep.subr.bf16.mxu0 %v2298
    %2476 = vmatpush1.bf16.msra.mxu0 %v2297
    %2477 = vmatprep.subr.bf16.mxu0 %v2301
    %2478 = vmatpush1.bf16.msra.mxu0 %v2300
    %2479 = vmatprep.subr.bf16.mxu0 %v2304
    %2480 = vmatpush1.bf16.msra.mxu0 %v2303
    %2481 = vmatprep.subr.bf16.mxu0 %v2307
    %2482 = vmatpush1.bf16.msra.mxu0 %v2306
    %2483 = vmatprep.subr.bf16.mxu0 %v2310
    %2484 = vmatpush1.bf16.msra.mxu0 %v2309
    %2485 = vmatprep.subr.bf16.mxu0 %v2313
    %2486 = vmatpush1.bf16.msra.mxu0 %v2312
    %2487 = vmatprep.subr.bf16.mxu0 %v2316
    %2488 = vmatpush1.bf16.msra.mxu0 %v2315
    %2489 = vmatprep.mubr.bf16.mxu0 %v1773
    %2490 = vmatmul.mubr.bf16.gmra.mrb[0].mxu0 %v1772
    %v2491 = vpop.f32.mrb[0].mxu0
    %v2492 = vadd.f32 %v2449, %v2491
    %v2493 = vpop.f32.mrb[0].mxu0
    %v2494 = vadd.f32 %v2451, %v2493
    %v2495 = vpop.f32.mrb[0].mxu0
    %v2496 = vadd.f32 %v2453, %v2495
    %v2497 = vpop.f32.mrb[0].mxu0
    %v2498 = vadd.f32 %v2455, %v2497
    %2499 = vdwg.mxu0
    %2500 = vmatprep.subr.bf16.mxu0 0
    %2501 = vmatpush1.bf16.msra.mxu0 %v2224
    %2502 = vmatprep.subr.bf16.mxu0 0
    %2503 = vmatpush1.bf16.msra.mxu0 %v2227
    %2504 = vmatprep.subr.bf16.mxu0 0
    %2505 = vmatpush1.bf16.msra.mxu0 %v2230
    %2506 = vmatprep.subr.bf16.mxu0 0
    %2507 = vmatpush1.bf16.msra.mxu0 %v2233
    %2508 = vmatprep.subr.bf16.mxu0 0
    %2509 = vmatpush1.bf16.msra.mxu0 %v2236
    %2510 = vmatprep.subr.bf16.mxu0 0
    %2511 = vmatpush1.bf16.msra.mxu0 %v2239
    %2512 = vmatprep.subr.bf16.mxu0 0
    %2513 = vmatpush1.bf16.msra.mxu0 %v2242
    %2514 = vmatprep.subr.bf16.mxu0 0
    %2515 = vmatpush1.bf16.msra.mxu0 %v2245
    %2516 = vmatprep.subr.bf16.mxu0 0
    %2517 = vmatpush1.bf16.msra.mxu0 %v2248
    %2518 = vmatprep.subr.bf16.mxu0 0
    %2519 = vmatpush1.bf16.msra.mxu0 %v2251
    %2520 = vmatprep.subr.bf16.mxu0 0
    %2521 = vmatpush1.bf16.msra.mxu0 %v2254
    %2522 = vmatprep.subr.bf16.mxu0 0
    %2523 = vmatpush1.bf16.msra.mxu0 %v2257
    %2524 = vmatprep.subr.bf16.mxu0 0
    %2525 = vmatpush1.bf16.msra.mxu0 %v2260
    %2526 = vmatprep.subr.bf16.mxu0 0
    %2527 = vmatpush1.bf16.msra.mxu0 %v2263
    %2528 = vmatprep.subr.bf16.mxu0 0
    %2529 = vmatpush1.bf16.msra.mxu0 %v2266
    %2530 = vmatprep.subr.bf16.mxu0 0
    %2531 = vmatpush1.bf16.msra.mxu0 %v2269
    %2532 = vmatprep.mubr.bf16.mxu0 %v1771
    %2533 = vmatmul.mubr.bf16.gmra.mrb[0].mxu0 %v1770
    %v2534 = vpop.f32.mrb[0].mxu0
    %v2535 = vadd.f32 0.0, %v2534
    %v2536 = vpop.f32.mrb[0].mxu0
    %v2537 = vpop.f32.mrb[0].mxu0
    %v2538 = vadd.f32 0.0, %v2537
    %v2539 = vpop.f32.mrb[0].mxu0
    %2540 = vdwg.mxu0
    %2541 = vmatprep.subr.bf16.mxu0 0
    %2542 = vmatpush1.bf16.msra.mxu0 %v2272
    %2543 = vmatprep.subr.bf16.mxu0 0
    %2544 = vmatpush1.bf16.msra.mxu0 %v2275
    %2545 = vmatprep.subr.bf16.mxu0 0
    %2546 = vmatpush1.bf16.msra.mxu0 %v2278
    %2547 = vmatprep.subr.bf16.mxu0 0
    %2548 = vmatpush1.bf16.msra.mxu0 %v2281
    %2549 = vmatprep.subr.bf16.mxu0 0
    %2550 = vmatpush1.bf16.msra.mxu0 %v2284
    %2551 = vmatprep.subr.bf16.mxu0 0
    %2552 = vmatpush1.bf16.msra.mxu0 %v2287
    %2553 = vmatprep.subr.bf16.mxu0 0
    %2554 = vmatpush1.bf16.msra.mxu0 %v2290
    %2555 = vmatprep.subr.bf16.mxu0 0
    %2556 = vmatpush1.bf16.msra.mxu0 %v2293
    %2557 = vmatprep.subr.bf16.mxu0 0
    %2558 = vmatpush1.bf16.msra.mxu0 %v2296
    %2559 = vmatprep.subr.bf16.mxu0 0
    %2560 = vmatpush1.bf16.msra.mxu0 %v2299
    %2561 = vmatprep.subr.bf16.mxu0 0
    %2562 = vmatpush1.bf16.msra.mxu0 %v2302
    %2563 = vmatprep.subr.bf16.mxu0 0
    %2564 = vmatpush1.bf16.msra.mxu0 %v2305
    %2565 = vmatprep.subr.bf16.mxu0 0
    %2566 = vmatpush1.bf16.msra.mxu0 %v2308
    %2567 = vmatprep.subr.bf16.mxu0 0
    %2568 = vmatpush1.bf16.msra.mxu0 %v2311
    %2569 = vmatprep.subr.bf16.mxu0 0
    %2570 = vmatpush1.bf16.msra.mxu0 %v2314
    %2571 = vmatprep.subr.bf16.mxu0 0
    %2572 = vmatpush1.bf16.msra.mxu0 %v2317
    %2573 = vmatprep.mubr.bf16.mxu0 %v1773
    %2574 = vmatmul.mubr.bf16.gmra.mrb[0].mxu0 %v1772
    %v2575 = vpop.f32.mrb[0].mxu0
    %v2576 = vadd.f32 %v2535, %v2575
    %v2577 = vpop.f32.mrb[0].mxu0
    %v2578 = vpop.f32.mrb[0].mxu0
    %v2579 = vadd.f32 %v2538, %v2578
    %v2580 = vpop.f32.mrb[0].mxu0
    %2581 = vdwg.mxu0
    %v2710 = vunpack.c.l.b16 %v858
    %v2711 = vunpack.c.h.b16 %v858
    %v2712 = vunpack.c.l.b16 %v859
    %v2713 = vunpack.c.l.b16 %v860
    %v2714 = vunpack.c.h.b16 %v860
    %v2715 = vunpack.c.l.b16 %v861
    %v2716 = vunpack.c.l.b16 %v862
    %v2717 = vunpack.c.h.b16 %v862
    %v2718 = vunpack.c.l.b16 %v863
    %v2719 = vunpack.c.l.b16 %v864
    %v2720 = vunpack.c.h.b16 %v864
    %v2721 = vunpack.c.l.b16 %v865
    %v2722 = vunpack.c.l.b16 %v866
    %v2723 = vunpack.c.h.b16 %v866
    %v2724 = vunpack.c.l.b16 %v867
    %v2725 = vunpack.c.l.b16 %v868
    %v2726 = vunpack.c.h.b16 %v868
    %v2727 = vunpack.c.l.b16 %v869
    %v2728 = vunpack.c.l.b16 %v870
    %v2729 = vunpack.c.h.b16 %v870
    %v2730 = vunpack.c.l.b16 %v871
    %v2731 = vunpack.c.l.b16 %v872
    %v2732 = vunpack.c.h.b16 %v872
    %v2733 = vunpack.c.l.b16 %v873
    %v2734 = vunpack.c.l.b16 %v874
    %v2735 = vunpack.c.h.b16 %v874
    %v2736 = vunpack.c.l.b16 %v875
    %v2737 = vunpack.c.l.b16 %v876
    %v2738 = vunpack.c.h.b16 %v876
    %v2739 = vunpack.c.l.b16 %v877
    %v2740 = vunpack.c.l.b16 %v878
    %v2741 = vunpack.c.h.b16 %v878
    %v2742 = vunpack.c.l.b16 %v879
    %v2743 = vunpack.c.l.b16 %v880
    %v2744 = vunpack.c.h.b16 %v880
    %v2745 = vunpack.c.l.b16 %v881
    %v2746 = vunpack.c.l.b16 %v882
    %v2747 = vunpack.c.h.b16 %v882
    %v2748 = vunpack.c.l.b16 %v883
    %v2749 = vunpack.c.l.b16 %v884
    %v2750 = vunpack.c.h.b16 %v884
    %v2751 = vunpack.c.l.b16 %v885
    %v2752 = vunpack.c.l.b16 %v886
    %v2753 = vunpack.c.h.b16 %v886
    %v2754 = vunpack.c.l.b16 %v887
    %v2755 = vunpack.c.l.b16 %v888
    %v2756 = vunpack.c.h.b16 %v888
    %v2757 = vunpack.c.l.b16 %v889
    %v2758 = vunpack.c.l.b16 %v890
    %v2759 = vunpack.c.h.b16 %v890
    %v2760 = vunpack.c.l.b16 %v891
    %v2761 = vunpack.c.l.b16 %v892
    %v2762 = vunpack.c.h.b16 %v892
    %v2763 = vunpack.c.l.b16 %v893
    %v2764 = vunpack.c.l.b16 %v894
    %v2765 = vunpack.c.h.b16 %v894
    %v2766 = vunpack.c.l.b16 %v895
    %v2767 = vunpack.c.l.b16 %v896
    %v2768 = vunpack.c.h.b16 %v896
    %v2769 = vunpack.c.l.b16 %v897
    %v2770 = vunpack.c.l.b16 %v898
    %v2771 = vunpack.c.h.b16 %v898
    %v2772 = vunpack.c.l.b16 %v899
    %v2773 = vunpack.c.l.b16 %v900
    %v2774 = vunpack.c.h.b16 %v900
    %v2775 = vunpack.c.l.b16 %v901
    %v2776 = vunpack.c.l.b16 %v902
    %v2777 = vunpack.c.h.b16 %v902
    %v2778 = vunpack.c.l.b16 %v903
    %v2779 = vunpack.c.l.b16 %v904
    %v2780 = vunpack.c.h.b16 %v904
    %v2781 = vunpack.c.l.b16 %v905
    %v2782 = vunpack.c.l.b16 %v906
    %v2783 = vunpack.c.h.b16 %v906
    %v2784 = vunpack.c.l.b16 %v907
    %v2785 = vunpack.c.l.b16 %v908
    %v2786 = vunpack.c.h.b16 %v908
    %v2787 = vunpack.c.l.b16 %v909
    %v2788 = vunpack.c.l.b16 %v910
    %v2789 = vunpack.c.h.b16 %v910
    %v2790 = vunpack.c.l.b16 %v911
    %v2791 = vunpack.c.l.b16 %v912
    %v2792 = vunpack.c.h.b16 %v912
    %v2793 = vunpack.c.l.b16 %v913
    %v2794 = vunpack.c.l.b16 %v914
    %v2795 = vunpack.c.h.b16 %v914
    %v2796 = vunpack.c.l.b16 %v915
    %v2797 = vunpack.c.l.b16 %v916
    %v2798 = vunpack.c.h.b16 %v916
    %v2799 = vunpack.c.l.b16 %v917
    %v2800 = vunpack.c.l.b16 %v918
    %v2801 = vunpack.c.h.b16 %v918
    %v2802 = vunpack.c.l.b16 %v919
    %v2803 = vunpack.c.l.b16 %v920
    %v2804 = vunpack.c.h.b16 %v920
    %v2805 = vunpack.c.l.b16 %v921
    %v2806 = vunpack.c.l.b16 %v922
    %v2807 = vunpack.c.h.b16 %v922
    %v2808 = vunpack.c.l.b16 %v923
    %v2809 = vunpack.c.l.b16 %v924
    %v2810 = vunpack.c.h.b16 %v924
    %v2811 = vunpack.c.l.b16 %v925
    %v2812 = vunpack.c.l.b16 %v926
    %v2813 = vunpack.c.h.b16 %v926
    %v2814 = vunpack.c.l.b16 %v927
    %v2815 = vunpack.c.l.b16 %v928
    %v2816 = vunpack.c.h.b16 %v928
    %v2817 = vunpack.c.l.b16 %v929
    %v2818 = vunpack.c.l.b16 %v930
    %v2819 = vunpack.c.h.b16 %v930
    %v2820 = vunpack.c.l.b16 %v931
    %v2821 = vunpack.c.l.b16 %v932
    %v2822 = vunpack.c.h.b16 %v932
    %v2823 = vunpack.c.l.b16 %v933
    %v2824 = vunpack.c.l.b16 %v934
    %v2825 = vunpack.c.h.b16 %v934
    %v2826 = vunpack.c.l.b16 %v935
    %v2827 = vunpack.c.l.b16 %v936
    %v2828 = vunpack.c.h.b16 %v936
    %v2829 = vunpack.c.l.b16 %v937
    %v2830 = vunpack.c.l.b16 %v938
    %v2831 = vunpack.c.h.b16 %v938
    %v2832 = vunpack.c.l.b16 %v939
    %v2833 = vunpack.c.l.b16 %v940
    %v2834 = vunpack.c.h.b16 %v940
    %v2835 = vunpack.c.l.b16 %v941
    %v2836 = vunpack.c.l.b16 %v942
    %v2837 = vunpack.c.h.b16 %v942
    %v2838 = vunpack.c.l.b16 %v943
    %v2839 = vunpack.c.l.b16 %v944
    %v2840 = vunpack.c.h.b16 %v944
    %v2841 = vunpack.c.l.b16 %v945
    %v2842 = vunpack.c.l.b16 %v946
    %v2843 = vunpack.c.h.b16 %v946
    %v2844 = vunpack.c.l.b16 %v947
    %v2845 = vunpack.c.l.b16 %v948
    %v2846 = vunpack.c.h.b16 %v948
    %v2847 = vunpack.c.l.b16 %v949
    %v2848 = vunpack.c.l.b16 %v950
    %v2849 = vunpack.c.h.b16 %v950
    %v2850 = vunpack.c.l.b16 %v951
    %v2851 = vunpack.c.l.b16 %v952
    %v2852 = vunpack.c.h.b16 %v952
    %v2853 = vunpack.c.l.b16 %v953
    %v2854 = vunpack.c.l.b16 %v954
    %v2855 = vunpack.c.h.b16 %v954
    %v2856 = vunpack.c.l.b16 %v955
    %v2857 = vunpack.c.l.b16 %v956
    %v2858 = vunpack.c.h.b16 %v956
    %v2859 = vunpack.c.l.b16 %v957
    %v2860 = vunpack.c.l.b16 %v958
    %v2861 = vunpack.c.h.b16 %v958
    %v2862 = vunpack.c.l.b16 %v959
    %v2863 = vunpack.c.l.b16 %v960
    %v2864 = vunpack.c.h.b16 %v960
    %v2865 = vunpack.c.l.b16 %v961
    %v2866 = vunpack.c.l.b16 %v962
    %v2867 = vunpack.c.h.b16 %v962
    %v2868 = vunpack.c.l.b16 %v963
    %v2869 = vunpack.c.l.b16 %v964
    %v2870 = vunpack.c.h.b16 %v964
    %v2871 = vunpack.c.l.b16 %v965
    %v2872 = vunpack.c.l.b16 %v966
    %v2873 = vunpack.c.h.b16 %v966
    %v2874 = vunpack.c.l.b16 %v967
    %v2875 = vunpack.c.l.b16 %v968
    %v2876 = vunpack.c.h.b16 %v968
    %v2877 = vunpack.c.l.b16 %v969
    %v2878 = vunpack.c.l.b16 %v970
    %v2879 = vunpack.c.h.b16 %v970
    %v2880 = vunpack.c.l.b16 %v971
    %v2881 = vunpack.c.l.b16 %v972
    %v2882 = vunpack.c.h.b16 %v972
    %v2883 = vunpack.c.l.b16 %v973
    %v2884 = vunpack.c.l.b16 %v974
    %v2885 = vunpack.c.h.b16 %v974
    %v2886 = vunpack.c.l.b16 %v975
    %v2887 = vunpack.c.l.b16 %v976
    %v2888 = vunpack.c.h.b16 %v976
    %v2889 = vunpack.c.l.b16 %v977
    %v2890 = vunpack.c.l.b16 %v978
    %v2891 = vunpack.c.h.b16 %v978
    %v2892 = vunpack.c.l.b16 %v979
    %v2893 = vunpack.c.l.b16 %v980
    %v2894 = vunpack.c.h.b16 %v980
    %v2895 = vunpack.c.l.b16 %v981
    %v2896 = vunpack.c.l.b16 %v982
    %v2897 = vunpack.c.h.b16 %v982
    %v2898 = vunpack.c.l.b16 %v983
    %v2899 = vunpack.c.l.b16 %v984
    %v2900 = vunpack.c.h.b16 %v984
    %v2901 = vunpack.c.l.b16 %v985
    %v2902 = vpack.c.b16 %v2713, %v2710
    %v2903 = vpack.c.b16 %v2714, %v2711
    %v2904 = vpack.c.b16 %v2715, %v2712
    %v2905 = vpack.c.b16 %v2719, %v2716
    %v2906 = vpack.c.b16 %v2720, %v2717
    %v2907 = vpack.c.b16 %v2721, %v2718
    %v2908 = vpack.c.b16 %v2725, %v2722
    %v2909 = vpack.c.b16 %v2726, %v2723
    %v2910 = vpack.c.b16 %v2727, %v2724
    %v2911 = vpack.c.b16 %v2731, %v2728
    %v2912 = vpack.c.b16 %v2732, %v2729
    %v2913 = vpack.c.b16 %v2733, %v2730
    %v2914 = vpack.c.b16 %v2737, %v2734
    %v2915 = vpack.c.b16 %v2738, %v2735
    %v2916 = vpack.c.b16 %v2739, %v2736
    %v2917 = vpack.c.b16 %v2743, %v2740
    %v2918 = vpack.c.b16 %v2744, %v2741
    %v2919 = vpack.c.b16 %v2745, %v2742
    %v2920 = vpack.c.b16 %v2749, %v2746
    %v2921 = vpack.c.b16 %v2750, %v2747
    %v2922 = vpack.c.b16 %v2751, %v2748
    %v2923 = vpack.c.b16 %v2755, %v2752
    %v2924 = vpack.c.b16 %v2756, %v2753
    %v2925 = vpack.c.b16 %v2757, %v2754
    %v2926 = vpack.c.b16 %v2761, %v2758
    %v2927 = vpack.c.b16 %v2762, %v2759
    %v2928 = vpack.c.b16 %v2763, %v2760
    %v2929 = vpack.c.b16 %v2767, %v2764
    %v2930 = vpack.c.b16 %v2768, %v2765
    %v2931 = vpack.c.b16 %v2769, %v2766
    %v2932 = vpack.c.b16 %v2773, %v2770
    %v2933 = vpack.c.b16 %v2774, %v2771
    %v2934 = vpack.c.b16 %v2775, %v2772
    %v2935 = vpack.c.b16 %v2779, %v2776
    %v2936 = vpack.c.b16 %v2780, %v2777
    %v2937 = vpack.c.b16 %v2781, %v2778
    %v2938 = vpack.c.b16 %v2785, %v2782
    %v2939 = vpack.c.b16 %v2786, %v2783
    %v2940 = vpack.c.b16 %v2787, %v2784
    %v2941 = vpack.c.b16 %v2791, %v2788
    %v2942 = vpack.c.b16 %v2792, %v2789
    %v2943 = vpack.c.b16 %v2793, %v2790
    %v2944 = vpack.c.b16 %v2797, %v2794
    %v2945 = vpack.c.b16 %v2798, %v2795
    %v2946 = vpack.c.b16 %v2799, %v2796
    %v2947 = vpack.c.b16 %v2803, %v2800
    %v2948 = vpack.c.b16 %v2804, %v2801
    %v2949 = vpack.c.b16 %v2805, %v2802
    %v2950 = vpack.c.b16 %v2809, %v2806
    %v2951 = vpack.c.b16 %v2810, %v2807
    %v2952 = vpack.c.b16 %v2811, %v2808
    %v2953 = vpack.c.b16 %v2815, %v2812
    %v2954 = vpack.c.b16 %v2816, %v2813
    %v2955 = vpack.c.b16 %v2817, %v2814
    %v2956 = vpack.c.b16 %v2821, %v2818
    %v2957 = vpack.c.b16 %v2822, %v2819
    %v2958 = vpack.c.b16 %v2823, %v2820
    %v2959 = vpack.c.b16 %v2827, %v2824
    %v2960 = vpack.c.b16 %v2828, %v2825
    %v2961 = vpack.c.b16 %v2829, %v2826
    %v2962 = vpack.c.b16 %v2833, %v2830
    %v2963 = vpack.c.b16 %v2834, %v2831
    %v2964 = vpack.c.b16 %v2835, %v2832
    %v2965 = vpack.c.b16 %v2839, %v2836
    %v2966 = vpack.c.b16 %v2840, %v2837
    %v2967 = vpack.c.b16 %v2841, %v2838
    %v2968 = vpack.c.b16 %v2845, %v2842
    %v2969 = vpack.c.b16 %v2846, %v2843
    %v2970 = vpack.c.b16 %v2847, %v2844
    %v2971 = vpack.c.b16 %v2851, %v2848
    %v2972 = vpack.c.b16 %v2852, %v2849
    %v2973 = vpack.c.b16 %v2853, %v2850
    %v2974 = vpack.c.b16 %v2857, %v2854
    %v2975 = vpack.c.b16 %v2858, %v2855
    %v2976 = vpack.c.b16 %v2859, %v2856
    %v2977 = vpack.c.b16 %v2863, %v2860
    %v2978 = vpack.c.b16 %v2864, %v2861
    %v2979 = vpack.c.b16 %v2865, %v2862
    %v2980 = vpack.c.b16 %v2869, %v2866
    %v2981 = vpack.c.b16 %v2870, %v2867
    %v2982 = vpack.c.b16 %v2871, %v2868
    %v2983 = vpack.c.b16 %v2875, %v2872
    %v2984 = vpack.c.b16 %v2876, %v2873
    %v2985 = vpack.c.b16 %v2877, %v2874
    %v2986 = vpack.c.b16 %v2881, %v2878
    %v2987 = vpack.c.b16 %v2882, %v2879
    %v2988 = vpack.c.b16 %v2883, %v2880
    %v2989 = vpack.c.b16 %v2887, %v2884
    %v2990 = vpack.c.b16 %v2888, %v2885
    %v2991 = vpack.c.b16 %v2889, %v2886
    %v2992 = vpack.c.b16 %v2893, %v2890
    %v2993 = vpack.c.b16 %v2894, %v2891
    %v2994 = vpack.c.b16 %v2895, %v2892
    %v2995 = vpack.c.b16 %v2899, %v2896
    %v2996 = vpack.c.b16 %v2900, %v2897
    %v2997 = vpack.c.b16 %v2901, %v2898
    %3094 = vmatprep.subr.bf16.mxu0 %v2903
    %3095 = vmatpush1.bf16.msra.mxu0 %v2902
    %3096 = vmatprep.subr.bf16.mxu0 %v2906
    %3097 = vmatpush1.bf16.msra.mxu0 %v2905
    %3098 = vmatprep.subr.bf16.mxu0 %v2909
    %3099 = vmatpush1.bf16.msra.mxu0 %v2908
    %3100 = vmatprep.subr.bf16.mxu0 %v2912
    %3101 = vmatpush1.bf16.msra.mxu0 %v2911
    %3102 = vmatprep.subr.bf16.mxu0 %v2915
    %3103 = vmatpush1.bf16.msra.mxu0 %v2914
    %3104 = vmatprep.subr.bf16.mxu0 %v2918
    %3105 = vmatpush1.bf16.msra.mxu0 %v2917
    %3106 = vmatprep.subr.bf16.mxu0 %v2921
    %3107 = vmatpush1.bf16.msra.mxu0 %v2920
    %3108 = vmatprep.subr.bf16.mxu0 %v2924
    %3109 = vmatpush1.bf16.msra.mxu0 %v2923
    %3110 = vmatprep.subr.bf16.mxu0 %v2927
    %3111 = vmatpush1.bf16.msra.mxu0 %v2926
    %3112 = vmatprep.subr.bf16.mxu0 %v2930
    %3113 = vmatpush1.bf16.msra.mxu0 %v2929
    %3114 = vmatprep.subr.bf16.mxu0 %v2933
    %3115 = vmatpush1.bf16.msra.mxu0 %v2932
    %3116 = vmatprep.subr.bf16.mxu0 %v2936
    %3117 = vmatpush1.bf16.msra.mxu0 %v2935
    %3118 = vmatprep.subr.bf16.mxu0 %v2939
    %3119 = vmatpush1.bf16.msra.mxu0 %v2938
    %3120 = vmatprep.subr.bf16.mxu0 %v2942
    %3121 = vmatpush1.bf16.msra.mxu0 %v2941
    %3122 = vmatprep.subr.bf16.mxu0 %v2945
    %3123 = vmatpush1.bf16.msra.mxu0 %v2944
    %3124 = vmatprep.subr.bf16.mxu0 %v2948
    %3125 = vmatpush1.bf16.msra.mxu0 %v2947
    %3126 = vmatprep.mubr.bf16.mxu0 %v855
    %3127 = vmatmul.mubr.bf16.gmra.mrb[0].mxu0 %v854
    %v3128 = vpop.f32.mrb[0].mxu0
    %v3129 = vadd.f32 %v2492, %v3128
    %v3130 = vpop.f32.mrb[0].mxu0
    %v3131 = vadd.f32 %v2494, %v3130
    %v3132 = vpop.f32.mrb[0].mxu0
    %v3133 = vadd.f32 %v2496, %v3132
    %v3134 = vpop.f32.mrb[0].mxu0
    %v3135 = vadd.f32 %v2498, %v3134
    %3136 = vdwg.mxu0
    %3137 = vmatprep.subr.bf16.mxu0 %v2951
    %3138 = vmatpush1.bf16.msra.mxu0 %v2950
    %3139 = vmatprep.subr.bf16.mxu0 %v2954
    %3140 = vmatpush1.bf16.msra.mxu0 %v2953
    %3141 = vmatprep.subr.bf16.mxu0 %v2957
    %3142 = vmatpush1.bf16.msra.mxu0 %v2956
    %3143 = vmatprep.subr.bf16.mxu0 %v2960
    %3144 = vmatpush1.bf16.msra.mxu0 %v2959
    %3145 = vmatprep.subr.bf16.mxu0 %v2963
    %3146 = vmatpush1.bf16.msra.mxu0 %v2962
    %3147 = vmatprep.subr.bf16.mxu0 %v2966
    %3148 = vmatpush1.bf16.msra.mxu0 %v2965
    %3149 = vmatprep.subr.bf16.mxu0 %v2969
    %3150 = vmatpush1.bf16.msra.mxu0 %v2968
    %3151 = vmatprep.subr.bf16.mxu0 %v2972
    %3152 = vmatpush1.bf16.msra.mxu0 %v2971
    %3153 = vmatprep.subr.bf16.mxu0 %v2975
    %3154 = vmatpush1.bf16.msra.mxu0 %v2974
    %3155 = vmatprep.subr.bf16.mxu0 %v2978
    %3156 = vmatpush1.bf16.msra.mxu0 %v2977
    %3157 = vmatprep.subr.bf16.mxu0 %v2981
    %3158 = vmatpush1.bf16.msra.mxu0 %v2980
    %3159 = vmatprep.subr.bf16.mxu0 %v2984
    %3160 = vmatpush1.bf16.msra.mxu0 %v2983
    %3161 = vmatprep.subr.bf16.mxu0 %v2987
    %3162 = vmatpush1.bf16.msra.mxu0 %v2986
    %3163 = vmatprep.subr.bf16.mxu0 %v2990
    %3164 = vmatpush1.bf16.msra.mxu0 %v2989
    %3165 = vmatprep.subr.bf16.mxu0 %v2993
    %3166 = vmatpush1.bf16.msra.mxu0 %v2992
    %3167 = vmatprep.subr.bf16.mxu0 %v2996
    %3168 = vmatpush1.bf16.msra.mxu0 %v2995
    %3169 = vmatprep.mubr.bf16.mxu0 %v857
    %3170 = vmatmul.mubr.bf16.gmra.mrb[0].mxu0 %v856
    %v3171 = vpop.f32.mrb[0].mxu0
    %v3172 = vadd.f32 %v3129, %v3171
    %v3173 = vpop.f32.mrb[0].mxu0
    %v3174 = vadd.f32 %v3131, %v3173
    %v3175 = vpop.f32.mrb[0].mxu0
    %v3176 = vadd.f32 %v3133, %v3175
    %v3177 = vpop.f32.mrb[0].mxu0
    %v3178 = vadd.f32 %v3135, %v3177
    %3179 = vdwg.mxu0
    %3180 = vmatprep.subr.bf16.mxu0 0
    %3181 = vmatpush1.bf16.msra.mxu0 %v2904
    %3182 = vmatprep.subr.bf16.mxu0 0
    %3183 = vmatpush1.bf16.msra.mxu0 %v2907
    %3184 = vmatprep.subr.bf16.mxu0 0
    %3185 = vmatpush1.bf16.msra.mxu0 %v2910
    %3186 = vmatprep.subr.bf16.mxu0 0
    %3187 = vmatpush1.bf16.msra.mxu0 %v2913
    %3188 = vmatprep.subr.bf16.mxu0 0
    %3189 = vmatpush1.bf16.msra.mxu0 %v2916
    %3190 = vmatprep.subr.bf16.mxu0 0
    %3191 = vmatpush1.bf16.msra.mxu0 %v2919
    %3192 = vmatprep.subr.bf16.mxu0 0
    %3193 = vmatpush1.bf16.msra.mxu0 %v2922
    %3194 = vmatprep.subr.bf16.mxu0 0
    %3195 = vmatpush1.bf16.msra.mxu0 %v2925
    %3196 = vmatprep.subr.bf16.mxu0 0
    %3197 = vmatpush1.bf16.msra.mxu0 %v2928
    %3198 = vmatprep.subr.bf16.mxu0 0
    %3199 = vmatpush1.bf16.msra.mxu0 %v2931
    %3200 = vmatprep.subr.bf16.mxu0 0
    %3201 = vmatpush1.bf16.msra.mxu0 %v2934
    %3202 = vmatprep.subr.bf16.mxu0 0
    %3203 = vmatpush1.bf16.msra.mxu0 %v2937
    %3204 = vmatprep.subr.bf16.mxu0 0
    %3205 = vmatpush1.bf16.msra.mxu0 %v2940
    %3206 = vmatprep.subr.bf16.mxu0 0
    %3207 = vmatpush1.bf16.msra.mxu0 %v2943
    %3208 = vmatprep.subr.bf16.mxu0 0
    %3209 = vmatpush1.bf16.msra.mxu0 %v2946
    %3210 = vmatprep.subr.bf16.mxu0 0
    %3211 = vmatpush1.bf16.msra.mxu0 %v2949
    %3212 = vmatprep.mubr.bf16.mxu0 %v855
    %3213 = vmatmul.mubr.bf16.gmra.mrb[0].mxu0 %v854
    %v3214 = vpop.f32.mrb[0].mxu0
    %v3215 = vadd.f32 %v2576, %v3214
    %v3216 = vpop.f32.mrb[0].mxu0
    %v3217 = vpop.f32.mrb[0].mxu0
    %v3218 = vadd.f32 %v2579, %v3217
    %v3219 = vpop.f32.mrb[0].mxu0
    %3220 = vdwg.mxu0
    %3221 = vmatprep.subr.bf16.mxu0 0
    %3222 = vmatpush1.bf16.msra.mxu0 %v2952
    %3223 = vmatprep.subr.bf16.mxu0 0
    %3224 = vmatpush1.bf16.msra.mxu0 %v2955
    %3225 = vmatprep.subr.bf16.mxu0 0
    %3226 = vmatpush1.bf16.msra.mxu0 %v2958
    %3227 = vmatprep.subr.bf16.mxu0 0
    %3228 = vmatpush1.bf16.msra.mxu0 %v2961
    %3229 = vmatprep.subr.bf16.mxu0 0
    %3230 = vmatpush1.bf16.msra.mxu0 %v2964
    %3231 = vmatprep.subr.bf16.mxu0 0
    %3232 = vmatpush1.bf16.msra.mxu0 %v2967
    %3233 = vmatprep.subr.bf16.mxu0 0
    %3234 = vmatpush1.bf16.msra.mxu0 %v2970
    %3235 = vmatprep.subr.bf16.mxu0 0
    %3236 = vmatpush1.bf16.msra.mxu0 %v2973
    %3237 = vmatprep.subr.bf16.mxu0 0
    %3238 = vmatpush1.bf16.msra.mxu0 %v2976
    %3239 = vmatprep.subr.bf16.mxu0 0
    %3240 = vmatpush1.bf16.msra.mxu0 %v2979
    %3241 = vmatprep.subr.bf16.mxu0 0
    %3242 = vmatpush1.bf16.msra.mxu0 %v2982
    %3243 = vmatprep.subr.bf16.mxu0 0
    %3244 = vmatpush1.bf16.msra.mxu0 %v2985
    %3245 = vmatprep.subr.bf16.mxu0 0
    %3246 = vmatpush1.bf16.msra.mxu0 %v2988
    %3247 = vmatprep.subr.bf16.mxu0 0
    %3248 = vmatpush1.bf16.msra.mxu0 %v2991
    %3249 = vmatprep.subr.bf16.mxu0 0
    %3250 = vmatpush1.bf16.msra.mxu0 %v2994
    %3251 = vmatprep.subr.bf16.mxu0 0
    %3252 = vmatpush1.bf16.msra.mxu0 %v2997
    %3253 = vmatprep.mubr.bf16.mxu0 %v857
    %3254 = vmatmul.mubr.bf16.gmra.mrb[0].mxu0 %v856
    %v3255 = vpop.f32.mrb[0].mxu0
    %v3256 = vadd.f32 %v3215, %v3255
    %v3257 = vpop.f32.mrb[0].mxu0
    %v3258 = vpop.f32.mrb[0].mxu0
    %v3259 = vadd.f32 %v3218, %v3258
    %v3260 = vpop.f32.mrb[0].mxu0
    %3261 = vdwg.mxu0
    %v3262 = vld [vmem:[#allocation5 + $0x20] sm:$0xff]
    %v3263 = vld [vmem:[#allocation5 + $0x28] sm:$0xff]
    %v3264 = vld [vmem:[#allocation5 + $0x50] sm:$0xff]
    %v3265 = vld [vmem:[#allocation5 + $0x58] sm:$0xff]
    %v3266 = vld [vmem:[#allocation5 + $0x80] sm:$0xff]
    %v3267 = vld [vmem:[#allocation5 + $0x88] sm:$0xff]
    %v3268 = vld [vmem:[#allocation5 + $0xb0] sm:$0xff]
    %v3269 = vld [vmem:[#allocation5 + $0xb8] sm:$0xff]
    %v3270 = vld [vmem:[#allocation5 + $0xe0] sm:$0xff]
    %v3271 = vld [vmem:[#allocation5 + $0xe8] sm:$0xff]
    %v3272 = vld [vmem:[#allocation5 + $0x110] sm:$0xff]
    %v3273 = vld [vmem:[#allocation5 + $0x118] sm:$0xff]
    %v3274 = vld [vmem:[#allocation5 + $0x140] sm:$0xff]
    %v3275 = vld [vmem:[#allocation5 + $0x148] sm:$0xff]
    %v3276 = vld [vmem:[#allocation5 + $0x170] sm:$0xff]
    %v3277 = vld [vmem:[#allocation5 + $0x178] sm:$0xff]
    %v3278 = vld [vmem:[#allocation5 + $0x1a0] sm:$0xff]
    %v3279 = vld [vmem:[#allocation5 + $0x1a8] sm:$0xff]
    %v3280 = vld [vmem:[#allocation5 + $0x1d0] sm:$0xff]
    %v3281 = vld [vmem:[#allocation5 + $0x1d8] sm:$0xff]
    %v3282 = vld [vmem:[#allocation5 + $0x200] sm:$0xff]
    %v3283 = vld [vmem:[#allocation5 + $0x208] sm:$0xff]
    %v3284 = vld [vmem:[#allocation5 + $0x230] sm:$0xff]
    %v3285 = vld [vmem:[#allocation5 + $0x238] sm:$0xff]
    %v3286 = vld [vmem:[#allocation5 + $0x260] sm:$0xff]
    %v3287 = vld [vmem:[#allocation5 + $0x268] sm:$0xff]
    %v3288 = vld [vmem:[#allocation5 + $0x290] sm:$0xff]
    %v3289 = vld [vmem:[#allocation5 + $0x298] sm:$0xff]
    %v3290 = vld [vmem:[#allocation5 + $0x2c0] sm:$0xff]
    %v3291 = vld [vmem:[#allocation5 + $0x2c8] sm:$0xff]
    %v3292 = vld [vmem:[#allocation5 + $0x2f0] sm:$0xff]
    %v3293 = vld [vmem:[#allocation5 + $0x2f8] sm:$0xff]
    %v3294 = vld [vmem:[#allocation5 + $0x320] sm:$0xff]
    %v3295 = vld [vmem:[#allocation5 + $0x328] sm:$0xff]
    %v3296 = vld [vmem:[#allocation5 + $0x350] sm:$0xff]
    %v3297 = vld [vmem:[#allocation5 + $0x358] sm:$0xff]
    %v3298 = vld [vmem:[#allocation5 + $0x380] sm:$0xff]
    %v3299 = vld [vmem:[#allocation5 + $0x388] sm:$0xff]
    %v3300 = vld [vmem:[#allocation5 + $0x3b0] sm:$0xff]
    %v3301 = vld [vmem:[#allocation5 + $0x3b8] sm:$0xff]
    %v3302 = vld [vmem:[#allocation5 + $0x3e0] sm:$0xff]
    %v3303 = vld [vmem:[#allocation5 + $0x3e8] sm:$0xff]
    %v3304 = vld [vmem:[#allocation5 + $0x410] sm:$0xff]
    %v3305 = vld [vmem:[#allocation5 + $0x418] sm:$0xff]
    %v3306 = vld [vmem:[#allocation5 + $0x440] sm:$0xff]
    %v3307 = vld [vmem:[#allocation5 + $0x448] sm:$0xff]
    %v3308 = vld [vmem:[#allocation5 + $0x470] sm:$0xff]
    %v3309 = vld [vmem:[#allocation5 + $0x478] sm:$0xff]
    %v3310 = vld [vmem:[#allocation5 + $0x4a0] sm:$0xff]
    %v3311 = vld [vmem:[#allocation5 + $0x4a8] sm:$0xff]
    %v3312 = vld [vmem:[#allocation5 + $0x4d0] sm:$0xff]
    %v3313 = vld [vmem:[#allocation5 + $0x4d8] sm:$0xff]
    %v3314 = vld [vmem:[#allocation5 + $0x500] sm:$0xff]
    %v3315 = vld [vmem:[#allocation5 + $0x508] sm:$0xff]
    %v3316 = vld [vmem:[#allocation5 + $0x530] sm:$0xff]
    %v3317 = vld [vmem:[#allocation5 + $0x538] sm:$0xff]
    %v3318 = vld [vmem:[#allocation5 + $0x560] sm:$0xff]
    %v3319 = vld [vmem:[#allocation5 + $0x568] sm:$0xff]
    %v3320 = vld [vmem:[#allocation5 + $0x590] sm:$0xff]
    %v3321 = vld [vmem:[#allocation5 + $0x598] sm:$0xff]
    %v3322 = vld [vmem:[#allocation5 + $0x5c0] sm:$0xff]
    %v3323 = vld [vmem:[#allocation5 + $0x5c8] sm:$0xff]
    %v3324 = vld [vmem:[#allocation5 + $0x5f0] sm:$0xff]
    %v3325 = vld [vmem:[#allocation5 + $0x5f8] sm:$0xff]
    %v3326 = vld [vmem:[#allocation5 + $0x620] sm:$0xff]
    %v3327 = vld [vmem:[#allocation5 + $0x628] sm:$0xff]
    %v3328 = vld [vmem:[#allocation5 + $0x650] sm:$0xff]
    %v3329 = vld [vmem:[#allocation5 + $0x658] sm:$0xff]
    %v3330 = vld [vmem:[#allocation5 + $0x680] sm:$0xff]
    %v3331 = vld [vmem:[#allocation5 + $0x688] sm:$0xff]
    %v3332 = vld [vmem:[#allocation5 + $0x6b0] sm:$0xff]
    %v3333 = vld [vmem:[#allocation5 + $0x6b8] sm:$0xff]
    %v3334 = vld [vmem:[#allocation5 + $0x6e0] sm:$0xff]
    %v3335 = vld [vmem:[#allocation5 + $0x6e8] sm:$0xff]
    %v3336 = vld [vmem:[#allocation5 + $0x710] sm:$0xff]
    %v3337 = vld [vmem:[#allocation5 + $0x718] sm:$0xff]
    %v3338 = vld [vmem:[#allocation5 + $0x740] sm:$0xff]
    %v3339 = vld [vmem:[#allocation5 + $0x748] sm:$0xff]
    %v3340 = vld [vmem:[#allocation5 + $0x770] sm:$0xff]
    %v3341 = vld [vmem:[#allocation5 + $0x778] sm:$0xff]
    %v3342 = vld [vmem:[#allocation5 + $0x7a0] sm:$0xff]
    %v3343 = vld [vmem:[#allocation5 + $0x7a8] sm:$0xff]
    %v3344 = vld [vmem:[#allocation5 + $0x7d0] sm:$0xff]
    %v3345 = vld [vmem:[#allocation5 + $0x7d8] sm:$0xff]
    %v3346 = vld [vmem:[#allocation5 + $0x800] sm:$0xff]
    %v3347 = vld [vmem:[#allocation5 + $0x808] sm:$0xff]
    %v3348 = vld [vmem:[#allocation5 + $0x830] sm:$0xff]
    %v3349 = vld [vmem:[#allocation5 + $0x838] sm:$0xff]
    %v3350 = vld [vmem:[#allocation5 + $0x860] sm:$0xff]
    %v3351 = vld [vmem:[#allocation5 + $0x868] sm:$0xff]
    %v3352 = vld [vmem:[#allocation5 + $0x890] sm:$0xff]
    %v3353 = vld [vmem:[#allocation5 + $0x898] sm:$0xff]
    %v3354 = vld [vmem:[#allocation5 + $0x8c0] sm:$0xff]
    %v3355 = vld [vmem:[#allocation5 + $0x8c8] sm:$0xff]
    %v3356 = vld [vmem:[#allocation5 + $0x8f0] sm:$0xff]
    %v3357 = vld [vmem:[#allocation5 + $0x8f8] sm:$0xff]
    %v3454 = vunpack.c.l.b16 %v3262
    %v3455 = vunpack.c.h.b16 %v3262
    %v3456 = vunpack.c.l.b16 %v3263
    %v3457 = vunpack.c.h.b16 %v3263
    %v3458 = vunpack.c.l.b16 %v3264
    %v3459 = vunpack.c.h.b16 %v3264
    %v3460 = vunpack.c.l.b16 %v3265
    %v3461 = vunpack.c.h.b16 %v3265
    %v3462 = vunpack.c.l.b16 %v3266
    %v3463 = vunpack.c.h.b16 %v3266
    %v3464 = vunpack.c.l.b16 %v3267
    %v3465 = vunpack.c.h.b16 %v3267
    %v3466 = vunpack.c.l.b16 %v3268
    %v3467 = vunpack.c.h.b16 %v3268
    %v3468 = vunpack.c.l.b16 %v3269
    %v3469 = vunpack.c.h.b16 %v3269
    %v3470 = vunpack.c.l.b16 %v3270
    %v3471 = vunpack.c.h.b16 %v3270
    %v3472 = vunpack.c.l.b16 %v3271
    %v3473 = vunpack.c.h.b16 %v3271
    %v3474 = vunpack.c.l.b16 %v3272
    %v3475 = vunpack.c.h.b16 %v3272
    %v3476 = vunpack.c.l.b16 %v3273
    %v3477 = vunpack.c.h.b16 %v3273
    %v3478 = vunpack.c.l.b16 %v3274
    %v3479 = vunpack.c.h.b16 %v3274
    %v3480 = vunpack.c.l.b16 %v3275
    %v3481 = vunpack.c.h.b16 %v3275
    %v3482 = vunpack.c.l.b16 %v3276
    %v3483 = vunpack.c.h.b16 %v3276
    %v3484 = vunpack.c.l.b16 %v3277
    %v3485 = vunpack.c.h.b16 %v3277
    %v3486 = vunpack.c.l.b16 %v3278
    %v3487 = vunpack.c.h.b16 %v3278
    %v3488 = vunpack.c.l.b16 %v3279
    %v3489 = vunpack.c.h.b16 %v3279
    %v3490 = vunpack.c.l.b16 %v3280
    %v3491 = vunpack.c.h.b16 %v3280
    %v3492 = vunpack.c.l.b16 %v3281
    %v3493 = vunpack.c.h.b16 %v3281
    %v3494 = vunpack.c.l.b16 %v3282
    %v3495 = vunpack.c.h.b16 %v3282
    %v3496 = vunpack.c.l.b16 %v3283
    %v3497 = vunpack.c.h.b16 %v3283
    %v3498 = vunpack.c.l.b16 %v3284
    %v3499 = vunpack.c.h.b16 %v3284
    %v3500 = vunpack.c.l.b16 %v3285
    %v3501 = vunpack.c.h.b16 %v3285
    %v3502 = vunpack.c.l.b16 %v3286
    %v3503 = vunpack.c.h.b16 %v3286
    %v3504 = vunpack.c.l.b16 %v3287
    %v3505 = vunpack.c.h.b16 %v3287
    %v3506 = vunpack.c.l.b16 %v3288
    %v3507 = vunpack.c.h.b16 %v3288
    %v3508 = vunpack.c.l.b16 %v3289
    %v3509 = vunpack.c.h.b16 %v3289
    %v3510 = vunpack.c.l.b16 %v3290
    %v3511 = vunpack.c.h.b16 %v3290
    %v3512 = vunpack.c.l.b16 %v3291
    %v3513 = vunpack.c.h.b16 %v3291
    %v3514 = vunpack.c.l.b16 %v3292
    %v3515 = vunpack.c.h.b16 %v3292
    %v3516 = vunpack.c.l.b16 %v3293
    %v3517 = vunpack.c.h.b16 %v3293
    %v3518 = vunpack.c.l.b16 %v3294
    %v3519 = vunpack.c.h.b16 %v3294
    %v3520 = vunpack.c.l.b16 %v3295
    %v3521 = vunpack.c.h.b16 %v3295
    %v3522 = vunpack.c.l.b16 %v3296
    %v3523 = vunpack.c.h.b16 %v3296
    %v3524 = vunpack.c.l.b16 %v3297
    %v3525 = vunpack.c.h.b16 %v3297
    %v3526 = vunpack.c.l.b16 %v3298
    %v3527 = vunpack.c.h.b16 %v3298
    %v3528 = vunpack.c.l.b16 %v3299
    %v3529 = vunpack.c.h.b16 %v3299
    %v3530 = vunpack.c.l.b16 %v3300
    %v3531 = vunpack.c.h.b16 %v3300
    %v3532 = vunpack.c.l.b16 %v3301
    %v3533 = vunpack.c.h.b16 %v3301
    %v3534 = vunpack.c.l.b16 %v3302
    %v3535 = vunpack.c.h.b16 %v3302
    %v3536 = vunpack.c.l.b16 %v3303
    %v3537 = vunpack.c.h.b16 %v3303
    %v3538 = vunpack.c.l.b16 %v3304
    %v3539 = vunpack.c.h.b16 %v3304
    %v3540 = vunpack.c.l.b16 %v3305
    %v3541 = vunpack.c.h.b16 %v3305
    %v3542 = vunpack.c.l.b16 %v3306
    %v3543 = vunpack.c.h.b16 %v3306
    %v3544 = vunpack.c.l.b16 %v3307
    %v3545 = vunpack.c.h.b16 %v3307
    %v3546 = vunpack.c.l.b16 %v3308
    %v3547 = vunpack.c.h.b16 %v3308
    %v3548 = vunpack.c.l.b16 %v3309
    %v3549 = vunpack.c.h.b16 %v3309
    %v3550 = vunpack.c.l.b16 %v3310
    %v3551 = vunpack.c.h.b16 %v3310
    %v3552 = vunpack.c.l.b16 %v3311
    %v3553 = vunpack.c.h.b16 %v3311
    %v3554 = vunpack.c.l.b16 %v3312
    %v3555 = vunpack.c.h.b16 %v3312
    %v3556 = vunpack.c.l.b16 %v3313
    %v3557 = vunpack.c.h.b16 %v3313
    %v3558 = vunpack.c.l.b16 %v3314
    %v3559 = vunpack.c.h.b16 %v3314
    %v3560 = vunpack.c.l.b16 %v3315
    %v3561 = vunpack.c.h.b16 %v3315
    %v3562 = vunpack.c.l.b16 %v3316
    %v3563 = vunpack.c.h.b16 %v3316
    %v3564 = vunpack.c.l.b16 %v3317
    %v3565 = vunpack.c.h.b16 %v3317
    %v3566 = vunpack.c.l.b16 %v3318
    %v3567 = vunpack.c.h.b16 %v3318
    %v3568 = vunpack.c.l.b16 %v3319
    %v3569 = vunpack.c.h.b16 %v3319
    %v3570 = vunpack.c.l.b16 %v3320
    %v3571 = vunpack.c.h.b16 %v3320
    %v3572 = vunpack.c.l.b16 %v3321
    %v3573 = vunpack.c.h.b16 %v3321
    %v3574 = vunpack.c.l.b16 %v3322
    %v3575 = vunpack.c.h.b16 %v3322
    %v3576 = vunpack.c.l.b16 %v3323
    %v3577 = vunpack.c.h.b16 %v3323
    %v3578 = vunpack.c.l.b16 %v3324
    %v3579 = vunpack.c.h.b16 %v3324
    %v3580 = vunpack.c.l.b16 %v3325
    %v3581 = vunpack.c.h.b16 %v3325
    %v3582 = vunpack.c.l.b16 %v3326
    %v3583 = vunpack.c.h.b16 %v3326
    %v3584 = vunpack.c.l.b16 %v3327
    %v3585 = vunpack.c.h.b16 %v3327
    %v3586 = vunpack.c.l.b16 %v3328
    %v3587 = vunpack.c.h.b16 %v3328
    %v3588 = vunpack.c.l.b16 %v3329
    %v3589 = vunpack.c.h.b16 %v3329
    %v3590 = vunpack.c.l.b16 %v3330
    %v3591 = vunpack.c.h.b16 %v3330
    %v3592 = vunpack.c.l.b16 %v3331
    %v3593 = vunpack.c.h.b16 %v3331
    %v3594 = vunpack.c.l.b16 %v3332
    %v3595 = vunpack.c.h.b16 %v3332
    %v3596 = vunpack.c.l.b16 %v3333
    %v3597 = vunpack.c.h.b16 %v3333
    %v3598 = vunpack.c.l.b16 %v3334
    %v3599 = vunpack.c.h.b16 %v3334
    %v3600 = vunpack.c.l.b16 %v3335
    %v3601 = vunpack.c.h.b16 %v3335
    %v3602 = vunpack.c.l.b16 %v3336
    %v3603 = vunpack.c.h.b16 %v3336
    %v3604 = vunpack.c.l.b16 %v3337
    %v3605 = vunpack.c.h.b16 %v3337
    %v3606 = vunpack.c.l.b16 %v3338
    %v3607 = vunpack.c.h.b16 %v3338
    %v3608 = vunpack.c.l.b16 %v3339
    %v3609 = vunpack.c.h.b16 %v3339
    %v3610 = vunpack.c.l.b16 %v3340
    %v3611 = vunpack.c.h.b16 %v3340
    %v3612 = vunpack.c.l.b16 %v3341
    %v3613 = vunpack.c.h.b16 %v3341
    %v3614 = vunpack.c.l.b16 %v3342
    %v3615 = vunpack.c.h.b16 %v3342
    %v3616 = vunpack.c.l.b16 %v3343
    %v3617 = vunpack.c.h.b16 %v3343
    %v3618 = vunpack.c.l.b16 %v3344
    %v3619 = vunpack.c.h.b16 %v3344
    %v3620 = vunpack.c.l.b16 %v3345
    %v3621 = vunpack.c.h.b16 %v3345
    %v3622 = vunpack.c.l.b16 %v3346
    %v3623 = vunpack.c.h.b16 %v3346
    %v3624 = vunpack.c.l.b16 %v3347
    %v3625 = vunpack.c.h.b16 %v3347
    %v3626 = vunpack.c.l.b16 %v3348
    %v3627 = vunpack.c.h.b16 %v3348
    %v3628 = vunpack.c.l.b16 %v3349
    %v3629 = vunpack.c.h.b16 %v3349
    %v3630 = vunpack.c.l.b16 %v3350
    %v3631 = vunpack.c.h.b16 %v3350
    %v3632 = vunpack.c.l.b16 %v3351
    %v3633 = vunpack.c.h.b16 %v3351
    %v3634 = vunpack.c.l.b16 %v3352
    %v3635 = vunpack.c.h.b16 %v3352
    %v3636 = vunpack.c.l.b16 %v3353
    %v3637 = vunpack.c.h.b16 %v3353
    %v3638 = vunpack.c.l.b16 %v3354
    %v3639 = vunpack.c.h.b16 %v3354
    %v3640 = vunpack.c.l.b16 %v3355
    %v3641 = vunpack.c.h.b16 %v3355
    %v3642 = vunpack.c.l.b16 %v3356
    %v3643 = vunpack.c.h.b16 %v3356
    %v3644 = vunpack.c.l.b16 %v3357
    %v3645 = vunpack.c.h.b16 %v3357
    %v3646 = vpack.c.b16 %v3458, %v3454
    %v3647 = vpack.c.b16 %v3459, %v3455
    %v3648 = vpack.c.b16 %v3460, %v3456
    %v3649 = vpack.c.b16 %v3461, %v3457
    %v3650 = vpack.c.b16 %v3466, %v3462
    %v3651 = vpack.c.b16 %v3467, %v3463
    %v3652 = vpack.c.b16 %v3468, %v3464
    %v3653 = vpack.c.b16 %v3469, %v3465
    %v3654 = vpack.c.b16 %v3474, %v3470
    %v3655 = vpack.c.b16 %v3475, %v3471
    %v3656 = vpack.c.b16 %v3476, %v3472
    %v3657 = vpack.c.b16 %v3477, %v3473
    %v3658 = vpack.c.b16 %v3482, %v3478
    %v3659 = vpack.c.b16 %v3483, %v3479
    %v3660 = vpack.c.b16 %v3484, %v3480
    %v3661 = vpack.c.b16 %v3485, %v3481
    %v3662 = vpack.c.b16 %v3490, %v3486
    %v3663 = vpack.c.b16 %v3491, %v3487
    %v3664 = vpack.c.b16 %v3492, %v3488
    %v3665 = vpack.c.b16 %v3493, %v3489
    %v3666 = vpack.c.b16 %v3498, %v3494
    %v3667 = vpack.c.b16 %v3499, %v3495
    %v3668 = vpack.c.b16 %v3500, %v3496
    %v3669 = vpack.c.b16 %v3501, %v3497
    %v3670 = vpack.c.b16 %v3506, %v3502
    %v3671 = vpack.c.b16 %v3507, %v3503
    %v3672 = vpack.c.b16 %v3508, %v3504
    %v3673 = vpack.c.b16 %v3509, %v3505
    %v3674 = vpack.c.b16 %v3514, %v3510
    %v3675 = vpack.c.b16 %v3515, %v3511
    %v3676 = vpack.c.b16 %v3516, %v3512
    %v3677 = vpack.c.b16 %v3517, %v3513
    %v3678 = vpack.c.b16 %v3522, %v3518
    %v3679 = vpack.c.b16 %v3523, %v3519
    %v3680 = vpack.c.b16 %v3524, %v3520
    %v3681 = vpack.c.b16 %v3525, %v3521
    %v3682 = vpack.c.b16 %v3530, %v3526
    %v3683 = vpack.c.b16 %v3531, %v3527
    %v3684 = vpack.c.b16 %v3532, %v3528
    %v3685 = vpack.c.b16 %v3533, %v3529
    %v3686 = vpack.c.b16 %v3538, %v3534
    %v3687 = vpack.c.b16 %v3539, %v3535
    %v3688 = vpack.c.b16 %v3540, %v3536
    %v3689 = vpack.c.b16 %v3541, %v3537
    %v3690 = vpack.c.b16 %v3546, %v3542
    %v3691 = vpack.c.b16 %v3547, %v3543
    %v3692 = vpack.c.b16 %v3548, %v3544
    %v3693 = vpack.c.b16 %v3549, %v3545
    %v3694 = vpack.c.b16 %v3554, %v3550
    %v3695 = vpack.c.b16 %v3555, %v3551
    %v3696 = vpack.c.b16 %v3556, %v3552
    %v3697 = vpack.c.b16 %v3557, %v3553
    %v3698 = vpack.c.b16 %v3562, %v3558
    %v3699 = vpack.c.b16 %v3563, %v3559
    %v3700 = vpack.c.b16 %v3564, %v3560
    %v3701 = vpack.c.b16 %v3565, %v3561
    %v3702 = vpack.c.b16 %v3570, %v3566
    %v3703 = vpack.c.b16 %v3571, %v3567
    %v3704 = vpack.c.b16 %v3572, %v3568
    %v3705 = vpack.c.b16 %v3573, %v3569
    %v3706 = vpack.c.b16 %v3578, %v3574
    %v3707 = vpack.c.b16 %v3579, %v3575
    %v3708 = vpack.c.b16 %v3580, %v3576
    %v3709 = vpack.c.b16 %v3581, %v3577
    %v3710 = vpack.c.b16 %v3586, %v3582
    %v3711 = vpack.c.b16 %v3587, %v3583
    %v3712 = vpack.c.b16 %v3588, %v3584
    %v3713 = vpack.c.b16 %v3589, %v3585
    %v3714 = vpack.c.b16 %v3594, %v3590
    %v3715 = vpack.c.b16 %v3595, %v3591
    %v3716 = vpack.c.b16 %v3596, %v3592
    %v3717 = vpack.c.b16 %v3597, %v3593
    %v3718 = vpack.c.b16 %v3602, %v3598
    %v3719 = vpack.c.b16 %v3603, %v3599
    %v3720 = vpack.c.b16 %v3604, %v3600
    %v3721 = vpack.c.b16 %v3605, %v3601
    %v3722 = vpack.c.b16 %v3610, %v3606
    %v3723 = vpack.c.b16 %v3611, %v3607
    %v3724 = vpack.c.b16 %v3612, %v3608
    %v3725 = vpack.c.b16 %v3613, %v3609
    %v3726 = vpack.c.b16 %v3618, %v3614
    %v3727 = vpack.c.b16 %v3619, %v3615
    %v3728 = vpack.c.b16 %v3620, %v3616
    %v3729 = vpack.c.b16 %v3621, %v3617
    %v3730 = vpack.c.b16 %v3626, %v3622
    %v3731 = vpack.c.b16 %v3627, %v3623
    %v3732 = vpack.c.b16 %v3628, %v3624
    %v3733 = vpack.c.b16 %v3629, %v3625
    %v3734 = vpack.c.b16 %v3634, %v3630
    %v3735 = vpack.c.b16 %v3635, %v3631
    %v3736 = vpack.c.b16 %v3636, %v3632
    %v3737 = vpack.c.b16 %v3637, %v3633
    %v3738 = vpack.c.b16 %v3642, %v3638
    %v3739 = vpack.c.b16 %v3643, %v3639
    %v3740 = vpack.c.b16 %v3644, %v3640
    %v3741 = vpack.c.b16 %v3645, %v3641
    %3838 = vmatprep.subr.bf16.mxu0 %v3647
    %3839 = vmatpush1.bf16.msra.mxu0 %v3646
    %3840 = vmatprep.subr.bf16.mxu0 %v3651
    %3841 = vmatpush1.bf16.msra.mxu0 %v3650
    %3842 = vmatprep.subr.bf16.mxu0 %v3655
    %3843 = vmatpush1.bf16.msra.mxu0 %v3654
    %3844 = vmatprep.subr.bf16.mxu0 %v3659
    %3845 = vmatpush1.bf16.msra.mxu0 %v3658
    %3846 = vmatprep.subr.bf16.mxu0 %v3663
    %3847 = vmatpush1.bf16.msra.mxu0 %v3662
    %3848 = vmatprep.subr.bf16.mxu0 %v3667
    %3849 = vmatpush1.bf16.msra.mxu0 %v3666
    %3850 = vmatprep.subr.bf16.mxu0 %v3671
    %3851 = vmatpush1.bf16.msra.mxu0 %v3670
    %3852 = vmatprep.subr.bf16.mxu0 %v3675
    %3853 = vmatpush1.bf16.msra.mxu0 %v3674
    %3854 = vmatprep.subr.bf16.mxu0 %v3679
    %3855 = vmatpush1.bf16.msra.mxu0 %v3678
    %3856 = vmatprep.subr.bf16.mxu0 %v3683
    %3857 = vmatpush1.bf16.msra.mxu0 %v3682
    %3858 = vmatprep.subr.bf16.mxu0 %v3687
    %3859 = vmatpush1.bf16.msra.mxu0 %v3686
    %3860 = vmatprep.subr.bf16.mxu0 %v3691
    %3861 = vmatpush1.bf16.msra.mxu0 %v3690
    %3862 = vmatprep.subr.bf16.mxu0 %v3695
    %3863 = vmatpush1.bf16.msra.mxu0 %v3694
    %3864 = vmatprep.subr.bf16.mxu0 %v3699
    %3865 = vmatpush1.bf16.msra.mxu0 %v3698
    %3866 = vmatprep.subr.bf16.mxu0 %v3703
    %3867 = vmatpush1.bf16.msra.mxu0 %v3702
    %3868 = vmatprep.subr.bf16.mxu0 %v3707
    %3869 = vmatpush1.bf16.msra.mxu0 %v3706
    %3870 = vmatprep.mubr.bf16.mxu0 %v68
    %3871 = vmatmul.mubr.bf16.gmra.mrb[0].mxu0 %v67
    %v3872 = vpop.f32.mrb[0].mxu0
    %v3873 = vadd.f32 0.0, %v3872
    %v3874 = vpop.f32.mrb[0].mxu0
    %v3875 = vadd.f32 0.0, %v3874
    %v3876 = vpop.f32.mrb[0].mxu0
    %v3877 = vadd.f32 0.0, %v3876
    %v3878 = vpop.f32.mrb[0].mxu0
    %v3879 = vadd.f32 0.0, %v3878
    %3880 = vdwg.mxu0
    %3881 = vmatprep.subr.bf16.mxu0 %v3711
    %3882 = vmatpush1.bf16.msra.mxu0 %v3710
    %3883 = vmatprep.subr.bf16.mxu0 %v3715
    %3884 = vmatpush1.bf16.msra.mxu0 %v3714
    %3885 = vmatprep.subr.bf16.mxu0 %v3719
    %3886 = vmatpush1.bf16.msra.mxu0 %v3718
    %3887 = vmatprep.subr.bf16.mxu0 %v3723
    %3888 = vmatpush1.bf16.msra.mxu0 %v3722
    %3889 = vmatprep.subr.bf16.mxu0 %v3727
    %3890 = vmatpush1.bf16.msra.mxu0 %v3726
    %3891 = vmatprep.subr.bf16.mxu0 %v3731
    %3892 = vmatpush1.bf16.msra.mxu0 %v3730
    %3893 = vmatprep.subr.bf16.mxu0 %v3735
    %3894 = vmatpush1.bf16.msra.mxu0 %v3734
    %3895 = vmatprep.subr.bf16.mxu0 %v3739
    %3896 = vmatpush1.bf16.msra.mxu0 %v3738
    %3897 = vmatprep.subr.bf16.mxu0 0
    %3898 = vmatpush1.bf16.msra.mxu0 0
    %3899 = vmatprep.subr.bf16.mxu0 0
    %3900 = vmatpush1.bf16.msra.mxu0 0
    %3901 = vmatprep.subr.bf16.mxu0 0
    %3902 = vmatpush1.bf16.msra.mxu0 0
    %3903 = vmatprep.subr.bf16.mxu0 0
    %3904 = vmatpush1.bf16.msra.mxu0 0
    %3905 = vmatprep.subr.bf16.mxu0 0
    %3906 = vmatpush1.bf16.msra.mxu0 0
    %3907 = vmatprep.subr.bf16.mxu0 0
    %3908 = vmatpush1.bf16.msra.mxu0 0
    %3909 = vmatprep.subr.bf16.mxu0 0
    %3910 = vmatpush1.bf16.msra.mxu0 0
    %3911 = vmatprep.subr.bf16.mxu0 0
    %3912 = vmatpush1.bf16.msra.mxu0 0
    %3913 = vmatprep.mubr.bf16.mxu0 0
    %3914 = vmatmul.mubr.bf16.gmra.mrb[0].mxu0 %v69
    %v3915 = vpop.f32.mrb[0].mxu0
    %v3916 = vadd.f32 %v3873, %v3915
    %v3917 = vpop.f32.mrb[0].mxu0
    %v3918 = vadd.f32 %v3875, %v3917
    %v3919 = vpop.f32.mrb[0].mxu0
    %v3920 = vadd.f32 %v3877, %v3919
    %v3921 = vpop.f32.mrb[0].mxu0
    %v3922 = vadd.f32 %v3879, %v3921
    %3923 = vdwg.mxu0
    %3924 = vmatprep.subr.bf16.mxu0 %v3649
    %3925 = vmatpush1.bf16.msra.mxu0 %v3648
    %3926 = vmatprep.subr.bf16.mxu0 %v3653
    %3927 = vmatpush1.bf16.msra.mxu0 %v3652
    %3928 = vmatprep.subr.bf16.mxu0 %v3657
    %3929 = vmatpush1.bf16.msra.mxu0 %v3656
    %3930 = vmatprep.subr.bf16.mxu0 %v3661
    %3931 = vmatpush1.bf16.msra.mxu0 %v3660
    %3932 = vmatprep.subr.bf16.mxu0 %v3665
    %3933 = vmatpush1.bf16.msra.mxu0 %v3664
    %3934 = vmatprep.subr.bf16.mxu0 %v3669
    %3935 = vmatpush1.bf16.msra.mxu0 %v3668
    %3936 = vmatprep.subr.bf16.mxu0 %v3673
    %3937 = vmatpush1.bf16.msra.mxu0 %v3672
    %3938 = vmatprep.subr.bf16.mxu0 %v3677
    %3939 = vmatpush1.bf16.msra.mxu0 %v3676
    %3940 = vmatprep.subr.bf16.mxu0 %v3681
    %3941 = vmatpush1.bf16.msra.mxu0 %v3680
    %3942 = vmatprep.subr.bf16.mxu0 %v3685
    %3943 = vmatpush1.bf16.msra.mxu0 %v3684
    %3944 = vmatprep.subr.bf16.mxu0 %v3689
    %3945 = vmatpush1.bf16.msra.mxu0 %v3688
    %3946 = vmatprep.subr.bf16.mxu0 %v3693
    %3947 = vmatpush1.bf16.msra.mxu0 %v3692
    %3948 = vmatprep.subr.bf16.mxu0 %v3697
    %3949 = vmatpush1.bf16.msra.mxu0 %v3696
    %3950 = vmatprep.subr.bf16.mxu0 %v3701
    %3951 = vmatpush1.bf16.msra.mxu0 %v3700
    %3952 = vmatprep.subr.bf16.mxu0 %v3705
    %3953 = vmatpush1.bf16.msra.mxu0 %v3704
    %3954 = vmatprep.subr.bf16.mxu0 %v3709
    %3955 = vmatpush1.bf16.msra.mxu0 %v3708
    %3956 = vmatprep.mubr.bf16.mxu0 %v68
    %3957 = vmatmul.mubr.bf16.gmra.mrb[0].mxu0 %v67
    %v3958 = vpop.f32.mrb[0].mxu0
    %v3959 = vadd.f32 0.0, %v3958
    %v3960 = vpop.f32.mrb[0].mxu0
    %v3961 = vadd.f32 0.0, %v3960
    %v3962 = vpop.f32.mrb[0].mxu0
    %v3963 = vadd.f32 0.0, %v3962
    %v3964 = vpop.f32.mrb[0].mxu0
    %v3965 = vadd.f32 0.0, %v3964
    %3966 = vdwg.mxu0
    %3967 = vmatprep.subr.bf16.mxu0 %v3713
    %3968 = vmatpush1.bf16.msra.mxu0 %v3712
    %3969 = vmatprep.subr.bf16.mxu0 %v3717
    %3970 = vmatpush1.bf16.msra.mxu0 %v3716
    %3971 = vmatprep.subr.bf16.mxu0 %v3721
    %3972 = vmatpush1.bf16.msra.mxu0 %v3720
    %3973 = vmatprep.subr.bf16.mxu0 %v3725
    %3974 = vmatpush1.bf16.msra.mxu0 %v3724
    %3975 = vmatprep.subr.bf16.mxu0 %v3729
    %3976 = vmatpush1.bf16.msra.mxu0 %v3728
    %3977 = vmatprep.subr.bf16.mxu0 %v3733
    %3978 = vmatpush1.bf16.msra.mxu0 %v3732
    %3979 = vmatprep.subr.bf16.mxu0 %v3737
    %3980 = vmatpush1.bf16.msra.mxu0 %v3736
    %3981 = vmatprep.subr.bf16.mxu0 %v3741
    %3982 = vmatpush1.bf16.msra.mxu0 %v3740
    %3983 = vmatprep.subr.bf16.mxu0 0
    %3984 = vmatpush1.bf16.msra.mxu0 0
    %3985 = vmatprep.subr.bf16.mxu0 0
    %3986 = vmatpush1.bf16.msra.mxu0 0
    %3987 = vmatprep.subr.bf16.mxu0 0
    %3988 = vmatpush1.bf16.msra.mxu0 0
    %3989 = vmatprep.subr.bf16.mxu0 0
    %3990 = vmatpush1.bf16.msra.mxu0 0
    %3991 = vmatprep.subr.bf16.mxu0 0
    %3992 = vmatpush1.bf16.msra.mxu0 0
    %3993 = vmatprep.subr.bf16.mxu0 0
    %3994 = vmatpush1.bf16.msra.mxu0 0
    %3995 = vmatprep.subr.bf16.mxu0 0
    %3996 = vmatpush1.bf16.msra.mxu0 0
    %3997 = vmatprep.subr.bf16.mxu0 0
    %3998 = vmatpush1.bf16.msra.mxu0 0
    %3999 = vmatprep.mubr.bf16.mxu0 0
    %4000 = vmatmul.mubr.bf16.gmra.mrb[0].mxu0 %v69
    %v4001 = vpop.f32.mrb[0].mxu0
    %v4002 = vadd.f32 %v3959, %v4001
    %v4003 = vpop.f32.mrb[0].mxu0
    %v4004 = vadd.f32 %v3961, %v4003
    %v4005 = vpop.f32.mrb[0].mxu0
    %v4006 = vadd.f32 %v3963, %v4005
    %v4007 = vpop.f32.mrb[0].mxu0
    %v4008 = vadd.f32 %v3965, %v4007
    %4009 = vdwg.mxu0
    %v4010 = vpack.c.bf16 %v3920, %v3916
    %v4011 = vpack.c.bf16 %v3922, %v3918
    %v4012 = vpack.c.bf16 %v4006, %v4002
    %v4013 = vpack.c.bf16 %v4008, %v4004
    %v4014 = vmul.bf16 %v4010, %v4010
    %v4015 = vmul.bf16 %v4011, %v4011
    %v4016 = vmul.bf16 %v4012, %v4012
    %v4017 = vmul.bf16 %v4013, %v4013
    %v4018 = vmul.bf16 %v4010, %v4014
    %v4019 = vmul.bf16 %v4011, %v4015
    %v4020 = vmul.bf16 %v4012, %v4016
    %v4021 = vmul.bf16 %v4013, %v4017
    %v4022 = vmul.bf16 %v4018, 1027030327
    %v4023 = vmul.bf16 %v4019, 1027030327
    %v4024 = vmul.bf16 %v4020, 1027030327
    %v4025 = vmul.bf16 %v4021, 1027030327
    %v4026 = vadd.bf16 %v4010, %v4022
    %v4027 = vadd.bf16 %v4011, %v4023
    %v4028 = vadd.bf16 %v4012, %v4024
    %v4029 = vadd.bf16 %v4013, %v4025
    %v4030 = vmul.bf16 %v4026, 1061961548
    %v4031 = vmul.bf16 %v4027, 1061961548
    %v4032 = vmul.bf16 %v4028, 1061961548
    %v4033 = vmul.bf16 %v4029, 1061961548
    %v4034 = vtanh.bf16.pop %v4030
    %v4035 = vtanh.bf16.pop %v4031
    %v4036 = vtanh.bf16.pop %v4032
    %v4037 = vtanh.bf16.pop %v4033
    %v4038 = vadd.bf16 %v4034, 1065369472
    %v4039 = vadd.bf16 %v4035, 1065369472
    %v4040 = vadd.bf16 %v4036, 1065369472
    %v4041 = vadd.bf16 %v4037, 1065369472
    %v4042 = vmul.bf16 %v4038, 1056980736
    %v4043 = vmul.bf16 %v4039, 1056980736
    %v4044 = vmul.bf16 %v4040, 1056980736
    %v4045 = vmul.bf16 %v4041, 1056980736
    %v4046 = vmul.bf16 %v4010, %v4042
    %v4047 = vmul.bf16 %v4011, %v4043
    %v4048 = vmul.bf16 %v4012, %v4044
    %v4049 = vmul.bf16 %v4013, %v4045
    %v4050 = vld [vmem:[#allocation7 + $0x600] sm:$0xff]
    %v4051 = vld [vmem:[#allocation7 + $0x608] sm:$0xf]
    %v4052 = vld [vmem:[#allocation7 + $0x60c] sm:$0xff]
    %v4053 = vld [vmem:[#allocation7 + $0x614] sm:$0xf]
    %v4054 = vld [vmem:[#allocation7 + $0x618] sm:$0xff]
    %v4055 = vld [vmem:[#allocation7 + $0x620] sm:$0xf]
    %v4056 = vld [vmem:[#allocation7 + $0x624] sm:$0xff]
    %v4057 = vld [vmem:[#allocation7 + $0x62c] sm:$0xf]
    %v4058 = vld [vmem:[#allocation7 + $0x630] sm:$0xff]
    %v4059 = vld [vmem:[#allocation7 + $0x638] sm:$0xf]
    %v4060 = vld [vmem:[#allocation7 + $0x63c] sm:$0xff]
    %v4061 = vld [vmem:[#allocation7 + $0x644] sm:$0xf]
    %v4062 = vld [vmem:[#allocation7 + $0x648] sm:$0xff]
    %v4063 = vld [vmem:[#allocation7 + $0x650] sm:$0xf]
    %v4064 = vld [vmem:[#allocation7 + $0x654] sm:$0xff]
    %v4065 = vld [vmem:[#allocation7 + $0x65c] sm:$0xf]
    %v4066 = vld [vmem:[#allocation7 + $0x660] sm:$0xff]
    %v4067 = vld [vmem:[#allocation7 + $0x668] sm:$0xf]
    %v4068 = vld [vmem:[#allocation7 + $0x66c] sm:$0xff]
    %v4069 = vld [vmem:[#allocation7 + $0x674] sm:$0xf]
    %v4070 = vld [vmem:[#allocation7 + $0x678] sm:$0xff]
    %v4071 = vld [vmem:[#allocation7 + $0x680] sm:$0xf]
    %v4072 = vld [vmem:[#allocation7 + $0x684] sm:$0xff]
    %v4073 = vld [vmem:[#allocation7 + $0x68c] sm:$0xf]
    %v4074 = vld [vmem:[#allocation7 + $0x690] sm:$0xff]
    %v4075 = vld [vmem:[#allocation7 + $0x698] sm:$0xf]
    %v4076 = vld [vmem:[#allocation7 + $0x69c] sm:$0xff]
    %v4077 = vld [vmem:[#allocation7 + $0x6a4] sm:$0xf]
    %v4078 = vld [vmem:[#allocation7 + $0x6a8] sm:$0xff]
    %v4079 = vld [vmem:[#allocation7 + $0x6b0] sm:$0xf]
    %v4080 = vld [vmem:[#allocation7 + $0x6b4] sm:$0xff]
    %v4081 = vld [vmem:[#allocation7 + $0x6bc] sm:$0xf]
    %v4082 = vld [vmem:[#allocation7 + $0x6c0] sm:$0xff]
    %v4083 = vld [vmem:[#allocation7 + $0x6c8] sm:$0xf]
    %v4084 = vld [vmem:[#allocation7 + $0x6cc] sm:$0xff]
    %v4085 = vld [vmem:[#allocation7 + $0x6d4] sm:$0xf]
    %v4086 = vld [vmem:[#allocation7 + $0x6d8] sm:$0xff]
    %v4087 = vld [vmem:[#allocation7 + $0x6e0] sm:$0xf]
    %v4088 = vld [vmem:[#allocation7 + $0x6e4] sm:$0xff]
    %v4089 = vld [vmem:[#allocation7 + $0x6ec] sm:$0xf]
    %v4090 = vld [vmem:[#allocation7 + $0x6f0] sm:$0xff]
    %v4091 = vld [vmem:[#allocation7 + $0x6f8] sm:$0xf]
    %v4092 = vld [vmem:[#allocation7 + $0x6fc] sm:$0xff]
    %v4093 = vld [vmem:[#allocation7 + $0x704] sm:$0xf]
    %v4094 = vld [vmem:[#allocation7 + $0x708] sm:$0xff]
    %v4095 = vld [vmem:[#allocation7 + $0x710] sm:$0xf]
    %v4096 = vld [vmem:[#allocation7 + $0x714] sm:$0xff]
    %v4097 = vld [vmem:[#allocation7 + $0x71c] sm:$0xf]
    %v4098 = vld [vmem:[#allocation7 + $0x720] sm:$0xff]
    %v4099 = vld [vmem:[#allocation7 + $0x728] sm:$0xf]
    %v4100 = vld [vmem:[#allocation7 + $0x72c] sm:$0xff]
    %v4101 = vld [vmem:[#allocation7 + $0x734] sm:$0xf]
    %v4102 = vld [vmem:[#allocation7 + $0x738] sm:$0xff]
    %v4103 = vld [vmem:[#allocation7 + $0x740] sm:$0xf]
    %v4104 = vld [vmem:[#allocation7 + $0x744] sm:$0xff]
    %v4105 = vld [vmem:[#allocation7 + $0x74c] sm:$0xf]
    %v4106 = vld [vmem:[#allocation7 + $0x750] sm:$0xff]
    %v4107 = vld [vmem:[#allocation7 + $0x758] sm:$0xf]
    %v4108 = vld [vmem:[#allocation7 + $0x75c] sm:$0xff]
    %v4109 = vld [vmem:[#allocation7 + $0x764] sm:$0xf]
    %v4110 = vld [vmem:[#allocation7 + $0x768] sm:$0xff]
    %v4111 = vld [vmem:[#allocation7 + $0x770] sm:$0xf]
    %v4112 = vld [vmem:[#allocation7 + $0x774] sm:$0xff]
    %v4113 = vld [vmem:[#allocation7 + $0x77c] sm:$0xf]
    %v4114 = vld [vmem:[#allocation7 + $0x780] sm:$0xff]
    %v4115 = vld [vmem:[#allocation7 + $0x788] sm:$0xf]
    %v4116 = vld [vmem:[#allocation7 + $0x78c] sm:$0xff]
    %v4117 = vld [vmem:[#allocation7 + $0x794] sm:$0xf]
    %v4118 = vld [vmem:[#allocation7 + $0x798] sm:$0xff]
    %v4119 = vld [vmem:[#allocation7 + $0x7a0] sm:$0xf]
    %v4120 = vld [vmem:[#allocation7 + $0x7a4] sm:$0xff]
    %v4121 = vld [vmem:[#allocation7 + $0x7ac] sm:$0xf]
    %v4122 = vld [vmem:[#allocation7 + $0x7b0] sm:$0xff]
    %v4123 = vld [vmem:[#allocation7 + $0x7b8] sm:$0xf]
    %v4124 = vld [vmem:[#allocation7 + $0x7bc] sm:$0xff]
    %v4125 = vld [vmem:[#allocation7 + $0x7c4] sm:$0xf]
    %v4126 = vld [vmem:[#allocation7 + $0x7c8] sm:$0xff]
    %v4127 = vld [vmem:[#allocation7 + $0x7d0] sm:$0xf]
    %v4128 = vld [vmem:[#allocation7 + $0x7d4] sm:$0xff]
    %v4129 = vld [vmem:[#allocation7 + $0x7dc] sm:$0xf]
    %v4130 = vld [vmem:[#allocation7 + $0x7e0] sm:$0xff]
    %v4131 = vld [vmem:[#allocation7 + $0x7e8] sm:$0xf]
    %v4132 = vld [vmem:[#allocation7 + $0x7ec] sm:$0xff]
    %v4133 = vld [vmem:[#allocation7 + $0x7f4] sm:$0xf]
    %v4134 = vld [vmem:[#allocation7 + $0x7f8] sm:$0xff]
    %v4135 = vld [vmem:[#allocation7 + $0x800] sm:$0xf]
    %v4136 = vld [vmem:[#allocation7 + $0x804] sm:$0xff]
    %v4137 = vld [vmem:[#allocation7 + $0x80c] sm:$0xf]
    %v4138 = vld [vmem:[#allocation7 + $0x810] sm:$0xff]
    %v4139 = vld [vmem:[#allocation7 + $0x818] sm:$0xf]
    %v4140 = vld [vmem:[#allocation7 + $0x81c] sm:$0xff]
    %v4141 = vld [vmem:[#allocation7 + $0x824] sm:$0xf]
    %v4142 = vld [vmem:[#allocation7 + $0x828] sm:$0xff]
    %v4143 = vld [vmem:[#allocation7 + $0x830] sm:$0xf]
    %v4144 = vld [vmem:[#allocation7 + $0x834] sm:$0xff]
    %v4145 = vld [vmem:[#allocation7 + $0x83c] sm:$0xf]
    %v4146 = vld [vmem:[#allocation7 + $0x840] sm:$0xff]
    %v4147 = vld [vmem:[#allocation7 + $0x848] sm:$0xf]
    %v4148 = vld [vmem:[#allocation7 + $0x84c] sm:$0xff]
    %v4149 = vld [vmem:[#allocation7 + $0x854] sm:$0xf]
    %v4150 = vld [vmem:[#allocation7 + $0x858] sm:$0xff]
    %v4151 = vld [vmem:[#allocation7 + $0x860] sm:$0xf]
    %v4152 = vld [vmem:[#allocation7 + $0x864] sm:$0xff]
    %v4153 = vld [vmem:[#allocation7 + $0x86c] sm:$0xf]
    %v4154 = vld [vmem:[#allocation7 + $0x870] sm:$0xff]
    %v4155 = vld [vmem:[#allocation7 + $0x878] sm:$0xf]
    %v4156 = vld [vmem:[#allocation7 + $0x87c] sm:$0xff]
    %v4157 = vld [vmem:[#allocation7 + $0x884] sm:$0xf]
    %v4158 = vld [vmem:[#allocation7 + $0x888] sm:$0xff]
    %v4159 = vld [vmem:[#allocation7 + $0x890] sm:$0xf]
    %v4160 = vld [vmem:[#allocation7 + $0x894] sm:$0xff]
    %v4161 = vld [vmem:[#allocation7 + $0x89c] sm:$0xf]
    %v4162 = vld [vmem:[#allocation7 + $0x8a0] sm:$0xff]
    %v4163 = vld [vmem:[#allocation7 + $0x8a8] sm:$0xf]
    %v4164 = vld [vmem:[#allocation7 + $0x8ac] sm:$0xff]
    %v4165 = vld [vmem:[#allocation7 + $0x8b4] sm:$0xf]
    %v4166 = vld [vmem:[#allocation7 + $0x8b8] sm:$0xff]
    %v4167 = vld [vmem:[#allocation7 + $0x8c0] sm:$0xf]
    %v4168 = vld [vmem:[#allocation7 + $0x8c4] sm:$0xff]
    %v4169 = vld [vmem:[#allocation7 + $0x8cc] sm:$0xf]
    %v4170 = vld [vmem:[#allocation7 + $0x8d0] sm:$0xff]
    %v4171 = vld [vmem:[#allocation7 + $0x8d8] sm:$0xf]
    %v4172 = vld [vmem:[#allocation7 + $0x8dc] sm:$0xff]
    %v4173 = vld [vmem:[#allocation7 + $0x8e4] sm:$0xf]
    %v4174 = vld [vmem:[#allocation7 + $0x8e8] sm:$0xff]
    %v4175 = vld [vmem:[#allocation7 + $0x8f0] sm:$0xf]
    %v4176 = vld [vmem:[#allocation7 + $0x8f4] sm:$0xff]
    %v4177 = vld [vmem:[#allocation7 + $0x8fc] sm:$0xf]
    %v4306 = vunpack.c.l.b16 %v4050
    %v4307 = vunpack.c.h.b16 %v4050
    %v4308 = vunpack.c.l.b16 %v4051
    %v4309 = vunpack.c.l.b16 %v4052
    %v4310 = vunpack.c.h.b16 %v4052
    %v4311 = vunpack.c.l.b16 %v4053
    %v4312 = vunpack.c.l.b16 %v4054
    %v4313 = vunpack.c.h.b16 %v4054
    %v4314 = vunpack.c.l.b16 %v4055
    %v4315 = vunpack.c.l.b16 %v4056
    %v4316 = vunpack.c.h.b16 %v4056
    %v4317 = vunpack.c.l.b16 %v4057
    %v4318 = vunpack.c.l.b16 %v4058
    %v4319 = vunpack.c.h.b16 %v4058
    %v4320 = vunpack.c.l.b16 %v4059
    %v4321 = vunpack.c.l.b16 %v4060
    %v4322 = vunpack.c.h.b16 %v4060
    %v4323 = vunpack.c.l.b16 %v4061
    %v4324 = vunpack.c.l.b16 %v4062
    %v4325 = vunpack.c.h.b16 %v4062
    %v4326 = vunpack.c.l.b16 %v4063
    %v4327 = vunpack.c.l.b16 %v4064
    %v4328 = vunpack.c.h.b16 %v4064
    %v4329 = vunpack.c.l.b16 %v4065
    %v4330 = vunpack.c.l.b16 %v4066
    %v4331 = vunpack.c.h.b16 %v4066
    %v4332 = vunpack.c.l.b16 %v4067
    %v4333 = vunpack.c.l.b16 %v4068
    %v4334 = vunpack.c.h.b16 %v4068
    %v4335 = vunpack.c.l.b16 %v4069
    %v4336 = vunpack.c.l.b16 %v4070
    %v4337 = vunpack.c.h.b16 %v4070
    %v4338 = vunpack.c.l.b16 %v4071
    %v4339 = vunpack.c.l.b16 %v4072
    %v4340 = vunpack.c.h.b16 %v4072
    %v4341 = vunpack.c.l.b16 %v4073
    %v4342 = vunpack.c.l.b16 %v4074
    %v4343 = vunpack.c.h.b16 %v4074
    %v4344 = vunpack.c.l.b16 %v4075
    %v4345 = vunpack.c.l.b16 %v4076
    %v4346 = vunpack.c.h.b16 %v4076
    %v4347 = vunpack.c.l.b16 %v4077
    %v4348 = vunpack.c.l.b16 %v4078
    %v4349 = vunpack.c.h.b16 %v4078
    %v4350 = vunpack.c.l.b16 %v4079
    %v4351 = vunpack.c.l.b16 %v4080
    %v4352 = vunpack.c.h.b16 %v4080
    %v4353 = vunpack.c.l.b16 %v4081
    %v4354 = vunpack.c.l.b16 %v4082
    %v4355 = vunpack.c.h.b16 %v4082
    %v4356 = vunpack.c.l.b16 %v4083
    %v4357 = vunpack.c.l.b16 %v4084
    %v4358 = vunpack.c.h.b16 %v4084
    %v4359 = vunpack.c.l.b16 %v4085
    %v4360 = vunpack.c.l.b16 %v4086
    %v4361 = vunpack.c.h.b16 %v4086
    %v4362 = vunpack.c.l.b16 %v4087
    %v4363 = vunpack.c.l.b16 %v4088
    %v4364 = vunpack.c.h.b16 %v4088
    %v4365 = vunpack.c.l.b16 %v4089
    %v4366 = vunpack.c.l.b16 %v4090
    %v4367 = vunpack.c.h.b16 %v4090
    %v4368 = vunpack.c.l.b16 %v4091
    %v4369 = vunpack.c.l.b16 %v4092
    %v4370 = vunpack.c.h.b16 %v4092
    %v4371 = vunpack.c.l.b16 %v4093
    %v4372 = vunpack.c.l.b16 %v4094
    %v4373 = vunpack.c.h.b16 %v4094
    %v4374 = vunpack.c.l.b16 %v4095
    %v4375 = vunpack.c.l.b16 %v4096
    %v4376 = vunpack.c.h.b16 %v4096
    %v4377 = vunpack.c.l.b16 %v4097
    %v4378 = vunpack.c.l.b16 %v4098
    %v4379 = vunpack.c.h.b16 %v4098
    %v4380 = vunpack.c.l.b16 %v4099
    %v4381 = vunpack.c.l.b16 %v4100
    %v4382 = vunpack.c.h.b16 %v4100
    %v4383 = vunpack.c.l.b16 %v4101
    %v4384 = vunpack.c.l.b16 %v4102
    %v4385 = vunpack.c.h.b16 %v4102
    %v4386 = vunpack.c.l.b16 %v4103
    %v4387 = vunpack.c.l.b16 %v4104
    %v4388 = vunpack.c.h.b16 %v4104
    %v4389 = vunpack.c.l.b16 %v4105
    %v4390 = vunpack.c.l.b16 %v4106
    %v4391 = vunpack.c.h.b16 %v4106
    %v4392 = vunpack.c.l.b16 %v4107
    %v4393 = vunpack.c.l.b16 %v4108
    %v4394 = vunpack.c.h.b16 %v4108
    %v4395 = vunpack.c.l.b16 %v4109
    %v4396 = vunpack.c.l.b16 %v4110
    %v4397 = vunpack.c.h.b16 %v4110
    %v4398 = vunpack.c.l.b16 %v4111
    %v4399 = vunpack.c.l.b16 %v4112
    %v4400 = vunpack.c.h.b16 %v4112
    %v4401 = vunpack.c.l.b16 %v4113
    %v4402 = vunpack.c.l.b16 %v4114
    %v4403 = vunpack.c.h.b16 %v4114
    %v4404 = vunpack.c.l.b16 %v4115
    %v4405 = vunpack.c.l.b16 %v4116
    %v4406 = vunpack.c.h.b16 %v4116
    %v4407 = vunpack.c.l.b16 %v4117
    %v4408 = vunpack.c.l.b16 %v4118
    %v4409 = vunpack.c.h.b16 %v4118
    %v4410 = vunpack.c.l.b16 %v4119
    %v4411 = vunpack.c.l.b16 %v4120
    %v4412 = vunpack.c.h.b16 %v4120
    %v4413 = vunpack.c.l.b16 %v4121
    %v4414 = vunpack.c.l.b16 %v4122
    %v4415 = vunpack.c.h.b16 %v4122
    %v4416 = vunpack.c.l.b16 %v4123
    %v4417 = vunpack.c.l.b16 %v4124
    %v4418 = vunpack.c.h.b16 %v4124
    %v4419 = vunpack.c.l.b16 %v4125
    %v4420 = vunpack.c.l.b16 %v4126
    %v4421 = vunpack.c.h.b16 %v4126
    %v4422 = vunpack.c.l.b16 %v4127
    %v4423 = vunpack.c.l.b16 %v4128
    %v4424 = vunpack.c.h.b16 %v4128
    %v4425 = vunpack.c.l.b16 %v4129
    %v4426 = vunpack.c.l.b16 %v4130
    %v4427 = vunpack.c.h.b16 %v4130
    %v4428 = vunpack.c.l.b16 %v4131
    %v4429 = vunpack.c.l.b16 %v4132
    %v4430 = vunpack.c.h.b16 %v4132
    %v4431 = vunpack.c.l.b16 %v4133
    %v4432 = vunpack.c.l.b16 %v4134
    %v4433 = vunpack.c.h.b16 %v4134
    %v4434 = vunpack.c.l.b16 %v4135
    %v4435 = vunpack.c.l.b16 %v4136
    %v4436 = vunpack.c.h.b16 %v4136
    %v4437 = vunpack.c.l.b16 %v4137
    %v4438 = vunpack.c.l.b16 %v4138
    %v4439 = vunpack.c.h.b16 %v4138
    %v4440 = vunpack.c.l.b16 %v4139
    %v4441 = vunpack.c.l.b16 %v4140
    %v4442 = vunpack.c.h.b16 %v4140
    %v4443 = vunpack.c.l.b16 %v4141
    %v4444 = vunpack.c.l.b16 %v4142
    %v4445 = vunpack.c.h.b16 %v4142
    %v4446 = vunpack.c.l.b16 %v4143
    %v4447 = vunpack.c.l.b16 %v4144
    %v4448 = vunpack.c.h.b16 %v4144
    %v4449 = vunpack.c.l.b16 %v4145
    %v4450 = vunpack.c.l.b16 %v4146
    %v4451 = vunpack.c.h.b16 %v4146
    %v4452 = vunpack.c.l.b16 %v4147
    %v4453 = vunpack.c.l.b16 %v4148
    %v4454 = vunpack.c.h.b16 %v4148
    %v4455 = vunpack.c.l.b16 %v4149
    %v4456 = vunpack.c.l.b16 %v4150
    %v4457 = vunpack.c.h.b16 %v4150
    %v4458 = vunpack.c.l.b16 %v4151
    %v4459 = vunpack.c.l.b16 %v4152
    %v4460 = vunpack.c.h.b16 %v4152
    %v4461 = vunpack.c.l.b16 %v4153
    %v4462 = vunpack.c.l.b16 %v4154
    %v4463 = vunpack.c.h.b16 %v4154
    %v4464 = vunpack.c.l.b16 %v4155
    %v4465 = vunpack.c.l.b16 %v4156
    %v4466 = vunpack.c.h.b16 %v4156
    %v4467 = vunpack.c.l.b16 %v4157
    %v4468 = vunpack.c.l.b16 %v4158
    %v4469 = vunpack.c.h.b16 %v4158
    %v4470 = vunpack.c.l.b16 %v4159
    %v4471 = vunpack.c.l.b16 %v4160
    %v4472 = vunpack.c.h.b16 %v4160
    %v4473 = vunpack.c.l.b16 %v4161
    %v4474 = vunpack.c.l.b16 %v4162
    %v4475 = vunpack.c.h.b16 %v4162
    %v4476 = vunpack.c.l.b16 %v4163
    %v4477 = vunpack.c.l.b16 %v4164
    %v4478 = vunpack.c.h.b16 %v4164
    %v4479 = vunpack.c.l.b16 %v4165
    %v4480 = vunpack.c.l.b16 %v4166
    %v4481 = vunpack.c.h.b16 %v4166
    %v4482 = vunpack.c.l.b16 %v4167
    %v4483 = vunpack.c.l.b16 %v4168
    %v4484 = vunpack.c.h.b16 %v4168
    %v4485 = vunpack.c.l.b16 %v4169
    %v4486 = vunpack.c.l.b16 %v4170
    %v4487 = vunpack.c.h.b16 %v4170
    %v4488 = vunpack.c.l.b16 %v4171
    %v4489 = vunpack.c.l.b16 %v4172
    %v4490 = vunpack.c.h.b16 %v4172
    %v4491 = vunpack.c.l.b16 %v4173
    %v4492 = vunpack.c.l.b16 %v4174
    %v4493 = vunpack.c.h.b16 %v4174
    %v4494 = vunpack.c.l.b16 %v4175
    %v4495 = vunpack.c.l.b16 %v4176
    %v4496 = vunpack.c.h.b16 %v4176
    %v4497 = vunpack.c.l.b16 %v4177
    %v4498 = vpack.c.b16 %v4309, %v4306
    %v4499 = vpack.c.b16 %v4310, %v4307
    %v4500 = vpack.c.b16 %v4311, %v4308
    %v4501 = vpack.c.b16 %v4315, %v4312
    %v4502 = vpack.c.b16 %v4316, %v4313
    %v4503 = vpack.c.b16 %v4317, %v4314
    %v4504 = vpack.c.b16 %v4321, %v4318
    %v4505 = vpack.c.b16 %v4322, %v4319
    %v4506 = vpack.c.b16 %v4323, %v4320
    %v4507 = vpack.c.b16 %v4327, %v4324
    %v4508 = vpack.c.b16 %v4328, %v4325
    %v4509 = vpack.c.b16 %v4329, %v4326
    %v4510 = vpack.c.b16 %v4333, %v4330
    %v4511 = vpack.c.b16 %v4334, %v4331
    %v4512 = vpack.c.b16 %v4335, %v4332
    %v4513 = vpack.c.b16 %v4339, %v4336
    %v4514 = vpack.c.b16 %v4340, %v4337
    %v4515 = vpack.c.b16 %v4341, %v4338
    %v4516 = vpack.c.b16 %v4345, %v4342
    %v4517 = vpack.c.b16 %v4346, %v4343
    %v4518 = vpack.c.b16 %v4347, %v4344
    %v4519 = vpack.c.b16 %v4351, %v4348
    %v4520 = vpack.c.b16 %v4352, %v4349
    %v4521 = vpack.c.b16 %v4353, %v4350
    %v4522 = vpack.c.b16 %v4357, %v4354
    %v4523 = vpack.c.b16 %v4358, %v4355
    %v4524 = vpack.c.b16 %v4359, %v4356
    %v4525 = vpack.c.b16 %v4363, %v4360
    %v4526 = vpack.c.b16 %v4364, %v4361
    %v4527 = vpack.c.b16 %v4365, %v4362
    %v4528 = vpack.c.b16 %v4369, %v4366
    %v4529 = vpack.c.b16 %v4370, %v4367
    %v4530 = vpack.c.b16 %v4371, %v4368
    %v4531 = vpack.c.b16 %v4375, %v4372
    %v4532 = vpack.c.b16 %v4376, %v4373
    %v4533 = vpack.c.b16 %v4377, %v4374
    %v4534 = vpack.c.b16 %v4381, %v4378
    %v4535 = vpack.c.b16 %v4382, %v4379
    %v4536 = vpack.c.b16 %v4383, %v4380
    %v4537 = vpack.c.b16 %v4387, %v4384
    %v4538 = vpack.c.b16 %v4388, %v4385
    %v4539 = vpack.c.b16 %v4389, %v4386
    %v4540 = vpack.c.b16 %v4393, %v4390
    %v4541 = vpack.c.b16 %v4394, %v4391
    %v4542 = vpack.c.b16 %v4395, %v4392
    %v4543 = vpack.c.b16 %v4399, %v4396
    %v4544 = vpack.c.b16 %v4400, %v4397
    %v4545 = vpack.c.b16 %v4401, %v4398
    %v4546 = vpack.c.b16 %v4405, %v4402
    %v4547 = vpack.c.b16 %v4406, %v4403
    %v4548 = vpack.c.b16 %v4407, %v4404
    %v4549 = vpack.c.b16 %v4411, %v4408
    %v4550 = vpack.c.b16 %v4412, %v4409
    %v4551 = vpack.c.b16 %v4413, %v4410
    %v4552 = vpack.c.b16 %v4417, %v4414
    %v4553 = vpack.c.b16 %v4418, %v4415
    %v4554 = vpack.c.b16 %v4419, %v4416
    %v4555 = vpack.c.b16 %v4423, %v4420
    %v4556 = vpack.c.b16 %v4424, %v4421
    %v4557 = vpack.c.b16 %v4425, %v4422
    %v4558 = vpack.c.b16 %v4429, %v4426
    %v4559 = vpack.c.b16 %v4430, %v4427
    %v4560 = vpack.c.b16 %v4431, %v4428
    %v4561 = vpack.c.b16 %v4435, %v4432
    %v4562 = vpack.c.b16 %v4436, %v4433
    %v4563 = vpack.c.b16 %v4437, %v4434
    %v4564 = vpack.c.b16 %v4441, %v4438
    %v4565 = vpack.c.b16 %v4442, %v4439
    %v4566 = vpack.c.b16 %v4443, %v4440
    %v4567 = vpack.c.b16 %v4447, %v4444
    %v4568 = vpack.c.b16 %v4448, %v4445
    %v4569 = vpack.c.b16 %v4449, %v4446
    %v4570 = vpack.c.b16 %v4453, %v4450
    %v4571 = vpack.c.b16 %v4454, %v4451
    %v4572 = vpack.c.b16 %v4455, %v4452
    %v4573 = vpack.c.b16 %v4459, %v4456
    %v4574 = vpack.c.b16 %v4460, %v4457
    %v4575 = vpack.c.b16 %v4461, %v4458
    %v4576 = vpack.c.b16 %v4465, %v4462
    %v4577 = vpack.c.b16 %v4466, %v4463
    %v4578 = vpack.c.b16 %v4467, %v4464
    %v4579 = vpack.c.b16 %v4471, %v4468
    %v4580 = vpack.c.b16 %v4472, %v4469
    %v4581 = vpack.c.b16 %v4473, %v4470
    %v4582 = vpack.c.b16 %v4477, %v4474
    %v4583 = vpack.c.b16 %v4478, %v4475
    %v4584 = vpack.c.b16 %v4479, %v4476
    %v4585 = vpack.c.b16 %v4483, %v4480
    %v4586 = vpack.c.b16 %v4484, %v4481
    %v4587 = vpack.c.b16 %v4485, %v4482
    %v4588 = vpack.c.b16 %v4489, %v4486
    %v4589 = vpack.c.b16 %v4490, %v4487
    %v4590 = vpack.c.b16 %v4491, %v4488
    %v4591 = vpack.c.b16 %v4495, %v4492
    %v4592 = vpack.c.b16 %v4496, %v4493
    %v4593 = vpack.c.b16 %v4497, %v4494
    %4690 = vmatprep.subr.bf16.mxu0 %v4499
    %4691 = vmatpush1.bf16.msra.mxu0 %v4498
    %4692 = vmatprep.subr.bf16.mxu0 %v4502
    %4693 = vmatpush1.bf16.msra.mxu0 %v4501
    %4694 = vmatprep.subr.bf16.mxu0 %v4505
    %4695 = vmatpush1.bf16.msra.mxu0 %v4504
    %4696 = vmatprep.subr.bf16.mxu0 %v4508
    %4697 = vmatpush1.bf16.msra.mxu0 %v4507
    %4698 = vmatprep.subr.bf16.mxu0 %v4511
    %4699 = vmatpush1.bf16.msra.mxu0 %v4510
    %4700 = vmatprep.subr.bf16.mxu0 %v4514
    %4701 = vmatpush1.bf16.msra.mxu0 %v4513
    %4702 = vmatprep.subr.bf16.mxu0 %v4517
    %4703 = vmatpush1.bf16.msra.mxu0 %v4516
    %4704 = vmatprep.subr.bf16.mxu0 %v4520
    %4705 = vmatpush1.bf16.msra.mxu0 %v4519
    %4706 = vmatprep.subr.bf16.mxu0 %v4523
    %4707 = vmatpush1.bf16.msra.mxu0 %v4522
    %4708 = vmatprep.subr.bf16.mxu0 %v4526
    %4709 = vmatpush1.bf16.msra.mxu0 %v4525
    %4710 = vmatprep.subr.bf16.mxu0 %v4529
    %4711 = vmatpush1.bf16.msra.mxu0 %v4528
    %4712 = vmatprep.subr.bf16.mxu0 %v4532
    %4713 = vmatpush1.bf16.msra.mxu0 %v4531
    %4714 = vmatprep.subr.bf16.mxu0 %v4535
    %4715 = vmatpush1.bf16.msra.mxu0 %v4534
    %4716 = vmatprep.subr.bf16.mxu0 %v4538
    %4717 = vmatpush1.bf16.msra.mxu0 %v4537
    %4718 = vmatprep.subr.bf16.mxu0 %v4541
    %4719 = vmatpush1.bf16.msra.mxu0 %v4540
    %4720 = vmatprep.subr.bf16.mxu0 %v4544
    %4721 = vmatpush1.bf16.msra.mxu0 %v4543
    %4722 = vmatprep.mubr.bf16.mxu0 %v4047
    %4723 = vmatmul.mubr.bf16.gmra.mrb[0].mxu0 %v4046
    %v4724 = vpop.f32.mrb[0].mxu0
    %v4725 = vadd.f32 0.0, %v4724
    %v4726 = vpop.f32.mrb[0].mxu0
    %v4727 = vadd.f32 0.0, %v4726
    %v4728 = vpop.f32.mrb[0].mxu0
    %v4729 = vadd.f32 0.0, %v4728
    %v4730 = vpop.f32.mrb[0].mxu0
    %v4731 = vadd.f32 0.0, %v4730
    %4732 = vdwg.mxu0
    %4733 = vmatprep.subr.bf16.mxu0 %v4547
    %4734 = vmatpush1.bf16.msra.mxu0 %v4546
    %4735 = vmatprep.subr.bf16.mxu0 %v4550
    %4736 = vmatpush1.bf16.msra.mxu0 %v4549
    %4737 = vmatprep.subr.bf16.mxu0 %v4553
    %4738 = vmatpush1.bf16.msra.mxu0 %v4552
    %4739 = vmatprep.subr.bf16.mxu0 %v4556
    %4740 = vmatpush1.bf16.msra.mxu0 %v4555
    %4741 = vmatprep.subr.bf16.mxu0 %v4559
    %4742 = vmatpush1.bf16.msra.mxu0 %v4558
    %4743 = vmatprep.subr.bf16.mxu0 %v4562
    %4744 = vmatpush1.bf16.msra.mxu0 %v4561
    %4745 = vmatprep.subr.bf16.mxu0 %v4565
    %4746 = vmatpush1.bf16.msra.mxu0 %v4564
    %4747 = vmatprep.subr.bf16.mxu0 %v4568
    %4748 = vmatpush1.bf16.msra.mxu0 %v4567
    %4749 = vmatprep.subr.bf16.mxu0 %v4571
    %4750 = vmatpush1.bf16.msra.mxu0 %v4570
    %4751 = vmatprep.subr.bf16.mxu0 %v4574
    %4752 = vmatpush1.bf16.msra.mxu0 %v4573
    %4753 = vmatprep.subr.bf16.mxu0 %v4577
    %4754 = vmatpush1.bf16.msra.mxu0 %v4576
    %4755 = vmatprep.subr.bf16.mxu0 %v4580
    %4756 = vmatpush1.bf16.msra.mxu0 %v4579
    %4757 = vmatprep.subr.bf16.mxu0 %v4583
    %4758 = vmatpush1.bf16.msra.mxu0 %v4582
    %4759 = vmatprep.subr.bf16.mxu0 %v4586
    %4760 = vmatpush1.bf16.msra.mxu0 %v4585
    %4761 = vmatprep.subr.bf16.mxu0 %v4589
    %4762 = vmatpush1.bf16.msra.mxu0 %v4588
    %4763 = vmatprep.subr.bf16.mxu0 %v4592
    %4764 = vmatpush1.bf16.msra.mxu0 %v4591
    %4765 = vmatprep.mubr.bf16.mxu0 %v4049
    %4766 = vmatmul.mubr.bf16.gmra.mrb[0].mxu0 %v4048
    %v4767 = vpop.f32.mrb[0].mxu0
    %v4768 = vadd.f32 %v4725, %v4767
    %v4769 = vpop.f32.mrb[0].mxu0
    %v4770 = vadd.f32 %v4727, %v4769
    %v4771 = vpop.f32.mrb[0].mxu0
    %v4772 = vadd.f32 %v4729, %v4771
    %v4773 = vpop.f32.mrb[0].mxu0
    %v4774 = vadd.f32 %v4731, %v4773
    %4775 = vdwg.mxu0
    %4776 = vmatprep.subr.bf16.mxu0 0
    %4777 = vmatpush1.bf16.msra.mxu0 %v4500
    %4778 = vmatprep.subr.bf16.mxu0 0
    %4779 = vmatpush1.bf16.msra.mxu0 %v4503
    %4780 = vmatprep.subr.bf16.mxu0 0
    %4781 = vmatpush1.bf16.msra.mxu0 %v4506
    %4782 = vmatprep.subr.bf16.mxu0 0
    %4783 = vmatpush1.bf16.msra.mxu0 %v4509
    %4784 = vmatprep.subr.bf16.mxu0 0
    %4785 = vmatpush1.bf16.msra.mxu0 %v4512
    %4786 = vmatprep.subr.bf16.mxu0 0
    %4787 = vmatpush1.bf16.msra.mxu0 %v4515
    %4788 = vmatprep.subr.bf16.mxu0 0
    %4789 = vmatpush1.bf16.msra.mxu0 %v4518
    %4790 = vmatprep.subr.bf16.mxu0 0
    %4791 = vmatpush1.bf16.msra.mxu0 %v4521
    %4792 = vmatprep.subr.bf16.mxu0 0
    %4793 = vmatpush1.bf16.msra.mxu0 %v4524
    %4794 = vmatprep.subr.bf16.mxu0 0
    %4795 = vmatpush1.bf16.msra.mxu0 %v4527
    %4796 = vmatprep.subr.bf16.mxu0 0
    %4797 = vmatpush1.bf16.msra.mxu0 %v4530
    %4798 = vmatprep.subr.bf16.mxu0 0
    %4799 = vmatpush1.bf16.msra.mxu0 %v4533
    %4800 = vmatprep.subr.bf16.mxu0 0
    %4801 = vmatpush1.bf16.msra.mxu0 %v4536
    %4802 = vmatprep.subr.bf16.mxu0 0
    %4803 = vmatpush1.bf16.msra.mxu0 %v4539
    %4804 = vmatprep.subr.bf16.mxu0 0
    %4805 = vmatpush1.bf16.msra.mxu0 %v4542
    %4806 = vmatprep.subr.bf16.mxu0 0
    %4807 = vmatpush1.bf16.msra.mxu0 %v4545
    %4808 = vmatprep.mubr.bf16.mxu0 %v4047
    %4809 = vmatmul.mubr.bf16.gmra.mrb[0].mxu0 %v4046
    %v4810 = vpop.f32.mrb[0].mxu0
    %v4811 = vadd.f32 0.0, %v4810
    %v4812 = vpop.f32.mrb[0].mxu0
    %v4813 = vpop.f32.mrb[0].mxu0
    %v4814 = vadd.f32 0.0, %v4813
    %v4815 = vpop.f32.mrb[0].mxu0
    %4816 = vdwg.mxu0
    %4817 = vmatprep.subr.bf16.mxu0 0
    %4818 = vmatpush1.bf16.msra.mxu0 %v4548
    %4819 = vmatprep.subr.bf16.mxu0 0
    %4820 = vmatpush1.bf16.msra.mxu0 %v4551
    %4821 = vmatprep.subr.bf16.mxu0 0
    %4822 = vmatpush1.bf16.msra.mxu0 %v4554
    %4823 = vmatprep.subr.bf16.mxu0 0
    %4824 = vmatpush1.bf16.msra.mxu0 %v4557
    %4825 = vmatprep.subr.bf16.mxu0 0
    %4826 = vmatpush1.bf16.msra.mxu0 %v4560
    %4827 = vmatprep.subr.bf16.mxu0 0
    %4828 = vmatpush1.bf16.msra.mxu0 %v4563
    %4829 = vmatprep.subr.bf16.mxu0 0
    %4830 = vmatpush1.bf16.msra.mxu0 %v4566
    %4831 = vmatprep.subr.bf16.mxu0 0
    %4832 = vmatpush1.bf16.msra.mxu0 %v4569
    %4833 = vmatprep.subr.bf16.mxu0 0
    %4834 = vmatpush1.bf16.msra.mxu0 %v4572
    %4835 = vmatprep.subr.bf16.mxu0 0
    %4836 = vmatpush1.bf16.msra.mxu0 %v4575
    %4837 = vmatprep.subr.bf16.mxu0 0
    %4838 = vmatpush1.bf16.msra.mxu0 %v4578
    %4839 = vmatprep.subr.bf16.mxu0 0
    %4840 = vmatpush1.bf16.msra.mxu0 %v4581
    %4841 = vmatprep.subr.bf16.mxu0 0
    %4842 = vmatpush1.bf16.msra.mxu0 %v4584
    %4843 = vmatprep.subr.bf16.mxu0 0
    %4844 = vmatpush1.bf16.msra.mxu0 %v4587
    %4845 = vmatprep.subr.bf16.mxu0 0
    %4846 = vmatpush1.bf16.msra.mxu0 %v4590
    %4847 = vmatprep.subr.bf16.mxu0 0
    %4848 = vmatpush1.bf16.msra.mxu0 %v4593
    %4849 = vmatprep.mubr.bf16.mxu0 %v4049
    %4850 = vmatmul.mubr.bf16.gmra.mrb[0].mxu0 %v4048
    %v4851 = vpop.f32.mrb[0].mxu0
    %v4852 = vadd.f32 %v4811, %v4851
    %v4853 = vpop.f32.mrb[0].mxu0
    %v4854 = vpop.f32.mrb[0].mxu0
    %v4855 = vadd.f32 %v4814, %v4854
    %v4856 = vpop.f32.mrb[0].mxu0
    %4857 = vdwg.mxu0
    %v4858 = vadd.f32 %v3172, %v4768
    %v4859 = vadd.f32 %v3174, %v4770
    %v4860 = vadd.f32 %v3256, %v4852
    %v4861 = vadd.f32 %v3176, %v4772
    %v4862 = vadd.f32 %v3178, %v4774
    %v4863 = vadd.f32 %v3259, %v4855
    %4864 = vst [vmem:[#allocation8] sm:$0xff] %v4858
    %4865 = vst [vmem:[#allocation8 + $0x8] sm:$0xff] %v4859
    %4866 = vst [vmem:[#allocation8 + $0x10] sm:$0xff] %v4860
    %4867 = vst [vmem:[#allocation8 + $0x18] sm:$0xff] %v4861
    %4868 = vst [vmem:[#allocation8 + $0x20] sm:$0xff] %v4862
    %4869 = vst [vmem:[#allocation8 + $0x28] sm:$0xff] %v4863
    // Predicated region
    $region26: #{tpu_custom_call.1} parent=1 // pred_check
      _
    $region27: #{tpu_custom_call.1} parent=1 // pred_check_branch
      %4871 = sbr.rel (0) target = $region29
    $region28: #{tpu_custom_call.1} parent=1 // pred_region
      %s4873 = ssub.s32 768, 768
      %4874 = vsyncadd [#allocation4], %s4873
      %s4875 = sshll.u32 [#allocation8], 4
      %s4876 = int_to_ptr.vmem [resolvable:$true] %s4875
      %4881 = dma.vmem_to_hbm [thread:$0]  %s4876, 768, %s3, [#allocation4], 384, 384, 24
    $region29: #{tpu_custom_call.1} parent=1 // pred_fallthru
      _
    // Predicated region
    $region30: #{tpu_custom_call.1} parent=1 // pred_check
      _
    $region31: #{tpu_custom_call.1} parent=1 // pred_check_branch
      %4883 = sbr.rel (0) target = $region33
    $region32: #{tpu_custom_call.1} parent=1 // pred_region
      %4884 = dma.done [#allocation4], 768
    $region33: #{tpu_custom_call.1} parent=1 // pred_fallthru
      _
    %4885 = vsyncpa [#allocation3], 1
    %4886 = vsyncpa [#allocation6], 1
    %4887 = vsyncpa [#allocation4], 1

</llo_original>
